<compile_context>
chip_gen: v6e
topology: v6e:2x2x1
jax: 0.10.0
libtpu: 0.0.40
codegen_flags: <defaults>
</compile_context>

<pallas_src>
import jax
import jax.numpy as jnp
from jax.experimental import pallas as pl
from jax.experimental.pallas import tpu as pltpu

HIDDEN = 32              # stands in for hidden_size = 64
NUM_LAYERS = 2           # must stay 2 (decoder forward only valid for B=1, layers=2)
GRID = 12
IN_SIZE = GRID * GRID    # stands in for 69*69
OUT_SIZE = GRID * GRID   # stands in for 69*69
OUT_LEN = 8              # stands in for output_length = 48
SEQ_LEN = 6
BATCH = 1
OUT_PAD = ((OUT_SIZE + 127) // 128) * 128        # lane-dense padded head width (= 256)

# Row offsets inside the packed 32-lane weight slab.
_W_ROWS = IN_SIZE + 6 * HIDDEN                    # 144 + 192 = 336 (weights)
W_SLAB_ROWS = _W_ROWS + 8                         # + 4 bias rows + 4 zero-pad rows = 344
HEAD_SLAB_ROWS = HIDDEN + 8                       # 32 weight rows + 1 bias row + 7 pad = 40


def seq2seq_kernel(x_ref, w_ref, head_ref, out_ref):
    """
    x_ref    : (SEQ_LEN, IN_SIZE)          encoder input sequence
    w_ref    : (W_SLAB_ROWS, HIDDEN)       packed RNN weights + folded biases
    head_ref : (HEAD_SLAB_ROWS, OUT_PAD)   packed linear head (W^T rows 0..H-1, bias row H)
    out_ref  : (2*OUT_LEN, OUT_PAD)        lane-dense output slab
    """
    f32 = jnp.float32
    H = HIDDEN
    T = x_ref.shape[0]
    out_len = out_ref.shape[0] // 2

    # ---- Carve the packed slabs with static slices (hoisted once, loop-invariant) ----
    off = 0
    e_wih0 = w_ref[off:off + IN_SIZE, :]; off += IN_SIZE     # (144, H)
    e_whh0 = w_ref[off:off + H, :]; off += H
    e_wih1 = w_ref[off:off + H, :]; off += H
    e_whh1 = w_ref[off:off + H, :]; off += H
    d_whh0 = w_ref[off:off + H, :]; off += H
    d_wih1 = w_ref[off:off + H, :]; off += H
    d_whh1 = w_ref[off:off + H, :]; off += H
    e_b0 = w_ref[off + 0:off + 1, :]                          # b_ih0 + b_hh0 (encoder)
    e_b1 = w_ref[off + 1:off + 2, :]                          # b_ih1 + b_hh1 (encoder)
    d_b0 = w_ref[off + 2:off + 3, :]                          # b_ih0 + b_hh0 (decoder)
    d_b1 = w_ref[off + 3:off + 4, :]                          # b_ih1 + b_hh1 (decoder)

    lin_w = head_ref[0:H, :]                                   # (H, OUT_PAD)
    lin_b = head_ref[H:H + 1, :]                               # (1, OUT_PAD)

    # ---------------- Encoder: 2-layer tanh RNN over the input sequence ----------------
    # Layer-0 input projection for ALL steps in one MXU push (bias folded in).
    xproj = jnp.dot(x_ref[...], e_wih0, preferred_element_type=f32) + e_b0   # (T, H)

    h0 = jnp.zeros((1, H), f32)
    h1 = jnp.zeros((1, H), f32)
    for t in range(T):                          # fully unrolled (T = 6)
        h0 = jnp.tanh(xproj[t:t + 1, :]
                      + jnp.dot(h0, e_whh0, preferred_element_type=f32))
        # Split layer-1 update: h1@W_hh1 only depends on the previous h1 and can be
        # scheduled before the fresh h0 is ready; no lane-concatenate on the chain.
        h1 = jnp.tanh(jnp.dot(h0, e_wih1, preferred_element_type=f32)
                      + jnp.dot(h1, e_whh1, preferred_element_type=f32) + e_b1)

    # ---------------- Decoder: per output step, 2 RNN cells (seq_len = 2, zero input) ---
    def cell(d0, d1):
        # Layer 0: input is identically zero -> recurrent term + folded bias only.
        d0 = jnp.tanh(jnp.dot(d0, d_whh0, preferred_element_type=f32) + d_b0)
        # Layer 1: two small dots, no concatenate.
        d1 = jnp.tanh(jnp.dot(d0, d_wih1, preferred_element_type=f32)
                      + jnp.dot(d1, d_whh1, preferred_element_type=f32) + d_b1)
        return d0, d1

    d0, d1 = h0, h1
    rows0, rows1 = [], []
    for _ in range(out_len):                    # fully unrolled (out_len = 8)
        d0, d1 = cell(d0, d1)                   # RNN seq step 0 -> output[0, t, :]
        rows0.append(d1)
        d0, d1 = cell(d0, d1)                   # RNN seq step 1 -> output[1, t, :]
        rows1.append(d1)

    # Single sublane concatenate off the recurrence critical path; no VMEM scratch.
    d_all = jnp.concatenate(rows0 + rows1, axis=0)             # (2*out_len, H)

    # ---------------- Batched linear head: one matmul + one dense (16, 256) store ------
    out_ref[...] = jnp.dot(d_all, lin_w, preferred_element_type=f32) + lin_b


def _fuse_params(params):
    """Host-side weight pre-transposition bookkeeping: bias folding, slab packing, padding."""
    (e_wih0, e_whh0, e_bih0, e_bhh0, e_wih1, e_whh1, e_bih1, e_bhh1,
     _d_wih0, d_whh0, d_bih0, d_bhh0, d_wih1, d_whh1, d_bih1, d_bhh1,
     lin_w, lin_b) = params
    e_b0 = e_bih0 + e_bhh0
    e_b1 = e_bih1 + e_bhh1
    d_b0 = d_bih0 + d_bhh0
    d_b1 = d_bih1 + d_bhh1
    # Packed 32-lane slab: all RNN weights, then 4 folded-bias rows, then zero pad rows.
    w_slab = jnp.concatenate(
        [e_wih0, e_whh0, e_wih1, e_whh1, d_whh0, d_wih1, d_whh1,
         e_b0, e_b1, d_b0, d_b1, jnp.zeros((4, HIDDEN), jnp.float32)], axis=0)
    assert w_slab.shape == (W_SLAB_ROWS, HIDDEN)
    # Packed 256-lane head slab: lane-padded W^T (H rows) + bias row + zero pad rows.
    pad = OUT_PAD - OUT_SIZE
    lin_w_p = jnp.pad(lin_w, ((0, 0), (0, pad)))               # (H, OUT_PAD)
    lin_b_p = jnp.pad(lin_b, ((0, 0), (0, pad)))               # (1, OUT_PAD)
    head_slab = jnp.concatenate(
        [lin_w_p, lin_b_p, jnp.zeros((HEAD_SLAB_ROWS - HIDDEN - 1, OUT_PAD), jnp.float32)],
        axis=0)
    assert head_slab.shape == (HEAD_SLAB_ROWS, OUT_PAD)
    return w_slab, head_slab


def seq2seq_forward(x, params):
    assert x.shape == (BATCH, SEQ_LEN, IN_SIZE) and BATCH == 1
    x2d = x.reshape(SEQ_LEN, IN_SIZE)
    w_slab, head_slab = _fuse_params(params)
    out_flat = pl.pallas_call(
        seq2seq_kernel,
        out_shape=jax.ShapeDtypeStruct((NUM_LAYERS * OUT_LEN, OUT_PAD), jnp.float32),
        in_specs=[pl.BlockSpec(memory_space=pltpu.MemorySpace.VMEM)] * 3,
        out_specs=pl.BlockSpec(memory_space=pltpu.MemorySpace.VMEM),
    )(x2d, w_slab, head_slab)
    return out_flat[:, :OUT_SIZE].reshape(NUM_LAYERS, OUT_LEN, OUT_SIZE)


def init_params(key):
    """Deterministic PyTorch-style uniform(-1/sqrt(H), 1/sqrt(H)) init, pre-transposed."""
    H, Din, O = HIDDEN, IN_SIZE, OUT_SIZE
    k = 1.0 / float(jnp.sqrt(jnp.float32(H)))
    keys = jax.random.split(key, 18)
    u = lambda kk, shape: jax.random.uniform(kk, shape, jnp.float32, -k, k)
    return [
        # encoder RNN: layer 0 (W_ih^T, W_hh^T, b_ih, b_hh), layer 1
        u(keys[0], (Din, H)), u(keys[1], (H, H)), u(keys[2], (1, H)), u(keys[3], (1, H)),
        u(keys[4], (H, H)),   u(keys[5], (H, H)), u(keys[6], (1, H)), u(keys[7], (1, H)),
        # decoder RNN: layer 0 (W_ih unused in forward), layer 1
        u(keys[8], (H, H)),   u(keys[9], (H, H)), u(keys[10], (1, H)), u(keys[11], (1, H)),
        u(keys[12], (H, H)),  u(keys[13], (H, H)), u(keys[14], (1, H)), u(keys[15], (1, H)),
        # linear head: W^T, b
        u(keys[16], (H, O)),  u(keys[17], (1, O)),
    ]


def seq2seq_ref(x, params):
    """Pure-JAX reference with identical semantics (for correctness check)."""
    (e_wih0, e_whh0, e_bih0, e_bhh0, e_wih1, e_whh1, e_bih1, e_bhh1,
     _d_wih0, d_whh0, d_bih0, d_bhh0, d_wih1, d_whh1, d_bih1, d_bhh1,
     lin_w, lin_b) = params
    xs = x[0]
    h0 = jnp.zeros((1, HIDDEN), jnp.float32)
    h1 = jnp.zeros((1, HIDDEN), jnp.float32)
    for t in range(SEQ_LEN):
        xt = xs[t:t + 1]
        h0 = jnp.tanh(xt @ e_wih0 + e_bih0 + h0 @ e_whh0 + e_bhh0)
        h1 = jnp.tanh(h0 @ e_wih1 + e_bih1 + h1 @ e_whh1 + e_bhh1)
    d0, d1 = h0, h1
    rows0, rows1 = [], []
    for _ in range(OUT_LEN):
        d0 = jnp.tanh(d_bih0 + d0 @ d_whh0 + d_bhh0)
        d1 = jnp.tanh(d0 @ d_wih1 + d_bih1 + d1 @ d_whh1 + d_bhh1)
        rows0.append(d1 @ lin_w + lin_b)
        d0 = jnp.tanh(d_bih0 + d0 @ d_whh0 + d_bhh0)
        d1 = jnp.tanh(d0 @ d_wih1 + d_bih1 + d1 @ d_whh1 + d_bhh1)
        rows1.append(d1 @ lin_w + lin_b)
    return jnp.stack([jnp.concatenate(rows0, 0), jnp.concatenate(rows1, 0)], 0)


if __name__ == "__main__":
    key = jax.random.PRNGKey(0)
    kx, kp = jax.random.split(key)
    x = jax.random.normal(kx, (BATCH, SEQ_LEN, IN_SIZE), jnp.float32)
    params = init_params(kp)

    out = jax.block_until_ready(seq2seq_forward(x, params))

    assert out.shape == (NUM_LAYERS, OUT_LEN, OUT_SIZE), out.shape
    ref = seq2seq_ref(x, params)
    assert jnp.allclose(out, ref, atol=1e-3, rtol=1e-3), \
        float(jnp.max(jnp.abs(out - ref)))
    print("KERNEL_OK")
</pallas_src>

<mosaic_0001>
module attributes {stable_mosaic.version = 11 : i64} {
  func.func @seq2seq_kernel(%arg0: memref<6x144xf32, #tpu.memory_space<vmem>>, %arg1: memref<344x32xf32, #tpu.memory_space<vmem>>, %arg2: memref<40x256xf32, #tpu.memory_space<vmem>>, %arg3: memref<16x256xf32, #tpu.memory_space<vmem>>) attributes {dimension_semantics = [], scalar_prefetch = 0 : i64, scratch_operands = 0 : i64, tpu.core_type = #tpu.core_type<tc>} {
    %c0 = arith.constant 0 : index
    %c0_0 = arith.constant 0 : index
    %0 = vector.load %arg1[%c0, %c0_0] : memref<344x32xf32, #tpu.memory_space<vmem>>, vector<144x32xf32>
    %c144 = arith.constant 144 : index
    %c0_1 = arith.constant 0 : index
    %1 = vector.load %arg1[%c144, %c0_1] : memref<344x32xf32, #tpu.memory_space<vmem>>, vector<32x32xf32>
    %c176 = arith.constant 176 : index
    %c0_2 = arith.constant 0 : index
    %2 = vector.load %arg1[%c176, %c0_2] : memref<344x32xf32, #tpu.memory_space<vmem>>, vector<32x32xf32>
    %c208 = arith.constant 208 : index
    %c0_3 = arith.constant 0 : index
    %3 = vector.load %arg1[%c208, %c0_3] : memref<344x32xf32, #tpu.memory_space<vmem>>, vector<32x32xf32>
    %c240 = arith.constant 240 : index
    %c0_4 = arith.constant 0 : index
    %4 = vector.load %arg1[%c240, %c0_4] : memref<344x32xf32, #tpu.memory_space<vmem>>, vector<32x32xf32>
    %c272 = arith.constant 272 : index
    %c0_5 = arith.constant 0 : index
    %5 = vector.load %arg1[%c272, %c0_5] : memref<344x32xf32, #tpu.memory_space<vmem>>, vector<32x32xf32>
    %c304 = arith.constant 304 : index
    %c0_6 = arith.constant 0 : index
    %6 = vector.load %arg1[%c304, %c0_6] : memref<344x32xf32, #tpu.memory_space<vmem>>, vector<32x32xf32>
    %c336 = arith.constant 336 : index
    %c0_7 = arith.constant 0 : index
    %7 = vector.load %arg1[%c336, %c0_7] : memref<344x32xf32, #tpu.memory_space<vmem>>, vector<1x32xf32>
    %c337 = arith.constant 337 : index
    %c0_8 = arith.constant 0 : index
    %8 = vector.load %arg1[%c337, %c0_8] : memref<344x32xf32, #tpu.memory_space<vmem>>, vector<1x32xf32>
    %c338 = arith.constant 338 : index
    %c0_9 = arith.constant 0 : index
    %9 = vector.load %arg1[%c338, %c0_9] : memref<344x32xf32, #tpu.memory_space<vmem>>, vector<1x32xf32>
    %c339 = arith.constant 339 : index
    %c0_10 = arith.constant 0 : index
    %10 = vector.load %arg1[%c339, %c0_10] : memref<344x32xf32, #tpu.memory_space<vmem>>, vector<1x32xf32>
    %c0_11 = arith.constant 0 : index
    %c0_12 = arith.constant 0 : index
    %11 = vector.load %arg2[%c0_11, %c0_12] : memref<40x256xf32, #tpu.memory_space<vmem>>, vector<32x256xf32>
    %c32 = arith.constant 32 : index
    %c0_13 = arith.constant 0 : index
    %12 = vector.load %arg2[%c32, %c0_13] : memref<40x256xf32, #tpu.memory_space<vmem>>, vector<1x256xf32>
    %c0_14 = arith.constant 0 : index
    %c0_15 = arith.constant 0 : index
    %13 = vector.load %arg0[%c0_14, %c0_15] : memref<6x144xf32, #tpu.memory_space<vmem>>, vector<6x144xf32>
    %cst = arith.constant dense<0.000000e+00> : vector<6x32xf32>
    %14 = tpu.matmul %13, %0, %cst {dimension_numbers = #tpu.dot_dimension_numbers<[1], [0], [0], [1], [0, 0, 1, 1], [], []>} : vector<6x144xf32>, vector<144x32xf32>, vector<6x32xf32> -> vector<6x32xf32>
    %15 = vector.broadcast %7 : vector<1x32xf32> to vector<6x32xf32>
    %16 = arith.addf %14, %15 : vector<6x32xf32>
    %cst_16 = arith.constant 0.000000e+00 : f32
    %17 = vector.broadcast %cst_16 : f32 to vector<1x32xf32>
    %cst_17 = arith.constant 0.000000e+00 : f32
    %18 = vector.broadcast %cst_17 : f32 to vector<1x32xf32>
    %19 = vector.extract_strided_slice %16 {offsets = [0, 0], sizes = [1, 32], strides = [1, 1]} : vector<6x32xf32> to vector<1x32xf32>
    %cst_18 = arith.constant dense<0.000000e+00> : vector<1x32xf32>
    %20 = tpu.matmul %17, %1, %cst_18 {dimension_numbers = #tpu.dot_dimension_numbers<[1], [0], [0], [1], [0, 0, 1, 1], [], []>} : vector<1x32xf32>, vector<32x32xf32>, vector<1x32xf32> -> vector<1x32xf32>
    %21 = arith.addf %19, %20 : vector<1x32xf32>
    %22 = math.tanh %21 : vector<1x32xf32>
    %cst_19 = arith.constant dense<0.000000e+00> : vector<1x32xf32>
    %23 = tpu.matmul %22, %2, %cst_19 {dimension_numbers = #tpu.dot_dimension_numbers<[1], [0], [0], [1], [0, 0, 1, 1], [], []>} : vector<1x32xf32>, vector<32x32xf32>, vector<1x32xf32> -> vector<1x32xf32>
    %cst_20 = arith.constant dense<0.000000e+00> : vector<1x32xf32>
    %24 = tpu.matmul %18, %3, %cst_20 {dimension_numbers = #tpu.dot_dimension_numbers<[1], [0], [0], [1], [0, 0, 1, 1], [], []>} : vector<1x32xf32>, vector<32x32xf32>, vector<1x32xf32> -> vector<1x32xf32>
    %25 = arith.addf %23, %24 : vector<1x32xf32>
    %26 = arith.addf %25, %8 : vector<1x32xf32>
    %27 = math.tanh %26 : vector<1x32xf32>
    %28 = vector.extract_strided_slice %16 {offsets = [1, 0], sizes = [1, 32], strides = [1, 1]} : vector<6x32xf32> to vector<1x32xf32>
    %cst_21 = arith.constant dense<0.000000e+00> : vector<1x32xf32>
    %29 = tpu.matmul %22, %1, %cst_21 {dimension_numbers = #tpu.dot_dimension_numbers<[1], [0], [0], [1], [0, 0, 1, 1], [], []>} : vector<1x32xf32>, vector<32x32xf32>, vector<1x32xf32> -> vector<1x32xf32>
    %30 = arith.addf %28, %29 : vector<1x32xf32>
    %31 = math.tanh %30 : vector<1x32xf32>
    %cst_22 = arith.constant dense<0.000000e+00> : vector<1x32xf32>
    %32 = tpu.matmul %31, %2, %cst_22 {dimension_numbers = #tpu.dot_dimension_numbers<[1], [0], [0], [1], [0, 0, 1, 1], [], []>} : vector<1x32xf32>, vector<32x32xf32>, vector<1x32xf32> -> vector<1x32xf32>
    %cst_23 = arith.constant dense<0.000000e+00> : vector<1x32xf32>
    %33 = tpu.matmul %27, %3, %cst_23 {dimension_numbers = #tpu.dot_dimension_numbers<[1], [0], [0], [1], [0, 0, 1, 1], [], []>} : vector<1x32xf32>, vector<32x32xf32>, vector<1x32xf32> -> vector<1x32xf32>
    %34 = arith.addf %32, %33 : vector<1x32xf32>
    %35 = arith.addf %34, %8 : vector<1x32xf32>
    %36 = math.tanh %35 : vector<1x32xf32>
    %37 = vector.extract_strided_slice %16 {offsets = [2, 0], sizes = [1, 32], strides = [1, 1]} : vector<6x32xf32> to vector<1x32xf32>
    %cst_24 = arith.constant dense<0.000000e+00> : vector<1x32xf32>
    %38 = tpu.matmul %31, %1, %cst_24 {dimension_numbers = #tpu.dot_dimension_numbers<[1], [0], [0], [1], [0, 0, 1, 1], [], []>} : vector<1x32xf32>, vector<32x32xf32>, vector<1x32xf32> -> vector<1x32xf32>
    %39 = arith.addf %37, %38 : vector<1x32xf32>
    %40 = math.tanh %39 : vector<1x32xf32>
    %cst_25 = arith.constant dense<0.000000e+00> : vector<1x32xf32>
    %41 = tpu.matmul %40, %2, %cst_25 {dimension_numbers = #tpu.dot_dimension_numbers<[1], [0], [0], [1], [0, 0, 1, 1], [], []>} : vector<1x32xf32>, vector<32x32xf32>, vector<1x32xf32> -> vector<1x32xf32>
    %cst_26 = arith.constant dense<0.000000e+00> : vector<1x32xf32>
    %42 = tpu.matmul %36, %3, %cst_26 {dimension_numbers = #tpu.dot_dimension_numbers<[1], [0], [0], [1], [0, 0, 1, 1], [], []>} : vector<1x32xf32>, vector<32x32xf32>, vector<1x32xf32> -> vector<1x32xf32>
    %43 = arith.addf %41, %42 : vector<1x32xf32>
    %44 = arith.addf %43, %8 : vector<1x32xf32>
    %45 = math.tanh %44 : vector<1x32xf32>
    %46 = vector.extract_strided_slice %16 {offsets = [3, 0], sizes = [1, 32], strides = [1, 1]} : vector<6x32xf32> to vector<1x32xf32>
    %cst_27 = arith.constant dense<0.000000e+00> : vector<1x32xf32>
    %47 = tpu.matmul %40, %1, %cst_27 {dimension_numbers = #tpu.dot_dimension_numbers<[1], [0], [0], [1], [0, 0, 1, 1], [], []>} : vector<1x32xf32>, vector<32x32xf32>, vector<1x32xf32> -> vector<1x32xf32>
    %48 = arith.addf %46, %47 : vector<1x32xf32>
    %49 = math.tanh %48 : vector<1x32xf32>
    %cst_28 = arith.constant dense<0.000000e+00> : vector<1x32xf32>
    %50 = tpu.matmul %49, %2, %cst_28 {dimension_numbers = #tpu.dot_dimension_numbers<[1], [0], [0], [1], [0, 0, 1, 1], [], []>} : vector<1x32xf32>, vector<32x32xf32>, vector<1x32xf32> -> vector<1x32xf32>
    %cst_29 = arith.constant dense<0.000000e+00> : vector<1x32xf32>
    %51 = tpu.matmul %45, %3, %cst_29 {dimension_numbers = #tpu.dot_dimension_numbers<[1], [0], [0], [1], [0, 0, 1, 1], [], []>} : vector<1x32xf32>, vector<32x32xf32>, vector<1x32xf32> -> vector<1x32xf32>
    %52 = arith.addf %50, %51 : vector<1x32xf32>
    %53 = arith.addf %52, %8 : vector<1x32xf32>
    %54 = math.tanh %53 : vector<1x32xf32>
    %55 = vector.extract_strided_slice %16 {offsets = [4, 0], sizes = [1, 32], strides = [1, 1]} : vector<6x32xf32> to vector<1x32xf32>
    %cst_30 = arith.constant dense<0.000000e+00> : vector<1x32xf32>
    %56 = tpu.matmul %49, %1, %cst_30 {dimension_numbers = #tpu.dot_dimension_numbers<[1], [0], [0], [1], [0, 0, 1, 1], [], []>} : vector<1x32xf32>, vector<32x32xf32>, vector<1x32xf32> -> vector<1x32xf32>
    %57 = arith.addf %55, %56 : vector<1x32xf32>
    %58 = math.tanh %57 : vector<1x32xf32>
    %cst_31 = arith.constant dense<0.000000e+00> : vector<1x32xf32>
    %59 = tpu.matmul %58, %2, %cst_31 {dimension_numbers = #tpu.dot_dimension_numbers<[1], [0], [0], [1], [0, 0, 1, 1], [], []>} : vector<1x32xf32>, vector<32x32xf32>, vector<1x32xf32> -> vector<1x32xf32>
    %cst_32 = arith.constant dense<0.000000e+00> : vector<1x32xf32>
    %60 = tpu.matmul %54, %3, %cst_32 {dimension_numbers = #tpu.dot_dimension_numbers<[1], [0], [0], [1], [0, 0, 1, 1], [], []>} : vector<1x32xf32>, vector<32x32xf32>, vector<1x32xf32> -> vector<1x32xf32>
    %61 = arith.addf %59, %60 : vector<1x32xf32>
    %62 = arith.addf %61, %8 : vector<1x32xf32>
    %63 = math.tanh %62 : vector<1x32xf32>
    %64 = vector.extract_strided_slice %16 {offsets = [5, 0], sizes = [1, 32], strides = [1, 1]} : vector<6x32xf32> to vector<1x32xf32>
    %cst_33 = arith.constant dense<0.000000e+00> : vector<1x32xf32>
    %65 = tpu.matmul %58, %1, %cst_33 {dimension_numbers = #tpu.dot_dimension_numbers<[1], [0], [0], [1], [0, 0, 1, 1], [], []>} : vector<1x32xf32>, vector<32x32xf32>, vector<1x32xf32> -> vector<1x32xf32>
    %66 = arith.addf %64, %65 : vector<1x32xf32>
    %67 = math.tanh %66 : vector<1x32xf32>
    %cst_34 = arith.constant dense<0.000000e+00> : vector<1x32xf32>
    %68 = tpu.matmul %67, %2, %cst_34 {dimension_numbers = #tpu.dot_dimension_numbers<[1], [0], [0], [1], [0, 0, 1, 1], [], []>} : vector<1x32xf32>, vector<32x32xf32>, vector<1x32xf32> -> vector<1x32xf32>
    %cst_35 = arith.constant dense<0.000000e+00> : vector<1x32xf32>
    %69 = tpu.matmul %63, %3, %cst_35 {dimension_numbers = #tpu.dot_dimension_numbers<[1], [0], [0], [1], [0, 0, 1, 1], [], []>} : vector<1x32xf32>, vector<32x32xf32>, vector<1x32xf32> -> vector<1x32xf32>
    %70 = arith.addf %68, %69 : vector<1x32xf32>
    %71 = arith.addf %70, %8 : vector<1x32xf32>
    %72 = math.tanh %71 : vector<1x32xf32>
    %cst_36 = arith.constant dense<0.000000e+00> : vector<1x32xf32>
    %73 = tpu.matmul %67, %4, %cst_36 {dimension_numbers = #tpu.dot_dimension_numbers<[1], [0], [0], [1], [0, 0, 1, 1], [], []>} : vector<1x32xf32>, vector<32x32xf32>, vector<1x32xf32> -> vector<1x32xf32>
    %74 = arith.addf %73, %9 : vector<1x32xf32>
    %75 = math.tanh %74 : vector<1x32xf32>
    %cst_37 = arith.constant dense<0.000000e+00> : vector<1x32xf32>
    %76 = tpu.matmul %75, %5, %cst_37 {dimension_numbers = #tpu.dot_dimension_numbers<[1], [0], [0], [1], [0, 0, 1, 1], [], []>} : vector<1x32xf32>, vector<32x32xf32>, vector<1x32xf32> -> vector<1x32xf32>
    %cst_38 = arith.constant dense<0.000000e+00> : vector<1x32xf32>
    %77 = tpu.matmul %72, %6, %cst_38 {dimension_numbers = #tpu.dot_dimension_numbers<[1], [0], [0], [1], [0, 0, 1, 1], [], []>} : vector<1x32xf32>, vector<32x32xf32>, vector<1x32xf32> -> vector<1x32xf32>
    %78 = arith.addf %76, %77 : vector<1x32xf32>
    %79 = arith.addf %78, %10 : vector<1x32xf32>
    %80 = math.tanh %79 : vector<1x32xf32>
    %cst_39 = arith.constant dense<0.000000e+00> : vector<1x32xf32>
    %81 = tpu.matmul %75, %4, %cst_39 {dimension_numbers = #tpu.dot_dimension_numbers<[1], [0], [0], [1], [0, 0, 1, 1], [], []>} : vector<1x32xf32>, vector<32x32xf32>, vector<1x32xf32> -> vector<1x32xf32>
    %82 = arith.addf %81, %9 : vector<1x32xf32>
    %83 = math.tanh %82 : vector<1x32xf32>
    %cst_40 = arith.constant dense<0.000000e+00> : vector<1x32xf32>
    %84 = tpu.matmul %83, %5, %cst_40 {dimension_numbers = #tpu.dot_dimension_numbers<[1], [0], [0], [1], [0, 0, 1, 1], [], []>} : vector<1x32xf32>, vector<32x32xf32>, vector<1x32xf32> -> vector<1x32xf32>
    %cst_41 = arith.constant dense<0.000000e+00> : vector<1x32xf32>
    %85 = tpu.matmul %80, %6, %cst_41 {dimension_numbers = #tpu.dot_dimension_numbers<[1], [0], [0], [1], [0, 0, 1, 1], [], []>} : vector<1x32xf32>, vector<32x32xf32>, vector<1x32xf32> -> vector<1x32xf32>
    %86 = arith.addf %84, %85 : vector<1x32xf32>
    %87 = arith.addf %86, %10 : vector<1x32xf32>
    %88 = math.tanh %87 : vector<1x32xf32>
    %cst_42 = arith.constant dense<0.000000e+00> : vector<1x32xf32>
    %89 = tpu.matmul %83, %4, %cst_42 {dimension_numbers = #tpu.dot_dimension_numbers<[1], [0], [0], [1], [0, 0, 1, 1], [], []>} : vector<1x32xf32>, vector<32x32xf32>, vector<1x32xf32> -> vector<1x32xf32>
    %90 = arith.addf %89, %9 : vector<1x32xf32>
    %91 = math.tanh %90 : vector<1x32xf32>
    %cst_43 = arith.constant dense<0.000000e+00> : vector<1x32xf32>
    %92 = tpu.matmul %91, %5, %cst_43 {dimension_numbers = #tpu.dot_dimension_numbers<[1], [0], [0], [1], [0, 0, 1, 1], [], []>} : vector<1x32xf32>, vector<32x32xf32>, vector<1x32xf32> -> vector<1x32xf32>
    %cst_44 = arith.constant dense<0.000000e+00> : vector<1x32xf32>
    %93 = tpu.matmul %88, %6, %cst_44 {dimension_numbers = #tpu.dot_dimension_numbers<[1], [0], [0], [1], [0, 0, 1, 1], [], []>} : vector<1x32xf32>, vector<32x32xf32>, vector<1x32xf32> -> vector<1x32xf32>
    %94 = arith.addf %92, %93 : vector<1x32xf32>
    %95 = arith.addf %94, %10 : vector<1x32xf32>
    %96 = math.tanh %95 : vector<1x32xf32>
    %cst_45 = arith.constant dense<0.000000e+00> : vector<1x32xf32>
    %97 = tpu.matmul %91, %4, %cst_45 {dimension_numbers = #tpu.dot_dimension_numbers<[1], [0], [0], [1], [0, 0, 1, 1], [], []>} : vector<1x32xf32>, vector<32x32xf32>, vector<1x32xf32> -> vector<1x32xf32>
    %98 = arith.addf %97, %9 : vector<1x32xf32>
    %99 = math.tanh %98 : vector<1x32xf32>
    %cst_46 = arith.constant dense<0.000000e+00> : vector<1x32xf32>
    %100 = tpu.matmul %99, %5, %cst_46 {dimension_numbers = #tpu.dot_dimension_numbers<[1], [0], [0], [1], [0, 0, 1, 1], [], []>} : vector<1x32xf32>, vector<32x32xf32>, vector<1x32xf32> -> vector<1x32xf32>
    %cst_47 = arith.constant dense<0.000000e+00> : vector<1x32xf32>
    %101 = tpu.matmul %96, %6, %cst_47 {dimension_numbers = #tpu.dot_dimension_numbers<[1], [0], [0], [1], [0, 0, 1, 1], [], []>} : vector<1x32xf32>, vector<32x32xf32>, vector<1x32xf32> -> vector<1x32xf32>
    %102 = arith.addf %100, %101 : vector<1x32xf32>
    %103 = arith.addf %102, %10 : vector<1x32xf32>
    %104 = math.tanh %103 : vector<1x32xf32>
    %cst_48 = arith.constant dense<0.000000e+00> : vector<1x32xf32>
    %105 = tpu.matmul %99, %4, %cst_48 {dimension_numbers = #tpu.dot_dimension_numbers<[1], [0], [0], [1], [0, 0, 1, 1], [], []>} : vector<1x32xf32>, vector<32x32xf32>, vector<1x32xf32> -> vector<1x32xf32>
    %106 = arith.addf %105, %9 : vector<1x32xf32>
    %107 = math.tanh %106 : vector<1x32xf32>
    %cst_49 = arith.constant dense<0.000000e+00> : vector<1x32xf32>
    %108 = tpu.matmul %107, %5, %cst_49 {dimension_numbers = #tpu.dot_dimension_numbers<[1], [0], [0], [1], [0, 0, 1, 1], [], []>} : vector<1x32xf32>, vector<32x32xf32>, vector<1x32xf32> -> vector<1x32xf32>
    %cst_50 = arith.constant dense<0.000000e+00> : vector<1x32xf32>
    %109 = tpu.matmul %104, %6, %cst_50 {dimension_numbers = #tpu.dot_dimension_numbers<[1], [0], [0], [1], [0, 0, 1, 1], [], []>} : vector<1x32xf32>, vector<32x32xf32>, vector<1x32xf32> -> vector<1x32xf32>
    %110 = arith.addf %108, %109 : vector<1x32xf32>
    %111 = arith.addf %110, %10 : vector<1x32xf32>
    %112 = math.tanh %111 : vector<1x32xf32>
    %cst_51 = arith.constant dense<0.000000e+00> : vector<1x32xf32>
    %113 = tpu.matmul %107, %4, %cst_51 {dimension_numbers = #tpu.dot_dimension_numbers<[1], [0], [0], [1], [0, 0, 1, 1], [], []>} : vector<1x32xf32>, vector<32x32xf32>, vector<1x32xf32> -> vector<1x32xf32>
    %114 = arith.addf %113, %9 : vector<1x32xf32>
    %115 = math.tanh %114 : vector<1x32xf32>
    %cst_52 = arith.constant dense<0.000000e+00> : vector<1x32xf32>
    %116 = tpu.matmul %115, %5, %cst_52 {dimension_numbers = #tpu.dot_dimension_numbers<[1], [0], [0], [1], [0, 0, 1, 1], [], []>} : vector<1x32xf32>, vector<32x32xf32>, vector<1x32xf32> -> vector<1x32xf32>
    %cst_53 = arith.constant dense<0.000000e+00> : vector<1x32xf32>
    %117 = tpu.matmul %112, %6, %cst_53 {dimension_numbers = #tpu.dot_dimension_numbers<[1], [0], [0], [1], [0, 0, 1, 1], [], []>} : vector<1x32xf32>, vector<32x32xf32>, vector<1x32xf32> -> vector<1x32xf32>
    %118 = arith.addf %116, %117 : vector<1x32xf32>
    %119 = arith.addf %118, %10 : vector<1x32xf32>
    %120 = math.tanh %119 : vector<1x32xf32>
    %cst_54 = arith.constant dense<0.000000e+00> : vector<1x32xf32>
    %121 = tpu.matmul %115, %4, %cst_54 {dimension_numbers = #tpu.dot_dimension_numbers<[1], [0], [0], [1], [0, 0, 1, 1], [], []>} : vector<1x32xf32>, vector<32x32xf32>, vector<1x32xf32> -> vector<1x32xf32>
    %122 = arith.addf %121, %9 : vector<1x32xf32>
    %123 = math.tanh %122 : vector<1x32xf32>
    %cst_55 = arith.constant dense<0.000000e+00> : vector<1x32xf32>
    %124 = tpu.matmul %123, %5, %cst_55 {dimension_numbers = #tpu.dot_dimension_numbers<[1], [0], [0], [1], [0, 0, 1, 1], [], []>} : vector<1x32xf32>, vector<32x32xf32>, vector<1x32xf32> -> vector<1x32xf32>
    %cst_56 = arith.constant dense<0.000000e+00> : vector<1x32xf32>
    %125 = tpu.matmul %120, %6, %cst_56 {dimension_numbers = #tpu.dot_dimension_numbers<[1], [0], [0], [1], [0, 0, 1, 1], [], []>} : vector<1x32xf32>, vector<32x32xf32>, vector<1x32xf32> -> vector<1x32xf32>
    %126 = arith.addf %124, %125 : vector<1x32xf32>
    %127 = arith.addf %126, %10 : vector<1x32xf32>
    %128 = math.tanh %127 : vector<1x32xf32>
    %cst_57 = arith.constant dense<0.000000e+00> : vector<1x32xf32>
    %129 = tpu.matmul %123, %4, %cst_57 {dimension_numbers = #tpu.dot_dimension_numbers<[1], [0], [0], [1], [0, 0, 1, 1], [], []>} : vector<1x32xf32>, vector<32x32xf32>, vector<1x32xf32> -> vector<1x32xf32>
    %130 = arith.addf %129, %9 : vector<1x32xf32>
    %131 = math.tanh %130 : vector<1x32xf32>
    %cst_58 = arith.constant dense<0.000000e+00> : vector<1x32xf32>
    %132 = tpu.matmul %131, %5, %cst_58 {dimension_numbers = #tpu.dot_dimension_numbers<[1], [0], [0], [1], [0, 0, 1, 1], [], []>} : vector<1x32xf32>, vector<32x32xf32>, vector<1x32xf32> -> vector<1x32xf32>
    %cst_59 = arith.constant dense<0.000000e+00> : vector<1x32xf32>
    %133 = tpu.matmul %128, %6, %cst_59 {dimension_numbers = #tpu.dot_dimension_numbers<[1], [0], [0], [1], [0, 0, 1, 1], [], []>} : vector<1x32xf32>, vector<32x32xf32>, vector<1x32xf32> -> vector<1x32xf32>
    %134 = arith.addf %132, %133 : vector<1x32xf32>
    %135 = arith.addf %134, %10 : vector<1x32xf32>
    %136 = math.tanh %135 : vector<1x32xf32>
    %cst_60 = arith.constant dense<0.000000e+00> : vector<1x32xf32>
    %137 = tpu.matmul %131, %4, %cst_60 {dimension_numbers = #tpu.dot_dimension_numbers<[1], [0], [0], [1], [0, 0, 1, 1], [], []>} : vector<1x32xf32>, vector<32x32xf32>, vector<1x32xf32> -> vector<1x32xf32>
    %138 = arith.addf %137, %9 : vector<1x32xf32>
    %139 = math.tanh %138 : vector<1x32xf32>
    %cst_61 = arith.constant dense<0.000000e+00> : vector<1x32xf32>
    %140 = tpu.matmul %139, %5, %cst_61 {dimension_numbers = #tpu.dot_dimension_numbers<[1], [0], [0], [1], [0, 0, 1, 1], [], []>} : vector<1x32xf32>, vector<32x32xf32>, vector<1x32xf32> -> vector<1x32xf32>
    %cst_62 = arith.constant dense<0.000000e+00> : vector<1x32xf32>
    %141 = tpu.matmul %136, %6, %cst_62 {dimension_numbers = #tpu.dot_dimension_numbers<[1], [0], [0], [1], [0, 0, 1, 1], [], []>} : vector<1x32xf32>, vector<32x32xf32>, vector<1x32xf32> -> vector<1x32xf32>
    %142 = arith.addf %140, %141 : vector<1x32xf32>
    %143 = arith.addf %142, %10 : vector<1x32xf32>
    %144 = math.tanh %143 : vector<1x32xf32>
    %cst_63 = arith.constant dense<0.000000e+00> : vector<1x32xf32>
    %145 = tpu.matmul %139, %4, %cst_63 {dimension_numbers = #tpu.dot_dimension_numbers<[1], [0], [0], [1], [0, 0, 1, 1], [], []>} : vector<1x32xf32>, vector<32x32xf32>, vector<1x32xf32> -> vector<1x32xf32>
    %146 = arith.addf %145, %9 : vector<1x32xf32>
    %147 = math.tanh %146 : vector<1x32xf32>
    %cst_64 = arith.constant dense<0.000000e+00> : vector<1x32xf32>
    %148 = tpu.matmul %147, %5, %cst_64 {dimension_numbers = #tpu.dot_dimension_numbers<[1], [0], [0], [1], [0, 0, 1, 1], [], []>} : vector<1x32xf32>, vector<32x32xf32>, vector<1x32xf32> -> vector<1x32xf32>
    %cst_65 = arith.constant dense<0.000000e+00> : vector<1x32xf32>
    %149 = tpu.matmul %144, %6, %cst_65 {dimension_numbers = #tpu.dot_dimension_numbers<[1], [0], [0], [1], [0, 0, 1, 1], [], []>} : vector<1x32xf32>, vector<32x32xf32>, vector<1x32xf32> -> vector<1x32xf32>
    %150 = arith.addf %148, %149 : vector<1x32xf32>
    %151 = arith.addf %150, %10 : vector<1x32xf32>
    %152 = math.tanh %151 : vector<1x32xf32>
    %cst_66 = arith.constant dense<0.000000e+00> : vector<1x32xf32>
    %153 = tpu.matmul %147, %4, %cst_66 {dimension_numbers = #tpu.dot_dimension_numbers<[1], [0], [0], [1], [0, 0, 1, 1], [], []>} : vector<1x32xf32>, vector<32x32xf32>, vector<1x32xf32> -> vector<1x32xf32>
    %154 = arith.addf %153, %9 : vector<1x32xf32>
    %155 = math.tanh %154 : vector<1x32xf32>
    %cst_67 = arith.constant dense<0.000000e+00> : vector<1x32xf32>
    %156 = tpu.matmul %155, %5, %cst_67 {dimension_numbers = #tpu.dot_dimension_numbers<[1], [0], [0], [1], [0, 0, 1, 1], [], []>} : vector<1x32xf32>, vector<32x32xf32>, vector<1x32xf32> -> vector<1x32xf32>
    %cst_68 = arith.constant dense<0.000000e+00> : vector<1x32xf32>
    %157 = tpu.matmul %152, %6, %cst_68 {dimension_numbers = #tpu.dot_dimension_numbers<[1], [0], [0], [1], [0, 0, 1, 1], [], []>} : vector<1x32xf32>, vector<32x32xf32>, vector<1x32xf32> -> vector<1x32xf32>
    %158 = arith.addf %156, %157 : vector<1x32xf32>
    %159 = arith.addf %158, %10 : vector<1x32xf32>
    %160 = math.tanh %159 : vector<1x32xf32>
    %cst_69 = arith.constant dense<0.000000e+00> : vector<1x32xf32>
    %161 = tpu.matmul %155, %4, %cst_69 {dimension_numbers = #tpu.dot_dimension_numbers<[1], [0], [0], [1], [0, 0, 1, 1], [], []>} : vector<1x32xf32>, vector<32x32xf32>, vector<1x32xf32> -> vector<1x32xf32>
    %162 = arith.addf %161, %9 : vector<1x32xf32>
    %163 = math.tanh %162 : vector<1x32xf32>
    %cst_70 = arith.constant dense<0.000000e+00> : vector<1x32xf32>
    %164 = tpu.matmul %163, %5, %cst_70 {dimension_numbers = #tpu.dot_dimension_numbers<[1], [0], [0], [1], [0, 0, 1, 1], [], []>} : vector<1x32xf32>, vector<32x32xf32>, vector<1x32xf32> -> vector<1x32xf32>
    %cst_71 = arith.constant dense<0.000000e+00> : vector<1x32xf32>
    %165 = tpu.matmul %160, %6, %cst_71 {dimension_numbers = #tpu.dot_dimension_numbers<[1], [0], [0], [1], [0, 0, 1, 1], [], []>} : vector<1x32xf32>, vector<32x32xf32>, vector<1x32xf32> -> vector<1x32xf32>
    %166 = arith.addf %164, %165 : vector<1x32xf32>
    %167 = arith.addf %166, %10 : vector<1x32xf32>
    %168 = math.tanh %167 : vector<1x32xf32>
    %cst_72 = arith.constant dense<0.000000e+00> : vector<1x32xf32>
    %169 = tpu.matmul %163, %4, %cst_72 {dimension_numbers = #tpu.dot_dimension_numbers<[1], [0], [0], [1], [0, 0, 1, 1], [], []>} : vector<1x32xf32>, vector<32x32xf32>, vector<1x32xf32> -> vector<1x32xf32>
    %170 = arith.addf %169, %9 : vector<1x32xf32>
    %171 = math.tanh %170 : vector<1x32xf32>
    %cst_73 = arith.constant dense<0.000000e+00> : vector<1x32xf32>
    %172 = tpu.matmul %171, %5, %cst_73 {dimension_numbers = #tpu.dot_dimension_numbers<[1], [0], [0], [1], [0, 0, 1, 1], [], []>} : vector<1x32xf32>, vector<32x32xf32>, vector<1x32xf32> -> vector<1x32xf32>
    %cst_74 = arith.constant dense<0.000000e+00> : vector<1x32xf32>
    %173 = tpu.matmul %168, %6, %cst_74 {dimension_numbers = #tpu.dot_dimension_numbers<[1], [0], [0], [1], [0, 0, 1, 1], [], []>} : vector<1x32xf32>, vector<32x32xf32>, vector<1x32xf32> -> vector<1x32xf32>
    %174 = arith.addf %172, %173 : vector<1x32xf32>
    %175 = arith.addf %174, %10 : vector<1x32xf32>
    %176 = math.tanh %175 : vector<1x32xf32>
    %cst_75 = arith.constant dense<0.000000e+00> : vector<1x32xf32>
    %177 = tpu.matmul %171, %4, %cst_75 {dimension_numbers = #tpu.dot_dimension_numbers<[1], [0], [0], [1], [0, 0, 1, 1], [], []>} : vector<1x32xf32>, vector<32x32xf32>, vector<1x32xf32> -> vector<1x32xf32>
    %178 = arith.addf %177, %9 : vector<1x32xf32>
    %179 = math.tanh %178 : vector<1x32xf32>
    %cst_76 = arith.constant dense<0.000000e+00> : vector<1x32xf32>
    %180 = tpu.matmul %179, %5, %cst_76 {dimension_numbers = #tpu.dot_dimension_numbers<[1], [0], [0], [1], [0, 0, 1, 1], [], []>} : vector<1x32xf32>, vector<32x32xf32>, vector<1x32xf32> -> vector<1x32xf32>
    %cst_77 = arith.constant dense<0.000000e+00> : vector<1x32xf32>
    %181 = tpu.matmul %176, %6, %cst_77 {dimension_numbers = #tpu.dot_dimension_numbers<[1], [0], [0], [1], [0, 0, 1, 1], [], []>} : vector<1x32xf32>, vector<32x32xf32>, vector<1x32xf32> -> vector<1x32xf32>
    %182 = arith.addf %180, %181 : vector<1x32xf32>
    %183 = arith.addf %182, %10 : vector<1x32xf32>
    %184 = math.tanh %183 : vector<1x32xf32>
    %cst_78 = arith.constant dense<0.000000e+00> : vector<1x32xf32>
    %185 = tpu.matmul %179, %4, %cst_78 {dimension_numbers = #tpu.dot_dimension_numbers<[1], [0], [0], [1], [0, 0, 1, 1], [], []>} : vector<1x32xf32>, vector<32x32xf32>, vector<1x32xf32> -> vector<1x32xf32>
    %186 = arith.addf %185, %9 : vector<1x32xf32>
    %187 = math.tanh %186 : vector<1x32xf32>
    %cst_79 = arith.constant dense<0.000000e+00> : vector<1x32xf32>
    %188 = tpu.matmul %187, %5, %cst_79 {dimension_numbers = #tpu.dot_dimension_numbers<[1], [0], [0], [1], [0, 0, 1, 1], [], []>} : vector<1x32xf32>, vector<32x32xf32>, vector<1x32xf32> -> vector<1x32xf32>
    %cst_80 = arith.constant dense<0.000000e+00> : vector<1x32xf32>
    %189 = tpu.matmul %184, %6, %cst_80 {dimension_numbers = #tpu.dot_dimension_numbers<[1], [0], [0], [1], [0, 0, 1, 1], [], []>} : vector<1x32xf32>, vector<32x32xf32>, vector<1x32xf32> -> vector<1x32xf32>
    %190 = arith.addf %188, %189 : vector<1x32xf32>
    %191 = arith.addf %190, %10 : vector<1x32xf32>
    %192 = math.tanh %191 : vector<1x32xf32>
    %cst_81 = arith.constant dense<0.000000e+00> : vector<1x32xf32>
    %193 = tpu.matmul %187, %4, %cst_81 {dimension_numbers = #tpu.dot_dimension_numbers<[1], [0], [0], [1], [0, 0, 1, 1], [], []>} : vector<1x32xf32>, vector<32x32xf32>, vector<1x32xf32> -> vector<1x32xf32>
    %194 = arith.addf %193, %9 : vector<1x32xf32>
    %195 = math.tanh %194 : vector<1x32xf32>
    %cst_82 = arith.constant dense<0.000000e+00> : vector<1x32xf32>
    %196 = tpu.matmul %195, %5, %cst_82 {dimension_numbers = #tpu.dot_dimension_numbers<[1], [0], [0], [1], [0, 0, 1, 1], [], []>} : vector<1x32xf32>, vector<32x32xf32>, vector<1x32xf32> -> vector<1x32xf32>
    %cst_83 = arith.constant dense<0.000000e+00> : vector<1x32xf32>
    %197 = tpu.matmul %192, %6, %cst_83 {dimension_numbers = #tpu.dot_dimension_numbers<[1], [0], [0], [1], [0, 0, 1, 1], [], []>} : vector<1x32xf32>, vector<32x32xf32>, vector<1x32xf32> -> vector<1x32xf32>
    %198 = arith.addf %196, %197 : vector<1x32xf32>
    %199 = arith.addf %198, %10 : vector<1x32xf32>
    %200 = math.tanh %199 : vector<1x32xf32>
    %201 = tpu.concatenate %80, %96, %112, %128, %144, %160, %176, %192, %88, %104, %120, %136, %152, %168, %184, %200 in 0 : vector<1x32xf32>, vector<1x32xf32>, vector<1x32xf32>, vector<1x32xf32>, vector<1x32xf32>, vector<1x32xf32>, vector<1x32xf32>, vector<1x32xf32>, vector<1x32xf32>, vector<1x32xf32>, vector<1x32xf32>, vector<1x32xf32>, vector<1x32xf32>, vector<1x32xf32>, vector<1x32xf32>, vector<1x32xf32> -> vector<16x32xf32>
    %cst_84 = arith.constant dense<0.000000e+00> : vector<16x256xf32>
    %202 = tpu.matmul %201, %11, %cst_84 {dimension_numbers = #tpu.dot_dimension_numbers<[1], [0], [0], [1], [0, 0, 1, 1], [], []>} : vector<16x32xf32>, vector<32x256xf32>, vector<16x256xf32> -> vector<16x256xf32>
    %203 = vector.broadcast %12 : vector<1x256xf32> to vector<16x256xf32>
    %204 = arith.addf %202, %203 : vector<16x256xf32>
    %c0_85 = arith.constant 0 : index
    %c0_86 = arith.constant 0 : index
    %205 = vector.load %arg3[%c0_85, %c0_86] : memref<16x256xf32, #tpu.memory_space<vmem>>, vector<16x256xf32>
    tpu.vector_store %arg3[%c0_85, %c0_86], %204 {strides = array<i32>} : memref<16x256xf32, #tpu.memory_space<vmem>>, vector<16x256xf32>,
    return
  }
}

</mosaic_0001>

<llo_original>
// kernel: tpu_custom_call.1
$region0: #{tpu_custom_call.1}
  #allocation0 [shape = 'u32[]', space=smem, size = 0x4, offset = 0x4, fixed_abs, tag = 'smem constant byte address 0x4 - core index']
  #allocation1 [shape = 'u32[144,128]{1,0:T(1,128)}', space=vmem, size = 0x12000, scoped, tag = 'internal scratch']
  %s0 = inlined_call_operand.vmem [shape: f32[6,144], index: 0, kind: input, shape index: {}]
  %s1 = inlined_call_operand.vmem [shape: f32[344,32], index: 1, kind: input, shape index: {}]
  %s2 = inlined_call_operand.vmem [shape: f32[40,256], index: 2, kind: input, shape index: {}]
  %s3 = inlined_call_operand.hbm [shape: f32[16,256], index: 3, kind: output, shape index: {}]
  %s4 = sld [smem:[#allocation0]]
  $region22: #{tpu_custom_call.1} parent=0
    _
  %s6 = ssub.s32 1, %s4
  %s7 = scalar_select 0, %s6, %s4
  $region1: #{tpu_custom_call.1} parent=0
    #allocation2 [shape = 'u8[16384]{0}', space=vmem, size = 0x4000, scoped, tag = 'output window, operand 0, single buffered']
    #allocation3 [shape = 's32[1]{0}', space=sflag, size = 0x4, scoped, tag = 'scoped memory for tpu_custom_call.1']
    %8 = vsyncpa [#allocation3], 0
    // Predicated region
    $region2: #{tpu_custom_call.1} parent=1 // pred_check
      _
    $region3: #{tpu_custom_call.1} parent=1 // pred_check_branch
      %10 = sbr.rel (0) target = $region5
    $region4: #{tpu_custom_call.1} parent=1 // pred_region
      _
    $region5: #{tpu_custom_call.1} parent=1 // pred_fallthru
      _
    // Predicated region
    $region6: #{tpu_custom_call.1} parent=1 // pred_check
      _
    $region7: #{tpu_custom_call.1} parent=1 // pred_check_branch
      %12 = sbr.rel (0) target = $region9
    $region8: #{tpu_custom_call.1} parent=1 // pred_region
      _
    $region9: #{tpu_custom_call.1} parent=1 // pred_fallthru
      _
    // Predicated region
    $region10: #{tpu_custom_call.1} parent=1 // pred_check
      _
    $region11: #{tpu_custom_call.1} parent=1 // pred_check_branch
      %14 = sbr.rel (0) target = $region13
    $region12: #{tpu_custom_call.1} parent=1 // pred_region
      _
    $region13: #{tpu_custom_call.1} parent=1 // pred_fallthru
      _
    %v15 = vld [vmem:[%s1] sm:$0xff]
    %v16 = vld [vmem:[%s1 + $0x8] sm:$0xff]
    %v17 = vld [vmem:[%s1 + $0x10] sm:$0xff]
    %v18 = vld [vmem:[%s1 + $0x18] sm:$0xff]
    %v19 = vld [vmem:[%s1 + $0x20] sm:$0xff]
    %v20 = vld [vmem:[%s1 + $0x28] sm:$0xff]
    %v21 = vld [vmem:[%s1 + $0x30] sm:$0xff]
    %v22 = vld [vmem:[%s1 + $0x38] sm:$0xff]
    %v23 = vld [vmem:[%s1 + $0x40] sm:$0xff]
    %v24 = vld [vmem:[%s1 + $0x48] sm:$0xff]
    %v25 = vld [vmem:[%s1 + $0x50] sm:$0xff]
    %v26 = vld [vmem:[%s1 + $0x58] sm:$0xff]
    %v27 = vld [vmem:[%s1 + $0x60] sm:$0xff]
    %v28 = vld [vmem:[%s1 + $0x68] sm:$0xff]
    %v29 = vld [vmem:[%s1 + $0x70] sm:$0xff]
    %v30 = vld [vmem:[%s1 + $0x78] sm:$0xff]
    %v31 = vld [vmem:[%s1 + $0x80] sm:$0xff]
    %v32 = vld [vmem:[%s1 + $0x88] sm:$0xff]
    %v33 = vld [vmem:[%s1 + $0x90] sm:$0xff]
    %v34 = vld [vmem:[%s1 + $0x98] sm:$0xff]
    %v35 = vld [vmem:[%s1 + $0xa0] sm:$0xff]
    %v36 = vld [vmem:[%s1 + $0xa8] sm:$0xff]
    %v37 = vld [vmem:[%s1 + $0xb0] sm:$0xff]
    %v38 = vld [vmem:[%s1 + $0xb8] sm:$0xff]
    %v39 = vld [vmem:[%s1 + $0xc0] sm:$0xff]
    %v40 = vld [vmem:[%s1 + $0xc8] sm:$0xff]
    %v41 = vld [vmem:[%s1 + $0xd0] sm:$0xff]
    %v42 = vld [vmem:[%s1 + $0xd8] sm:$0xff]
    %v43 = vld [vmem:[%s1 + $0xe0] sm:$0xff]
    %v44 = vld [vmem:[%s1 + $0xe8] sm:$0xff]
    %v45 = vld [vmem:[%s1 + $0xf0] sm:$0xff]
    %v46 = vld [vmem:[%s1 + $0xf8] sm:$0xff]
    %v47 = vld [vmem:[%s1 + $0x100] sm:$0xff]
    %v48 = vld [vmem:[%s1 + $0x108] sm:$0xff]
    %v49 = vld [vmem:[%s1 + $0x110] sm:$0xff]
    %v50 = vld [vmem:[%s1 + $0x118] sm:$0xff]
    %v51 = vld [vmem:[%s1 + $0x120] sm:$0xff]
    %v52 = vld [vmem:[%s1 + $0x128] sm:$0xff]
    %v53 = vld [vmem:[%s1 + $0x130] sm:$0xff]
    %v54 = vld [vmem:[%s1 + $0x138] sm:$0xff]
    %v55 = vld [vmem:[%s1 + $0x140] sm:$0xff]
    %v56 = vld [vmem:[%s1 + $0x148] sm:$0xff]
    %v57 = vld [vmem:[%s1 + $0x150] sm:$0x1]
    %v58 = vld [vmem:[%s1 + $0x151] sm:$0x1]
    %v59 = vld [vmem:[%s1 + $0x152] sm:$0x1]
    %v60 = vld [vmem:[%s1 + $0x153] sm:$0x1]
    %v61 = vld [vmem:[%s2] sm:$0xff]
    %v62 = vld [vmem:[%s2 + $0x8] sm:$0xff]
    %v63 = vld [vmem:[%s2 + $0x10] sm:$0xff]
    %v64 = vld [vmem:[%s2 + $0x18] sm:$0xff]
    %v65 = vld [vmem:[%s2 + $0x20] sm:$0xff]
    %v66 = vld [vmem:[%s2 + $0x28] sm:$0xff]
    %v67 = vld [vmem:[%s2 + $0x30] sm:$0xff]
    %v68 = vld [vmem:[%s2 + $0x38] sm:$0xff]
    %s69 = scalar_lea.vmem %s2, 64
    %v70 = vld [vmem:[%s69] ss:$8 sm:$0x3]
    %v71 = vld [vmem:[%s0] sm:$0x3f]
    %v72 = vld [vmem:[%s0 + $0x8] sm:$0x3f]
    %v73 = vlaneseq
    %v74 = vshrl.u32 %v73, 7
    %v75 = vsub.s32 0, %v74
    %v76 = vrot.slane %v57, %v75
    %vm77 = vcmask 130048
    %v79 = vsel %vm77, %v72, 0
    %81 = vmatprep.subr.mxu0 0.0
    %82 = vmatpush1.msra.mxu0 %v30
    %83 = vmatprep.subr.mxu0 0.0
    %84 = vmatpush1.msra.mxu0 %v29
    %85 = vmatprep.subr.mxu0 0.0
    %86 = vmatpush1.msra.mxu0 %v28
    %87 = vmatprep.subr.mxu0 0.0
    %88 = vmatpush1.msra.mxu0 %v27
    %89 = vmatprep.subr.mxu0 0.0
    %90 = vmatpush1.msra.mxu0 %v26
    %91 = vmatprep.subr.mxu0 0.0
    %92 = vmatpush1.msra.mxu0 %v25
    %93 = vmatprep.subr.mxu0 0.0
    %94 = vmatpush1.msra.mxu0 %v24
    %95 = vmatprep.subr.mxu0 0.0
    %96 = vmatpush1.msra.mxu0 %v23
    %97 = vmatprep.subr.mxu0 0.0
    %98 = vmatpush1.msra.mxu0 %v22
    %99 = vmatprep.subr.mxu0 0.0
    %100 = vmatpush1.msra.mxu0 %v21
    %101 = vmatprep.subr.mxu0 0.0
    %102 = vmatpush1.msra.mxu0 %v20
    %103 = vmatprep.subr.mxu0 0.0
    %104 = vmatpush1.msra.mxu0 %v19
    %105 = vmatprep.subr.mxu0 0.0
    %106 = vmatpush1.msra.mxu0 %v18
    %107 = vmatprep.subr.mxu0 0.0
    %108 = vmatpush1.msra.mxu0 %v17
    %109 = vmatprep.subr.mxu0 0.0
    %110 = vmatpush1.msra.mxu0 %v16
    %111 = vmatprep.subr.mxu0 0.0
    %112 = vmatpush1.msra.mxu0 %v15
    %113 = vmatprep.subr.mxu0 0.0
    %114 = vmatpush2.msra.mxu0 0.0
    %115 = vmatprep.subr.mxu0 0.0
    %116 = vmatpush2.msra.mxu0 0.0
    %117 = vmatprep.subr.mxu0 0.0
    %118 = vmatpush2.msra.mxu0 0.0
    %119 = vmatprep.subr.mxu0 0.0
    %120 = vmatpush2.msra.mxu0 0.0
    %121 = vmatprep.subr.mxu0 0.0
    %122 = vmatpush2.msra.mxu0 0.0
    %123 = vmatprep.subr.mxu0 0.0
    %124 = vmatpush2.msra.mxu0 0.0
    %125 = vmatprep.subr.mxu0 0.0
    %126 = vmatpush2.msra.mxu0 0.0
    %127 = vmatprep.subr.mxu0 0.0
    %128 = vmatpush2.msra.mxu0 0.0
    %129 = vmatprep.subr.mxu0 0.0
    %130 = vmatpush2.msra.mxu0 0.0
    %131 = vmatprep.subr.mxu0 0.0
    %132 = vmatpush2.msra.mxu0 0.0
    %133 = vmatprep.subr.mxu0 0.0
    %134 = vmatpush2.msra.mxu0 0.0
    %135 = vmatprep.subr.mxu0 0.0
    %136 = vmatpush2.msra.mxu0 0.0
    %137 = vmatprep.subr.mxu0 0.0
    %138 = vmatpush2.msra.mxu0 0.0
    %139 = vmatprep.subr.mxu0 0.0
    %140 = vmatpush2.msra.mxu0 0.0
    %141 = vmatprep.subr.mxu0 0.0
    %142 = vmatpush2.msra.mxu0 %v32
    %143 = vmatprep.subr.mxu0 0.0
    %144 = vmatpush2.msra.mxu0 %v31
    %145 = vmatprep.mubr.f32.mxu0 %v79
    %146 = vmatmul.mubr.f32.gmra.mxu0 %v71
    %v147 = vpop.f32.mrf.mxu0
    %v148 = vadd.f32 %v76, %v147
    %v149 = vpop.f32.mrf.mxu0
    %150 = vdwg.mxu0
    %vm151 = vcmask 261120
    %v153 = vsel %vm151, 0.0, 0
    %155 = vmatprep.subr.mxu0 0.0
    %156 = vmatpush1.msra.mxu0 0.0
    %157 = vmatprep.subr.mxu0 0.0
    %158 = vmatpush1.msra.mxu0 0.0
    %159 = vmatprep.subr.mxu0 0.0
    %160 = vmatpush1.msra.mxu0 0.0
    %161 = vmatprep.subr.mxu0 0.0
    %162 = vmatpush1.msra.mxu0 0.0
    %163 = vmatprep.subr.mxu0 0.0
    %164 = vmatpush1.msra.mxu0 0.0
    %165 = vmatprep.subr.mxu0 0.0
    %166 = vmatpush1.msra.mxu0 0.0
    %167 = vmatprep.subr.mxu0 0.0
    %168 = vmatpush1.msra.mxu0 0.0
    %169 = vmatprep.subr.mxu0 0.0
    %170 = vmatpush1.msra.mxu0 0.0
    %171 = vmatprep.subr.mxu0 0.0
    %172 = vmatpush1.msra.mxu0 0.0
    %173 = vmatprep.subr.mxu0 0.0
    %174 = vmatpush1.msra.mxu0 0.0
    %175 = vmatprep.subr.mxu0 0.0
    %176 = vmatpush1.msra.mxu0 0.0
    %177 = vmatprep.subr.mxu0 0.0
    %178 = vmatpush1.msra.mxu0 0.0
    %179 = vmatprep.subr.mxu0 0.0
    %180 = vmatpush1.msra.mxu0 %v36
    %181 = vmatprep.subr.mxu0 0.0
    %182 = vmatpush1.msra.mxu0 %v35
    %183 = vmatprep.subr.mxu0 0.0
    %184 = vmatpush1.msra.mxu0 %v34
    %185 = vmatprep.subr.mxu0 0.0
    %186 = vmatpush1.msra.mxu0 %v33
    %187 = vmatprep.subr.mxu0 0.0
    %188 = vmatpush2.msra.mxu0 0.0
    %189 = vmatprep.subr.mxu0 0.0
    %190 = vmatpush2.msra.mxu0 0.0
    %191 = vmatprep.subr.mxu0 0.0
    %192 = vmatpush2.msra.mxu0 0.0
    %193 = vmatprep.subr.mxu0 0.0
    %194 = vmatpush2.msra.mxu0 0.0
    %195 = vmatprep.subr.mxu0 0.0
    %196 = vmatpush2.msra.mxu0 0.0
    %197 = vmatprep.subr.mxu0 0.0
    %198 = vmatpush2.msra.mxu0 0.0
    %199 = vmatprep.subr.mxu0 0.0
    %200 = vmatpush2.msra.mxu0 0.0
    %201 = vmatprep.subr.mxu0 0.0
    %202 = vmatpush2.msra.mxu0 0.0
    %203 = vmatprep.subr.mxu0 0.0
    %204 = vmatpush2.msra.mxu0 0.0
    %205 = vmatprep.subr.mxu0 0.0
    %206 = vmatpush2.msra.mxu0 0.0
    %207 = vmatprep.subr.mxu0 0.0
    %208 = vmatpush2.msra.mxu0 0.0
    %209 = vmatprep.subr.mxu0 0.0
    %210 = vmatpush2.msra.mxu0 0.0
    %211 = vmatprep.subr.mxu0 0.0
    %212 = vmatpush2.msra.mxu0 0.0
    %213 = vmatprep.subr.mxu0 0.0
    %214 = vmatpush2.msra.mxu0 0.0
    %215 = vmatprep.subr.mxu0 0.0
    %216 = vmatpush2.msra.mxu0 0.0
    %217 = vmatprep.subr.mxu0 0.0
    %218 = vmatpush2.msra.mxu0 0.0
    %219 = vmatprep.mubr.f32.mxu0 0.0
    %220 = vmatmul.mubr.f32.gmra.mxu0 %v153
    %v221 = vpop.f32.mrf.mxu0
    %v222 = vadd.f32 0.0, %v221
    %v223 = vpop.f32.mrf.mxu0
    %224 = vdwg.mxu0
    %v225 = vadd.f32 %v148, %v222
    %v226 = vtanh.pop %v225
    %227 = vmatprep.subr.mxu0 0.0
    %228 = vmatpush1.msra.mxu0 0.0
    %229 = vmatprep.subr.mxu0 0.0
    %230 = vmatpush1.msra.mxu0 0.0
    %231 = vmatprep.subr.mxu0 0.0
    %232 = vmatpush1.msra.mxu0 0.0
    %233 = vmatprep.subr.mxu0 0.0
    %234 = vmatpush1.msra.mxu0 0.0
    %235 = vmatprep.subr.mxu0 0.0
    %236 = vmatpush1.msra.mxu0 0.0
    %237 = vmatprep.subr.mxu0 0.0
    %238 = vmatpush1.msra.mxu0 0.0
    %239 = vmatprep.subr.mxu0 0.0
    %240 = vmatpush1.msra.mxu0 0.0
    %241 = vmatprep.subr.mxu0 0.0
    %242 = vmatpush1.msra.mxu0 0.0
    %243 = vmatprep.subr.mxu0 0.0
    %244 = vmatpush1.msra.mxu0 0.0
    %245 = vmatprep.subr.mxu0 0.0
    %246 = vmatpush1.msra.mxu0 0.0
    %247 = vmatprep.subr.mxu0 0.0
    %248 = vmatpush1.msra.mxu0 0.0
    %249 = vmatprep.subr.mxu0 0.0
    %250 = vmatpush1.msra.mxu0 0.0
    %251 = vmatprep.subr.mxu0 0.0
    %252 = vmatpush1.msra.mxu0 %v44
    %253 = vmatprep.subr.mxu0 0.0
    %254 = vmatpush1.msra.mxu0 %v43
    %255 = vmatprep.subr.mxu0 0.0
    %256 = vmatpush1.msra.mxu0 %v42
    %257 = vmatprep.subr.mxu0 0.0
    %258 = vmatpush1.msra.mxu0 %v41
    %259 = vmatprep.subr.mxu0 0.0
    %260 = vmatpush2.msra.mxu0 0.0
    %261 = vmatprep.subr.mxu0 0.0
    %262 = vmatpush2.msra.mxu0 0.0
    %263 = vmatprep.subr.mxu0 0.0
    %264 = vmatpush2.msra.mxu0 0.0
    %265 = vmatprep.subr.mxu0 0.0
    %266 = vmatpush2.msra.mxu0 0.0
    %267 = vmatprep.subr.mxu0 0.0
    %268 = vmatpush2.msra.mxu0 0.0
    %269 = vmatprep.subr.mxu0 0.0
    %270 = vmatpush2.msra.mxu0 0.0
    %271 = vmatprep.subr.mxu0 0.0
    %272 = vmatpush2.msra.mxu0 0.0
    %273 = vmatprep.subr.mxu0 0.0
    %274 = vmatpush2.msra.mxu0 0.0
    %275 = vmatprep.subr.mxu0 0.0
    %276 = vmatpush2.msra.mxu0 0.0
    %277 = vmatprep.subr.mxu0 0.0
    %278 = vmatpush2.msra.mxu0 0.0
    %279 = vmatprep.subr.mxu0 0.0
    %280 = vmatpush2.msra.mxu0 0.0
    %281 = vmatprep.subr.mxu0 0.0
    %282 = vmatpush2.msra.mxu0 0.0
    %283 = vmatprep.subr.mxu0 0.0
    %284 = vmatpush2.msra.mxu0 0.0
    %285 = vmatprep.subr.mxu0 0.0
    %286 = vmatpush2.msra.mxu0 0.0
    %287 = vmatprep.subr.mxu0 0.0
    %288 = vmatpush2.msra.mxu0 0.0
    %289 = vmatprep.subr.mxu0 0.0
    %290 = vmatpush2.msra.mxu0 0.0
    %291 = vmatprep.mubr.f32.mxu0 0.0
    %292 = vmatmul.mubr.f32.gmra.mxu0 %v153
    %v293 = vpop.f32.mrf.mxu0
    %v294 = vadd.f32 0.0, %v293
    %v295 = vpop.f32.mrf.mxu0
    %296 = vdwg.mxu0
    %v298 = vsel %vm151, %v226, 0
    %300 = vmatprep.subr.mxu0 0.0
    %301 = vmatpush1.msra.mxu0 0.0
    %302 = vmatprep.subr.mxu0 0.0
    %303 = vmatpush1.msra.mxu0 0.0
    %304 = vmatprep.subr.mxu0 0.0
    %305 = vmatpush1.msra.mxu0 0.0
    %306 = vmatprep.subr.mxu0 0.0
    %307 = vmatpush1.msra.mxu0 0.0
    %308 = vmatprep.subr.mxu0 0.0
    %309 = vmatpush1.msra.mxu0 0.0
    %310 = vmatprep.subr.mxu0 0.0
    %311 = vmatpush1.msra.mxu0 0.0
    %312 = vmatprep.subr.mxu0 0.0
    %313 = vmatpush1.msra.mxu0 0.0
    %314 = vmatprep.subr.mxu0 0.0
    %315 = vmatpush1.msra.mxu0 0.0
    %316 = vmatprep.subr.mxu0 0.0
    %317 = vmatpush1.msra.mxu0 0.0
    %318 = vmatprep.subr.mxu0 0.0
    %319 = vmatpush1.msra.mxu0 0.0
    %320 = vmatprep.subr.mxu0 0.0
    %321 = vmatpush1.msra.mxu0 0.0
    %322 = vmatprep.subr.mxu0 0.0
    %323 = vmatpush1.msra.mxu0 0.0
    %324 = vmatprep.subr.mxu0 0.0
    %325 = vmatpush1.msra.mxu0 %v40
    %326 = vmatprep.subr.mxu0 0.0
    %327 = vmatpush1.msra.mxu0 %v39
    %328 = vmatprep.subr.mxu0 0.0
    %329 = vmatpush1.msra.mxu0 %v38
    %330 = vmatprep.subr.mxu0 0.0
    %331 = vmatpush1.msra.mxu0 %v37
    %332 = vmatprep.subr.mxu0 0.0
    %333 = vmatpush2.msra.mxu0 0.0
    %334 = vmatprep.subr.mxu0 0.0
    %335 = vmatpush2.msra.mxu0 0.0
    %336 = vmatprep.subr.mxu0 0.0
    %337 = vmatpush2.msra.mxu0 0.0
    %338 = vmatprep.subr.mxu0 0.0
    %339 = vmatpush2.msra.mxu0 0.0
    %340 = vmatprep.subr.mxu0 0.0
    %341 = vmatpush2.msra.mxu0 0.0
    %342 = vmatprep.subr.mxu0 0.0
    %343 = vmatpush2.msra.mxu0 0.0
    %344 = vmatprep.subr.mxu0 0.0
    %345 = vmatpush2.msra.mxu0 0.0
    %346 = vmatprep.subr.mxu0 0.0
    %347 = vmatpush2.msra.mxu0 0.0
    %348 = vmatprep.subr.mxu0 0.0
    %349 = vmatpush2.msra.mxu0 0.0
    %350 = vmatprep.subr.mxu0 0.0
    %351 = vmatpush2.msra.mxu0 0.0
    %352 = vmatprep.subr.mxu0 0.0
    %353 = vmatpush2.msra.mxu0 0.0
    %354 = vmatprep.subr.mxu0 0.0
    %355 = vmatpush2.msra.mxu0 0.0
    %356 = vmatprep.subr.mxu0 0.0
    %357 = vmatpush2.msra.mxu0 0.0
    %358 = vmatprep.subr.mxu0 0.0
    %359 = vmatpush2.msra.mxu0 0.0
    %360 = vmatprep.subr.mxu0 0.0
    %361 = vmatpush2.msra.mxu0 0.0
    %362 = vmatprep.subr.mxu0 0.0
    %363 = vmatpush2.msra.mxu0 0.0
    %364 = vmatprep.mubr.f32.mxu0 0.0
    %365 = vmatmul.mubr.f32.gmra.mxu0 %v298
    %v366 = vpop.f32.mrf.mxu0
    %v367 = vadd.f32 %v294, %v366
    %v368 = vpop.f32.mrf.mxu0
    %369 = vdwg.mxu0
    %v370 = vadd.f32 %v367, %v58
    %v371 = vtanh.pop %v370
    %372 = vmatprep.subr.mxu0 0.0
    %373 = vmatpush1.msra.mxu0 0.0
    %374 = vmatprep.subr.mxu0 0.0
    %375 = vmatpush1.msra.mxu0 0.0
    %376 = vmatprep.subr.mxu0 0.0
    %377 = vmatpush1.msra.mxu0 0.0
    %378 = vmatprep.subr.mxu0 0.0
    %379 = vmatpush1.msra.mxu0 0.0
    %380 = vmatprep.subr.mxu0 0.0
    %381 = vmatpush1.msra.mxu0 0.0
    %382 = vmatprep.subr.mxu0 0.0
    %383 = vmatpush1.msra.mxu0 0.0
    %384 = vmatprep.subr.mxu0 0.0
    %385 = vmatpush1.msra.mxu0 0.0
    %386 = vmatprep.subr.mxu0 0.0
    %387 = vmatpush1.msra.mxu0 0.0
    %388 = vmatprep.subr.mxu0 0.0
    %389 = vmatpush1.msra.mxu0 0.0
    %390 = vmatprep.subr.mxu0 0.0
    %391 = vmatpush1.msra.mxu0 0.0
    %392 = vmatprep.subr.mxu0 0.0
    %393 = vmatpush1.msra.mxu0 0.0
    %394 = vmatprep.subr.mxu0 0.0
    %395 = vmatpush1.msra.mxu0 0.0
    %396 = vmatprep.subr.mxu0 0.0
    %397 = vmatpush1.msra.mxu0 %v36
    %398 = vmatprep.subr.mxu0 0.0
    %399 = vmatpush1.msra.mxu0 %v35
    %400 = vmatprep.subr.mxu0 0.0
    %401 = vmatpush1.msra.mxu0 %v34
    %402 = vmatprep.subr.mxu0 0.0
    %403 = vmatpush1.msra.mxu0 %v33
    %404 = vmatprep.subr.mxu0 0.0
    %405 = vmatpush2.msra.mxu0 0.0
    %406 = vmatprep.subr.mxu0 0.0
    %407 = vmatpush2.msra.mxu0 0.0
    %408 = vmatprep.subr.mxu0 0.0
    %409 = vmatpush2.msra.mxu0 0.0
    %410 = vmatprep.subr.mxu0 0.0
    %411 = vmatpush2.msra.mxu0 0.0
    %412 = vmatprep.subr.mxu0 0.0
    %413 = vmatpush2.msra.mxu0 0.0
    %414 = vmatprep.subr.mxu0 0.0
    %415 = vmatpush2.msra.mxu0 0.0
    %416 = vmatprep.subr.mxu0 0.0
    %417 = vmatpush2.msra.mxu0 0.0
    %418 = vmatprep.subr.mxu0 0.0
    %419 = vmatpush2.msra.mxu0 0.0
    %420 = vmatprep.subr.mxu0 0.0
    %421 = vmatpush2.msra.mxu0 0.0
    %422 = vmatprep.subr.mxu0 0.0
    %423 = vmatpush2.msra.mxu0 0.0
    %424 = vmatprep.subr.mxu0 0.0
    %425 = vmatpush2.msra.mxu0 0.0
    %426 = vmatprep.subr.mxu0 0.0
    %427 = vmatpush2.msra.mxu0 0.0
    %428 = vmatprep.subr.mxu0 0.0
    %429 = vmatpush2.msra.mxu0 0.0
    %430 = vmatprep.subr.mxu0 0.0
    %431 = vmatpush2.msra.mxu0 0.0
    %432 = vmatprep.subr.mxu0 0.0
    %433 = vmatpush2.msra.mxu0 0.0
    %434 = vmatprep.subr.mxu0 0.0
    %435 = vmatpush2.msra.mxu0 0.0
    %436 = vmatprep.mubr.f32.mxu0 0.0
    %437 = vmatmul.mubr.f32.gmra.mxu0 %v298
    %v438 = vpop.f32.mrf.mxu0
    %v439 = vadd.f32 0.0, %v438
    %v440 = vpop.f32.mrf.mxu0
    %441 = vdwg.mxu0
    %v443 = vrot.slane %v439, 7
    %v445 = vadd.f32 %v148, %v443
    %v446 = vtanh.pop %v445
    %v448 = vsel %vm151, %v371, 0
    %450 = vmatprep.subr.mxu0 0.0
    %451 = vmatpush1.msra.mxu0 0.0
    %452 = vmatprep.subr.mxu0 0.0
    %453 = vmatpush1.msra.mxu0 0.0
    %454 = vmatprep.subr.mxu0 0.0
    %455 = vmatpush1.msra.mxu0 0.0
    %456 = vmatprep.subr.mxu0 0.0
    %457 = vmatpush1.msra.mxu0 0.0
    %458 = vmatprep.subr.mxu0 0.0
    %459 = vmatpush1.msra.mxu0 0.0
    %460 = vmatprep.subr.mxu0 0.0
    %461 = vmatpush1.msra.mxu0 0.0
    %462 = vmatprep.subr.mxu0 0.0
    %463 = vmatpush1.msra.mxu0 0.0
    %464 = vmatprep.subr.mxu0 0.0
    %465 = vmatpush1.msra.mxu0 0.0
    %466 = vmatprep.subr.mxu0 0.0
    %467 = vmatpush1.msra.mxu0 0.0
    %468 = vmatprep.subr.mxu0 0.0
    %469 = vmatpush1.msra.mxu0 0.0
    %470 = vmatprep.subr.mxu0 0.0
    %471 = vmatpush1.msra.mxu0 0.0
    %472 = vmatprep.subr.mxu0 0.0
    %473 = vmatpush1.msra.mxu0 0.0
    %474 = vmatprep.subr.mxu0 0.0
    %475 = vmatpush1.msra.mxu0 %v44
    %476 = vmatprep.subr.mxu0 0.0
    %477 = vmatpush1.msra.mxu0 %v43
    %478 = vmatprep.subr.mxu0 0.0
    %479 = vmatpush1.msra.mxu0 %v42
    %480 = vmatprep.subr.mxu0 0.0
    %481 = vmatpush1.msra.mxu0 %v41
    %482 = vmatprep.subr.mxu0 0.0
    %483 = vmatpush2.msra.mxu0 0.0
    %484 = vmatprep.subr.mxu0 0.0
    %485 = vmatpush2.msra.mxu0 0.0
    %486 = vmatprep.subr.mxu0 0.0
    %487 = vmatpush2.msra.mxu0 0.0
    %488 = vmatprep.subr.mxu0 0.0
    %489 = vmatpush2.msra.mxu0 0.0
    %490 = vmatprep.subr.mxu0 0.0
    %491 = vmatpush2.msra.mxu0 0.0
    %492 = vmatprep.subr.mxu0 0.0
    %493 = vmatpush2.msra.mxu0 0.0
    %494 = vmatprep.subr.mxu0 0.0
    %495 = vmatpush2.msra.mxu0 0.0
    %496 = vmatprep.subr.mxu0 0.0
    %497 = vmatpush2.msra.mxu0 0.0
    %498 = vmatprep.subr.mxu0 0.0
    %499 = vmatpush2.msra.mxu0 0.0
    %500 = vmatprep.subr.mxu0 0.0
    %501 = vmatpush2.msra.mxu0 0.0
    %502 = vmatprep.subr.mxu0 0.0
    %503 = vmatpush2.msra.mxu0 0.0
    %504 = vmatprep.subr.mxu0 0.0
    %505 = vmatpush2.msra.mxu0 0.0
    %506 = vmatprep.subr.mxu0 0.0
    %507 = vmatpush2.msra.mxu0 0.0
    %508 = vmatprep.subr.mxu0 0.0
    %509 = vmatpush2.msra.mxu0 0.0
    %510 = vmatprep.subr.mxu0 0.0
    %511 = vmatpush2.msra.mxu0 0.0
    %512 = vmatprep.subr.mxu0 0.0
    %513 = vmatpush2.msra.mxu0 0.0
    %514 = vmatprep.mubr.f32.mxu0 0.0
    %515 = vmatmul.mubr.f32.gmra.mxu0 %v448
    %v516 = vpop.f32.mrf.mxu0
    %v517 = vadd.f32 0.0, %v516
    %v518 = vpop.f32.mrf.mxu0
    %519 = vdwg.mxu0
    %v521 = vrot.slane %v446, 1
    %v522 = vsel %vm151, %v521, 0
    %524 = vmatprep.subr.mxu0 0.0
    %525 = vmatpush1.msra.mxu0 0.0
    %526 = vmatprep.subr.mxu0 0.0
    %527 = vmatpush1.msra.mxu0 0.0
    %528 = vmatprep.subr.mxu0 0.0
    %529 = vmatpush1.msra.mxu0 0.0
    %530 = vmatprep.subr.mxu0 0.0
    %531 = vmatpush1.msra.mxu0 0.0
    %532 = vmatprep.subr.mxu0 0.0
    %533 = vmatpush1.msra.mxu0 0.0
    %534 = vmatprep.subr.mxu0 0.0
    %535 = vmatpush1.msra.mxu0 0.0
    %536 = vmatprep.subr.mxu0 0.0
    %537 = vmatpush1.msra.mxu0 0.0
    %538 = vmatprep.subr.mxu0 0.0
    %539 = vmatpush1.msra.mxu0 0.0
    %540 = vmatprep.subr.mxu0 0.0
    %541 = vmatpush1.msra.mxu0 0.0
    %542 = vmatprep.subr.mxu0 0.0
    %543 = vmatpush1.msra.mxu0 0.0
    %544 = vmatprep.subr.mxu0 0.0
    %545 = vmatpush1.msra.mxu0 0.0
    %546 = vmatprep.subr.mxu0 0.0
    %547 = vmatpush1.msra.mxu0 0.0
    %548 = vmatprep.subr.mxu0 0.0
    %549 = vmatpush1.msra.mxu0 %v40
    %550 = vmatprep.subr.mxu0 0.0
    %551 = vmatpush1.msra.mxu0 %v39
    %552 = vmatprep.subr.mxu0 0.0
    %553 = vmatpush1.msra.mxu0 %v38
    %554 = vmatprep.subr.mxu0 0.0
    %555 = vmatpush1.msra.mxu0 %v37
    %556 = vmatprep.subr.mxu0 0.0
    %557 = vmatpush2.msra.mxu0 0.0
    %558 = vmatprep.subr.mxu0 0.0
    %559 = vmatpush2.msra.mxu0 0.0
    %560 = vmatprep.subr.mxu0 0.0
    %561 = vmatpush2.msra.mxu0 0.0
    %562 = vmatprep.subr.mxu0 0.0
    %563 = vmatpush2.msra.mxu0 0.0
    %564 = vmatprep.subr.mxu0 0.0
    %565 = vmatpush2.msra.mxu0 0.0
    %566 = vmatprep.subr.mxu0 0.0
    %567 = vmatpush2.msra.mxu0 0.0
    %568 = vmatprep.subr.mxu0 0.0
    %569 = vmatpush2.msra.mxu0 0.0
    %570 = vmatprep.subr.mxu0 0.0
    %571 = vmatpush2.msra.mxu0 0.0
    %572 = vmatprep.subr.mxu0 0.0
    %573 = vmatpush2.msra.mxu0 0.0
    %574 = vmatprep.subr.mxu0 0.0
    %575 = vmatpush2.msra.mxu0 0.0
    %576 = vmatprep.subr.mxu0 0.0
    %577 = vmatpush2.msra.mxu0 0.0
    %578 = vmatprep.subr.mxu0 0.0
    %579 = vmatpush2.msra.mxu0 0.0
    %580 = vmatprep.subr.mxu0 0.0
    %581 = vmatpush2.msra.mxu0 0.0
    %582 = vmatprep.subr.mxu0 0.0
    %583 = vmatpush2.msra.mxu0 0.0
    %584 = vmatprep.subr.mxu0 0.0
    %585 = vmatpush2.msra.mxu0 0.0
    %586 = vmatprep.subr.mxu0 0.0
    %587 = vmatpush2.msra.mxu0 0.0
    %588 = vmatprep.mubr.f32.mxu0 0.0
    %589 = vmatmul.mubr.f32.gmra.mxu0 %v522
    %v590 = vpop.f32.mrf.mxu0
    %v591 = vadd.f32 %v517, %v590
    %v592 = vpop.f32.mrf.mxu0
    %593 = vdwg.mxu0
    %v594 = vadd.f32 %v591, %v58
    %v595 = vtanh.pop %v594
    %596 = vmatprep.subr.mxu0 0.0
    %597 = vmatpush1.msra.mxu0 0.0
    %598 = vmatprep.subr.mxu0 0.0
    %599 = vmatpush1.msra.mxu0 0.0
    %600 = vmatprep.subr.mxu0 0.0
    %601 = vmatpush1.msra.mxu0 0.0
    %602 = vmatprep.subr.mxu0 0.0
    %603 = vmatpush1.msra.mxu0 0.0
    %604 = vmatprep.subr.mxu0 0.0
    %605 = vmatpush1.msra.mxu0 0.0
    %606 = vmatprep.subr.mxu0 0.0
    %607 = vmatpush1.msra.mxu0 0.0
    %608 = vmatprep.subr.mxu0 0.0
    %609 = vmatpush1.msra.mxu0 0.0
    %610 = vmatprep.subr.mxu0 0.0
    %611 = vmatpush1.msra.mxu0 0.0
    %612 = vmatprep.subr.mxu0 0.0
    %613 = vmatpush1.msra.mxu0 0.0
    %614 = vmatprep.subr.mxu0 0.0
    %615 = vmatpush1.msra.mxu0 0.0
    %616 = vmatprep.subr.mxu0 0.0
    %617 = vmatpush1.msra.mxu0 0.0
    %618 = vmatprep.subr.mxu0 0.0
    %619 = vmatpush1.msra.mxu0 0.0
    %620 = vmatprep.subr.mxu0 0.0
    %621 = vmatpush1.msra.mxu0 %v36
    %622 = vmatprep.subr.mxu0 0.0
    %623 = vmatpush1.msra.mxu0 %v35
    %624 = vmatprep.subr.mxu0 0.0
    %625 = vmatpush1.msra.mxu0 %v34
    %626 = vmatprep.subr.mxu0 0.0
    %627 = vmatpush1.msra.mxu0 %v33
    %628 = vmatprep.subr.mxu0 0.0
    %629 = vmatpush2.msra.mxu0 0.0
    %630 = vmatprep.subr.mxu0 0.0
    %631 = vmatpush2.msra.mxu0 0.0
    %632 = vmatprep.subr.mxu0 0.0
    %633 = vmatpush2.msra.mxu0 0.0
    %634 = vmatprep.subr.mxu0 0.0
    %635 = vmatpush2.msra.mxu0 0.0
    %636 = vmatprep.subr.mxu0 0.0
    %637 = vmatpush2.msra.mxu0 0.0
    %638 = vmatprep.subr.mxu0 0.0
    %639 = vmatpush2.msra.mxu0 0.0
    %640 = vmatprep.subr.mxu0 0.0
    %641 = vmatpush2.msra.mxu0 0.0
    %642 = vmatprep.subr.mxu0 0.0
    %643 = vmatpush2.msra.mxu0 0.0
    %644 = vmatprep.subr.mxu0 0.0
    %645 = vmatpush2.msra.mxu0 0.0
    %646 = vmatprep.subr.mxu0 0.0
    %647 = vmatpush2.msra.mxu0 0.0
    %648 = vmatprep.subr.mxu0 0.0
    %649 = vmatpush2.msra.mxu0 0.0
    %650 = vmatprep.subr.mxu0 0.0
    %651 = vmatpush2.msra.mxu0 0.0
    %652 = vmatprep.subr.mxu0 0.0
    %653 = vmatpush2.msra.mxu0 0.0
    %654 = vmatprep.subr.mxu0 0.0
    %655 = vmatpush2.msra.mxu0 0.0
    %656 = vmatprep.subr.mxu0 0.0
    %657 = vmatpush2.msra.mxu0 0.0
    %658 = vmatprep.subr.mxu0 0.0
    %659 = vmatpush2.msra.mxu0 0.0
    %660 = vmatprep.mubr.f32.mxu0 0.0
    %661 = vmatmul.mubr.f32.gmra.mxu0 %v522
    %v662 = vpop.f32.mrf.mxu0
    %v663 = vadd.f32 0.0, %v662
    %v664 = vpop.f32.mrf.mxu0
    %665 = vdwg.mxu0
    %v667 = vrot.slane %v663, 6
    %v669 = vadd.f32 %v148, %v667
    %v670 = vtanh.pop %v669
    %v672 = vsel %vm151, %v595, 0
    %674 = vmatprep.subr.mxu0 0.0
    %675 = vmatpush1.msra.mxu0 0.0
    %676 = vmatprep.subr.mxu0 0.0
    %677 = vmatpush1.msra.mxu0 0.0
    %678 = vmatprep.subr.mxu0 0.0
    %679 = vmatpush1.msra.mxu0 0.0
    %680 = vmatprep.subr.mxu0 0.0
    %681 = vmatpush1.msra.mxu0 0.0
    %682 = vmatprep.subr.mxu0 0.0
    %683 = vmatpush1.msra.mxu0 0.0
    %684 = vmatprep.subr.mxu0 0.0
    %685 = vmatpush1.msra.mxu0 0.0
    %686 = vmatprep.subr.mxu0 0.0
    %687 = vmatpush1.msra.mxu0 0.0
    %688 = vmatprep.subr.mxu0 0.0
    %689 = vmatpush1.msra.mxu0 0.0
    %690 = vmatprep.subr.mxu0 0.0
    %691 = vmatpush1.msra.mxu0 0.0
    %692 = vmatprep.subr.mxu0 0.0
    %693 = vmatpush1.msra.mxu0 0.0
    %694 = vmatprep.subr.mxu0 0.0
    %695 = vmatpush1.msra.mxu0 0.0
    %696 = vmatprep.subr.mxu0 0.0
    %697 = vmatpush1.msra.mxu0 0.0
    %698 = vmatprep.subr.mxu0 0.0
    %699 = vmatpush1.msra.mxu0 %v44
    %700 = vmatprep.subr.mxu0 0.0
    %701 = vmatpush1.msra.mxu0 %v43
    %702 = vmatprep.subr.mxu0 0.0
    %703 = vmatpush1.msra.mxu0 %v42
    %704 = vmatprep.subr.mxu0 0.0
    %705 = vmatpush1.msra.mxu0 %v41
    %706 = vmatprep.subr.mxu0 0.0
    %707 = vmatpush2.msra.mxu0 0.0
    %708 = vmatprep.subr.mxu0 0.0
    %709 = vmatpush2.msra.mxu0 0.0
    %710 = vmatprep.subr.mxu0 0.0
    %711 = vmatpush2.msra.mxu0 0.0
    %712 = vmatprep.subr.mxu0 0.0
    %713 = vmatpush2.msra.mxu0 0.0
    %714 = vmatprep.subr.mxu0 0.0
    %715 = vmatpush2.msra.mxu0 0.0
    %716 = vmatprep.subr.mxu0 0.0
    %717 = vmatpush2.msra.mxu0 0.0
    %718 = vmatprep.subr.mxu0 0.0
    %719 = vmatpush2.msra.mxu0 0.0
    %720 = vmatprep.subr.mxu0 0.0
    %721 = vmatpush2.msra.mxu0 0.0
    %722 = vmatprep.subr.mxu0 0.0
    %723 = vmatpush2.msra.mxu0 0.0
    %724 = vmatprep.subr.mxu0 0.0
    %725 = vmatpush2.msra.mxu0 0.0
    %726 = vmatprep.subr.mxu0 0.0
    %727 = vmatpush2.msra.mxu0 0.0
    %728 = vmatprep.subr.mxu0 0.0
    %729 = vmatpush2.msra.mxu0 0.0
    %730 = vmatprep.subr.mxu0 0.0
    %731 = vmatpush2.msra.mxu0 0.0
    %732 = vmatprep.subr.mxu0 0.0
    %733 = vmatpush2.msra.mxu0 0.0
    %734 = vmatprep.subr.mxu0 0.0
    %735 = vmatpush2.msra.mxu0 0.0
    %736 = vmatprep.subr.mxu0 0.0
    %737 = vmatpush2.msra.mxu0 0.0
    %738 = vmatprep.mubr.f32.mxu0 0.0
    %739 = vmatmul.mubr.f32.gmra.mxu0 %v672
    %v740 = vpop.f32.mrf.mxu0
    %v741 = vadd.f32 0.0, %v740
    %v742 = vpop.f32.mrf.mxu0
    %743 = vdwg.mxu0
    %v745 = vrot.slane %v670, 2
    %v746 = vsel %vm151, %v745, 0
    %748 = vmatprep.subr.mxu0 0.0
    %749 = vmatpush1.msra.mxu0 0.0
    %750 = vmatprep.subr.mxu0 0.0
    %751 = vmatpush1.msra.mxu0 0.0
    %752 = vmatprep.subr.mxu0 0.0
    %753 = vmatpush1.msra.mxu0 0.0
    %754 = vmatprep.subr.mxu0 0.0
    %755 = vmatpush1.msra.mxu0 0.0
    %756 = vmatprep.subr.mxu0 0.0
    %757 = vmatpush1.msra.mxu0 0.0
    %758 = vmatprep.subr.mxu0 0.0
    %759 = vmatpush1.msra.mxu0 0.0
    %760 = vmatprep.subr.mxu0 0.0
    %761 = vmatpush1.msra.mxu0 0.0
    %762 = vmatprep.subr.mxu0 0.0
    %763 = vmatpush1.msra.mxu0 0.0
    %764 = vmatprep.subr.mxu0 0.0
    %765 = vmatpush1.msra.mxu0 0.0
    %766 = vmatprep.subr.mxu0 0.0
    %767 = vmatpush1.msra.mxu0 0.0
    %768 = vmatprep.subr.mxu0 0.0
    %769 = vmatpush1.msra.mxu0 0.0
    %770 = vmatprep.subr.mxu0 0.0
    %771 = vmatpush1.msra.mxu0 0.0
    %772 = vmatprep.subr.mxu0 0.0
    %773 = vmatpush1.msra.mxu0 %v40
    %774 = vmatprep.subr.mxu0 0.0
    %775 = vmatpush1.msra.mxu0 %v39
    %776 = vmatprep.subr.mxu0 0.0
    %777 = vmatpush1.msra.mxu0 %v38
    %778 = vmatprep.subr.mxu0 0.0
    %779 = vmatpush1.msra.mxu0 %v37
    %780 = vmatprep.subr.mxu0 0.0
    %781 = vmatpush2.msra.mxu0 0.0
    %782 = vmatprep.subr.mxu0 0.0
    %783 = vmatpush2.msra.mxu0 0.0
    %784 = vmatprep.subr.mxu0 0.0
    %785 = vmatpush2.msra.mxu0 0.0
    %786 = vmatprep.subr.mxu0 0.0
    %787 = vmatpush2.msra.mxu0 0.0
    %788 = vmatprep.subr.mxu0 0.0
    %789 = vmatpush2.msra.mxu0 0.0
    %790 = vmatprep.subr.mxu0 0.0
    %791 = vmatpush2.msra.mxu0 0.0
    %792 = vmatprep.subr.mxu0 0.0
    %793 = vmatpush2.msra.mxu0 0.0
    %794 = vmatprep.subr.mxu0 0.0
    %795 = vmatpush2.msra.mxu0 0.0
    %796 = vmatprep.subr.mxu0 0.0
    %797 = vmatpush2.msra.mxu0 0.0
    %798 = vmatprep.subr.mxu0 0.0
    %799 = vmatpush2.msra.mxu0 0.0
    %800 = vmatprep.subr.mxu0 0.0
    %801 = vmatpush2.msra.mxu0 0.0
    %802 = vmatprep.subr.mxu0 0.0
    %803 = vmatpush2.msra.mxu0 0.0
    %804 = vmatprep.subr.mxu0 0.0
    %805 = vmatpush2.msra.mxu0 0.0
    %806 = vmatprep.subr.mxu0 0.0
    %807 = vmatpush2.msra.mxu0 0.0
    %808 = vmatprep.subr.mxu0 0.0
    %809 = vmatpush2.msra.mxu0 0.0
    %810 = vmatprep.subr.mxu0 0.0
    %811 = vmatpush2.msra.mxu0 0.0
    %812 = vmatprep.mubr.f32.mxu0 0.0
    %813 = vmatmul.mubr.f32.gmra.mxu0 %v746
    %v814 = vpop.f32.mrf.mxu0
    %v815 = vadd.f32 %v741, %v814
    %v816 = vpop.f32.mrf.mxu0
    %817 = vdwg.mxu0
    %v818 = vadd.f32 %v815, %v58
    %v819 = vtanh.pop %v818
    %820 = vmatprep.subr.mxu0 0.0
    %821 = vmatpush1.msra.mxu0 0.0
    %822 = vmatprep.subr.mxu0 0.0
    %823 = vmatpush1.msra.mxu0 0.0
    %824 = vmatprep.subr.mxu0 0.0
    %825 = vmatpush1.msra.mxu0 0.0
    %826 = vmatprep.subr.mxu0 0.0
    %827 = vmatpush1.msra.mxu0 0.0
    %828 = vmatprep.subr.mxu0 0.0
    %829 = vmatpush1.msra.mxu0 0.0
    %830 = vmatprep.subr.mxu0 0.0
    %831 = vmatpush1.msra.mxu0 0.0
    %832 = vmatprep.subr.mxu0 0.0
    %833 = vmatpush1.msra.mxu0 0.0
    %834 = vmatprep.subr.mxu0 0.0
    %835 = vmatpush1.msra.mxu0 0.0
    %836 = vmatprep.subr.mxu0 0.0
    %837 = vmatpush1.msra.mxu0 0.0
    %838 = vmatprep.subr.mxu0 0.0
    %839 = vmatpush1.msra.mxu0 0.0
    %840 = vmatprep.subr.mxu0 0.0
    %841 = vmatpush1.msra.mxu0 0.0
    %842 = vmatprep.subr.mxu0 0.0
    %843 = vmatpush1.msra.mxu0 0.0
    %844 = vmatprep.subr.mxu0 0.0
    %845 = vmatpush1.msra.mxu0 %v36
    %846 = vmatprep.subr.mxu0 0.0
    %847 = vmatpush1.msra.mxu0 %v35
    %848 = vmatprep.subr.mxu0 0.0
    %849 = vmatpush1.msra.mxu0 %v34
    %850 = vmatprep.subr.mxu0 0.0
    %851 = vmatpush1.msra.mxu0 %v33
    %852 = vmatprep.subr.mxu0 0.0
    %853 = vmatpush2.msra.mxu0 0.0
    %854 = vmatprep.subr.mxu0 0.0
    %855 = vmatpush2.msra.mxu0 0.0
    %856 = vmatprep.subr.mxu0 0.0
    %857 = vmatpush2.msra.mxu0 0.0
    %858 = vmatprep.subr.mxu0 0.0
    %859 = vmatpush2.msra.mxu0 0.0
    %860 = vmatprep.subr.mxu0 0.0
    %861 = vmatpush2.msra.mxu0 0.0
    %862 = vmatprep.subr.mxu0 0.0
    %863 = vmatpush2.msra.mxu0 0.0
    %864 = vmatprep.subr.mxu0 0.0
    %865 = vmatpush2.msra.mxu0 0.0
    %866 = vmatprep.subr.mxu0 0.0
    %867 = vmatpush2.msra.mxu0 0.0
    %868 = vmatprep.subr.mxu0 0.0
    %869 = vmatpush2.msra.mxu0 0.0
    %870 = vmatprep.subr.mxu0 0.0
    %871 = vmatpush2.msra.mxu0 0.0
    %872 = vmatprep.subr.mxu0 0.0
    %873 = vmatpush2.msra.mxu0 0.0
    %874 = vmatprep.subr.mxu0 0.0
    %875 = vmatpush2.msra.mxu0 0.0
    %876 = vmatprep.subr.mxu0 0.0
    %877 = vmatpush2.msra.mxu0 0.0
    %878 = vmatprep.subr.mxu0 0.0
    %879 = vmatpush2.msra.mxu0 0.0
    %880 = vmatprep.subr.mxu0 0.0
    %881 = vmatpush2.msra.mxu0 0.0
    %882 = vmatprep.subr.mxu0 0.0
    %883 = vmatpush2.msra.mxu0 0.0
    %884 = vmatprep.mubr.f32.mxu0 0.0
    %885 = vmatmul.mubr.f32.gmra.mxu0 %v746
    %v886 = vpop.f32.mrf.mxu0
    %v887 = vadd.f32 0.0, %v886
    %v888 = vpop.f32.mrf.mxu0
    %889 = vdwg.mxu0
    %v891 = vrot.slane %v887, 5
    %v893 = vadd.f32 %v148, %v891
    %v894 = vtanh.pop %v893
    %v896 = vsel %vm151, %v819, 0
    %898 = vmatprep.subr.mxu0 0.0
    %899 = vmatpush1.msra.mxu0 0.0
    %900 = vmatprep.subr.mxu0 0.0
    %901 = vmatpush1.msra.mxu0 0.0
    %902 = vmatprep.subr.mxu0 0.0
    %903 = vmatpush1.msra.mxu0 0.0
    %904 = vmatprep.subr.mxu0 0.0
    %905 = vmatpush1.msra.mxu0 0.0
    %906 = vmatprep.subr.mxu0 0.0
    %907 = vmatpush1.msra.mxu0 0.0
    %908 = vmatprep.subr.mxu0 0.0
    %909 = vmatpush1.msra.mxu0 0.0
    %910 = vmatprep.subr.mxu0 0.0
    %911 = vmatpush1.msra.mxu0 0.0
    %912 = vmatprep.subr.mxu0 0.0
    %913 = vmatpush1.msra.mxu0 0.0
    %914 = vmatprep.subr.mxu0 0.0
    %915 = vmatpush1.msra.mxu0 0.0
    %916 = vmatprep.subr.mxu0 0.0
    %917 = vmatpush1.msra.mxu0 0.0
    %918 = vmatprep.subr.mxu0 0.0
    %919 = vmatpush1.msra.mxu0 0.0
    %920 = vmatprep.subr.mxu0 0.0
    %921 = vmatpush1.msra.mxu0 0.0
    %922 = vmatprep.subr.mxu0 0.0
    %923 = vmatpush1.msra.mxu0 %v44
    %924 = vmatprep.subr.mxu0 0.0
    %925 = vmatpush1.msra.mxu0 %v43
    %926 = vmatprep.subr.mxu0 0.0
    %927 = vmatpush1.msra.mxu0 %v42
    %928 = vmatprep.subr.mxu0 0.0
    %929 = vmatpush1.msra.mxu0 %v41
    %930 = vmatprep.subr.mxu0 0.0
    %931 = vmatpush2.msra.mxu0 0.0
    %932 = vmatprep.subr.mxu0 0.0
    %933 = vmatpush2.msra.mxu0 0.0
    %934 = vmatprep.subr.mxu0 0.0
    %935 = vmatpush2.msra.mxu0 0.0
    %936 = vmatprep.subr.mxu0 0.0
    %937 = vmatpush2.msra.mxu0 0.0
    %938 = vmatprep.subr.mxu0 0.0
    %939 = vmatpush2.msra.mxu0 0.0
    %940 = vmatprep.subr.mxu0 0.0
    %941 = vmatpush2.msra.mxu0 0.0
    %942 = vmatprep.subr.mxu0 0.0
    %943 = vmatpush2.msra.mxu0 0.0
    %944 = vmatprep.subr.mxu0 0.0
    %945 = vmatpush2.msra.mxu0 0.0
    %946 = vmatprep.subr.mxu0 0.0
    %947 = vmatpush2.msra.mxu0 0.0
    %948 = vmatprep.subr.mxu0 0.0
    %949 = vmatpush2.msra.mxu0 0.0
    %950 = vmatprep.subr.mxu0 0.0
    %951 = vmatpush2.msra.mxu0 0.0
    %952 = vmatprep.subr.mxu0 0.0
    %953 = vmatpush2.msra.mxu0 0.0
    %954 = vmatprep.subr.mxu0 0.0
    %955 = vmatpush2.msra.mxu0 0.0
    %956 = vmatprep.subr.mxu0 0.0
    %957 = vmatpush2.msra.mxu0 0.0
    %958 = vmatprep.subr.mxu0 0.0
    %959 = vmatpush2.msra.mxu0 0.0
    %960 = vmatprep.subr.mxu0 0.0
    %961 = vmatpush2.msra.mxu0 0.0
    %962 = vmatprep.mubr.f32.mxu0 0.0
    %963 = vmatmul.mubr.f32.gmra.mxu0 %v896
    %v964 = vpop.f32.mrf.mxu0
    %v965 = vadd.f32 0.0, %v964
    %v966 = vpop.f32.mrf.mxu0
    %967 = vdwg.mxu0
    %v969 = vrot.slane %v894, 3
    %v970 = vsel %vm151, %v969, 0
    %972 = vmatprep.subr.mxu0 0.0
    %973 = vmatpush1.msra.mxu0 0.0
    %974 = vmatprep.subr.mxu0 0.0
    %975 = vmatpush1.msra.mxu0 0.0
    %976 = vmatprep.subr.mxu0 0.0
    %977 = vmatpush1.msra.mxu0 0.0
    %978 = vmatprep.subr.mxu0 0.0
    %979 = vmatpush1.msra.mxu0 0.0
    %980 = vmatprep.subr.mxu0 0.0
    %981 = vmatpush1.msra.mxu0 0.0
    %982 = vmatprep.subr.mxu0 0.0
    %983 = vmatpush1.msra.mxu0 0.0
    %984 = vmatprep.subr.mxu0 0.0
    %985 = vmatpush1.msra.mxu0 0.0
    %986 = vmatprep.subr.mxu0 0.0
    %987 = vmatpush1.msra.mxu0 0.0
    %988 = vmatprep.subr.mxu0 0.0
    %989 = vmatpush1.msra.mxu0 0.0
    %990 = vmatprep.subr.mxu0 0.0
    %991 = vmatpush1.msra.mxu0 0.0
    %992 = vmatprep.subr.mxu0 0.0
    %993 = vmatpush1.msra.mxu0 0.0
    %994 = vmatprep.subr.mxu0 0.0
    %995 = vmatpush1.msra.mxu0 0.0
    %996 = vmatprep.subr.mxu0 0.0
    %997 = vmatpush1.msra.mxu0 %v40
    %998 = vmatprep.subr.mxu0 0.0
    %999 = vmatpush1.msra.mxu0 %v39
    %1000 = vmatprep.subr.mxu0 0.0
    %1001 = vmatpush1.msra.mxu0 %v38
    %1002 = vmatprep.subr.mxu0 0.0
    %1003 = vmatpush1.msra.mxu0 %v37
    %1004 = vmatprep.subr.mxu0 0.0
    %1005 = vmatpush2.msra.mxu0 0.0
    %1006 = vmatprep.subr.mxu0 0.0
    %1007 = vmatpush2.msra.mxu0 0.0
    %1008 = vmatprep.subr.mxu0 0.0
    %1009 = vmatpush2.msra.mxu0 0.0
    %1010 = vmatprep.subr.mxu0 0.0
    %1011 = vmatpush2.msra.mxu0 0.0
    %1012 = vmatprep.subr.mxu0 0.0
    %1013 = vmatpush2.msra.mxu0 0.0
    %1014 = vmatprep.subr.mxu0 0.0
    %1015 = vmatpush2.msra.mxu0 0.0
    %1016 = vmatprep.subr.mxu0 0.0
    %1017 = vmatpush2.msra.mxu0 0.0
    %1018 = vmatprep.subr.mxu0 0.0
    %1019 = vmatpush2.msra.mxu0 0.0
    %1020 = vmatprep.subr.mxu0 0.0
    %1021 = vmatpush2.msra.mxu0 0.0
    %1022 = vmatprep.subr.mxu0 0.0
    %1023 = vmatpush2.msra.mxu0 0.0
    %1024 = vmatprep.subr.mxu0 0.0
    %1025 = vmatpush2.msra.mxu0 0.0
    %1026 = vmatprep.subr.mxu0 0.0
    %1027 = vmatpush2.msra.mxu0 0.0
    %1028 = vmatprep.subr.mxu0 0.0
    %1029 = vmatpush2.msra.mxu0 0.0
    %1030 = vmatprep.subr.mxu0 0.0
    %1031 = vmatpush2.msra.mxu0 0.0
    %1032 = vmatprep.subr.mxu0 0.0
    %1033 = vmatpush2.msra.mxu0 0.0
    %1034 = vmatprep.subr.mxu0 0.0
    %1035 = vmatpush2.msra.mxu0 0.0
    %1036 = vmatprep.mubr.f32.mxu0 0.0
    %1037 = vmatmul.mubr.f32.gmra.mxu0 %v970
    %v1038 = vpop.f32.mrf.mxu0
    %v1039 = vadd.f32 %v965, %v1038
    %v1040 = vpop.f32.mrf.mxu0
    %1041 = vdwg.mxu0
    %v1042 = vadd.f32 %v1039, %v58
    %v1043 = vtanh.pop %v1042
    %1044 = vmatprep.subr.mxu0 0.0
    %1045 = vmatpush1.msra.mxu0 0.0
    %1046 = vmatprep.subr.mxu0 0.0
    %1047 = vmatpush1.msra.mxu0 0.0
    %1048 = vmatprep.subr.mxu0 0.0
    %1049 = vmatpush1.msra.mxu0 0.0
    %1050 = vmatprep.subr.mxu0 0.0
    %1051 = vmatpush1.msra.mxu0 0.0
    %1052 = vmatprep.subr.mxu0 0.0
    %1053 = vmatpush1.msra.mxu0 0.0
    %1054 = vmatprep.subr.mxu0 0.0
    %1055 = vmatpush1.msra.mxu0 0.0
    %1056 = vmatprep.subr.mxu0 0.0
    %1057 = vmatpush1.msra.mxu0 0.0
    %1058 = vmatprep.subr.mxu0 0.0
    %1059 = vmatpush1.msra.mxu0 0.0
    %1060 = vmatprep.subr.mxu0 0.0
    %1061 = vmatpush1.msra.mxu0 0.0
    %1062 = vmatprep.subr.mxu0 0.0
    %1063 = vmatpush1.msra.mxu0 0.0
    %1064 = vmatprep.subr.mxu0 0.0
    %1065 = vmatpush1.msra.mxu0 0.0
    %1066 = vmatprep.subr.mxu0 0.0
    %1067 = vmatpush1.msra.mxu0 0.0
    %1068 = vmatprep.subr.mxu0 0.0
    %1069 = vmatpush1.msra.mxu0 %v36
    %1070 = vmatprep.subr.mxu0 0.0
    %1071 = vmatpush1.msra.mxu0 %v35
    %1072 = vmatprep.subr.mxu0 0.0
    %1073 = vmatpush1.msra.mxu0 %v34
    %1074 = vmatprep.subr.mxu0 0.0
    %1075 = vmatpush1.msra.mxu0 %v33
    %1076 = vmatprep.subr.mxu0 0.0
    %1077 = vmatpush2.msra.mxu0 0.0
    %1078 = vmatprep.subr.mxu0 0.0
    %1079 = vmatpush2.msra.mxu0 0.0
    %1080 = vmatprep.subr.mxu0 0.0
    %1081 = vmatpush2.msra.mxu0 0.0
    %1082 = vmatprep.subr.mxu0 0.0
    %1083 = vmatpush2.msra.mxu0 0.0
    %1084 = vmatprep.subr.mxu0 0.0
    %1085 = vmatpush2.msra.mxu0 0.0
    %1086 = vmatprep.subr.mxu0 0.0
    %1087 = vmatpush2.msra.mxu0 0.0
    %1088 = vmatprep.subr.mxu0 0.0
    %1089 = vmatpush2.msra.mxu0 0.0
    %1090 = vmatprep.subr.mxu0 0.0
    %1091 = vmatpush2.msra.mxu0 0.0
    %1092 = vmatprep.subr.mxu0 0.0
    %1093 = vmatpush2.msra.mxu0 0.0
    %1094 = vmatprep.subr.mxu0 0.0
    %1095 = vmatpush2.msra.mxu0 0.0
    %1096 = vmatprep.subr.mxu0 0.0
    %1097 = vmatpush2.msra.mxu0 0.0
    %1098 = vmatprep.subr.mxu0 0.0
    %1099 = vmatpush2.msra.mxu0 0.0
    %1100 = vmatprep.subr.mxu0 0.0
    %1101 = vmatpush2.msra.mxu0 0.0
    %1102 = vmatprep.subr.mxu0 0.0
    %1103 = vmatpush2.msra.mxu0 0.0
    %1104 = vmatprep.subr.mxu0 0.0
    %1105 = vmatpush2.msra.mxu0 0.0
    %1106 = vmatprep.subr.mxu0 0.0
    %1107 = vmatpush2.msra.mxu0 0.0
    %1108 = vmatprep.mubr.f32.mxu0 0.0
    %1109 = vmatmul.mubr.f32.gmra.mxu0 %v970
    %v1110 = vpop.f32.mrf.mxu0
    %v1111 = vadd.f32 0.0, %v1110
    %v1112 = vpop.f32.mrf.mxu0
    %1113 = vdwg.mxu0
    %v1115 = vrot.slane %v1111, 4
    %v1117 = vadd.f32 %v148, %v1115
    %v1118 = vtanh.pop %v1117
    %v1120 = vsel %vm151, %v1043, 0
    %1122 = vmatprep.subr.mxu0 0.0
    %1123 = vmatpush1.msra.mxu0 0.0
    %1124 = vmatprep.subr.mxu0 0.0
    %1125 = vmatpush1.msra.mxu0 0.0
    %1126 = vmatprep.subr.mxu0 0.0
    %1127 = vmatpush1.msra.mxu0 0.0
    %1128 = vmatprep.subr.mxu0 0.0
    %1129 = vmatpush1.msra.mxu0 0.0
    %1130 = vmatprep.subr.mxu0 0.0
    %1131 = vmatpush1.msra.mxu0 0.0
    %1132 = vmatprep.subr.mxu0 0.0
    %1133 = vmatpush1.msra.mxu0 0.0
    %1134 = vmatprep.subr.mxu0 0.0
    %1135 = vmatpush1.msra.mxu0 0.0
    %1136 = vmatprep.subr.mxu0 0.0
    %1137 = vmatpush1.msra.mxu0 0.0
    %1138 = vmatprep.subr.mxu0 0.0
    %1139 = vmatpush1.msra.mxu0 0.0
    %1140 = vmatprep.subr.mxu0 0.0
    %1141 = vmatpush1.msra.mxu0 0.0
    %1142 = vmatprep.subr.mxu0 0.0
    %1143 = vmatpush1.msra.mxu0 0.0
    %1144 = vmatprep.subr.mxu0 0.0
    %1145 = vmatpush1.msra.mxu0 0.0
    %1146 = vmatprep.subr.mxu0 0.0
    %1147 = vmatpush1.msra.mxu0 %v44
    %1148 = vmatprep.subr.mxu0 0.0
    %1149 = vmatpush1.msra.mxu0 %v43
    %1150 = vmatprep.subr.mxu0 0.0
    %1151 = vmatpush1.msra.mxu0 %v42
    %1152 = vmatprep.subr.mxu0 0.0
    %1153 = vmatpush1.msra.mxu0 %v41
    %1154 = vmatprep.subr.mxu0 0.0
    %1155 = vmatpush2.msra.mxu0 0.0
    %1156 = vmatprep.subr.mxu0 0.0
    %1157 = vmatpush2.msra.mxu0 0.0
    %1158 = vmatprep.subr.mxu0 0.0
    %1159 = vmatpush2.msra.mxu0 0.0
    %1160 = vmatprep.subr.mxu0 0.0
    %1161 = vmatpush2.msra.mxu0 0.0
    %1162 = vmatprep.subr.mxu0 0.0
    %1163 = vmatpush2.msra.mxu0 0.0
    %1164 = vmatprep.subr.mxu0 0.0
    %1165 = vmatpush2.msra.mxu0 0.0
    %1166 = vmatprep.subr.mxu0 0.0
    %1167 = vmatpush2.msra.mxu0 0.0
    %1168 = vmatprep.subr.mxu0 0.0
    %1169 = vmatpush2.msra.mxu0 0.0
    %1170 = vmatprep.subr.mxu0 0.0
    %1171 = vmatpush2.msra.mxu0 0.0
    %1172 = vmatprep.subr.mxu0 0.0
    %1173 = vmatpush2.msra.mxu0 0.0
    %1174 = vmatprep.subr.mxu0 0.0
    %1175 = vmatpush2.msra.mxu0 0.0
    %1176 = vmatprep.subr.mxu0 0.0
    %1177 = vmatpush2.msra.mxu0 0.0
    %1178 = vmatprep.subr.mxu0 0.0
    %1179 = vmatpush2.msra.mxu0 0.0
    %1180 = vmatprep.subr.mxu0 0.0
    %1181 = vmatpush2.msra.mxu0 0.0
    %1182 = vmatprep.subr.mxu0 0.0
    %1183 = vmatpush2.msra.mxu0 0.0
    %1184 = vmatprep.subr.mxu0 0.0
    %1185 = vmatpush2.msra.mxu0 0.0
    %1186 = vmatprep.mubr.f32.mxu0 0.0
    %1187 = vmatmul.mubr.f32.gmra.mxu0 %v1120
    %v1188 = vpop.f32.mrf.mxu0
    %v1189 = vadd.f32 0.0, %v1188
    %v1190 = vpop.f32.mrf.mxu0
    %1191 = vdwg.mxu0
    %v1193 = vrot.slane %v1118, 4
    %v1194 = vsel %vm151, %v1193, 0
    %1196 = vmatprep.subr.mxu0 0.0
    %1197 = vmatpush1.msra.mxu0 0.0
    %1198 = vmatprep.subr.mxu0 0.0
    %1199 = vmatpush1.msra.mxu0 0.0
    %1200 = vmatprep.subr.mxu0 0.0
    %1201 = vmatpush1.msra.mxu0 0.0
    %1202 = vmatprep.subr.mxu0 0.0
    %1203 = vmatpush1.msra.mxu0 0.0
    %1204 = vmatprep.subr.mxu0 0.0
    %1205 = vmatpush1.msra.mxu0 0.0
    %1206 = vmatprep.subr.mxu0 0.0
    %1207 = vmatpush1.msra.mxu0 0.0
    %1208 = vmatprep.subr.mxu0 0.0
    %1209 = vmatpush1.msra.mxu0 0.0
    %1210 = vmatprep.subr.mxu0 0.0
    %1211 = vmatpush1.msra.mxu0 0.0
    %1212 = vmatprep.subr.mxu0 0.0
    %1213 = vmatpush1.msra.mxu0 0.0
    %1214 = vmatprep.subr.mxu0 0.0
    %1215 = vmatpush1.msra.mxu0 0.0
    %1216 = vmatprep.subr.mxu0 0.0
    %1217 = vmatpush1.msra.mxu0 0.0
    %1218 = vmatprep.subr.mxu0 0.0
    %1219 = vmatpush1.msra.mxu0 0.0
    %1220 = vmatprep.subr.mxu0 0.0
    %1221 = vmatpush1.msra.mxu0 %v40
    %1222 = vmatprep.subr.mxu0 0.0
    %1223 = vmatpush1.msra.mxu0 %v39
    %1224 = vmatprep.subr.mxu0 0.0
    %1225 = vmatpush1.msra.mxu0 %v38
    %1226 = vmatprep.subr.mxu0 0.0
    %1227 = vmatpush1.msra.mxu0 %v37
    %1228 = vmatprep.subr.mxu0 0.0
    %1229 = vmatpush2.msra.mxu0 0.0
    %1230 = vmatprep.subr.mxu0 0.0
    %1231 = vmatpush2.msra.mxu0 0.0
    %1232 = vmatprep.subr.mxu0 0.0
    %1233 = vmatpush2.msra.mxu0 0.0
    %1234 = vmatprep.subr.mxu0 0.0
    %1235 = vmatpush2.msra.mxu0 0.0
    %1236 = vmatprep.subr.mxu0 0.0
    %1237 = vmatpush2.msra.mxu0 0.0
    %1238 = vmatprep.subr.mxu0 0.0
    %1239 = vmatpush2.msra.mxu0 0.0
    %1240 = vmatprep.subr.mxu0 0.0
    %1241 = vmatpush2.msra.mxu0 0.0
    %1242 = vmatprep.subr.mxu0 0.0
    %1243 = vmatpush2.msra.mxu0 0.0
    %1244 = vmatprep.subr.mxu0 0.0
    %1245 = vmatpush2.msra.mxu0 0.0
    %1246 = vmatprep.subr.mxu0 0.0
    %1247 = vmatpush2.msra.mxu0 0.0
    %1248 = vmatprep.subr.mxu0 0.0
    %1249 = vmatpush2.msra.mxu0 0.0
    %1250 = vmatprep.subr.mxu0 0.0
    %1251 = vmatpush2.msra.mxu0 0.0
    %1252 = vmatprep.subr.mxu0 0.0
    %1253 = vmatpush2.msra.mxu0 0.0
    %1254 = vmatprep.subr.mxu0 0.0
    %1255 = vmatpush2.msra.mxu0 0.0
    %1256 = vmatprep.subr.mxu0 0.0
    %1257 = vmatpush2.msra.mxu0 0.0
    %1258 = vmatprep.subr.mxu0 0.0
    %1259 = vmatpush2.msra.mxu0 0.0
    %1260 = vmatprep.mubr.f32.mxu0 0.0
    %1261 = vmatmul.mubr.f32.gmra.mxu0 %v1194
    %v1262 = vpop.f32.mrf.mxu0
    %v1263 = vadd.f32 %v1189, %v1262
    %v1264 = vpop.f32.mrf.mxu0
    %1265 = vdwg.mxu0
    %v1266 = vadd.f32 %v1263, %v58
    %v1267 = vtanh.pop %v1266
    %1268 = vmatprep.subr.mxu0 0.0
    %1269 = vmatpush1.msra.mxu0 0.0
    %1270 = vmatprep.subr.mxu0 0.0
    %1271 = vmatpush1.msra.mxu0 0.0
    %1272 = vmatprep.subr.mxu0 0.0
    %1273 = vmatpush1.msra.mxu0 0.0
    %1274 = vmatprep.subr.mxu0 0.0
    %1275 = vmatpush1.msra.mxu0 0.0
    %1276 = vmatprep.subr.mxu0 0.0
    %1277 = vmatpush1.msra.mxu0 0.0
    %1278 = vmatprep.subr.mxu0 0.0
    %1279 = vmatpush1.msra.mxu0 0.0
    %1280 = vmatprep.subr.mxu0 0.0
    %1281 = vmatpush1.msra.mxu0 0.0
    %1282 = vmatprep.subr.mxu0 0.0
    %1283 = vmatpush1.msra.mxu0 0.0
    %1284 = vmatprep.subr.mxu0 0.0
    %1285 = vmatpush1.msra.mxu0 0.0
    %1286 = vmatprep.subr.mxu0 0.0
    %1287 = vmatpush1.msra.mxu0 0.0
    %1288 = vmatprep.subr.mxu0 0.0
    %1289 = vmatpush1.msra.mxu0 0.0
    %1290 = vmatprep.subr.mxu0 0.0
    %1291 = vmatpush1.msra.mxu0 0.0
    %1292 = vmatprep.subr.mxu0 0.0
    %1293 = vmatpush1.msra.mxu0 %v36
    %1294 = vmatprep.subr.mxu0 0.0
    %1295 = vmatpush1.msra.mxu0 %v35
    %1296 = vmatprep.subr.mxu0 0.0
    %1297 = vmatpush1.msra.mxu0 %v34
    %1298 = vmatprep.subr.mxu0 0.0
    %1299 = vmatpush1.msra.mxu0 %v33
    %1300 = vmatprep.subr.mxu0 0.0
    %1301 = vmatpush2.msra.mxu0 0.0
    %1302 = vmatprep.subr.mxu0 0.0
    %1303 = vmatpush2.msra.mxu0 0.0
    %1304 = vmatprep.subr.mxu0 0.0
    %1305 = vmatpush2.msra.mxu0 0.0
    %1306 = vmatprep.subr.mxu0 0.0
    %1307 = vmatpush2.msra.mxu0 0.0
    %1308 = vmatprep.subr.mxu0 0.0
    %1309 = vmatpush2.msra.mxu0 0.0
    %1310 = vmatprep.subr.mxu0 0.0
    %1311 = vmatpush2.msra.mxu0 0.0
    %1312 = vmatprep.subr.mxu0 0.0
    %1313 = vmatpush2.msra.mxu0 0.0
    %1314 = vmatprep.subr.mxu0 0.0
    %1315 = vmatpush2.msra.mxu0 0.0
    %1316 = vmatprep.subr.mxu0 0.0
    %1317 = vmatpush2.msra.mxu0 0.0
    %1318 = vmatprep.subr.mxu0 0.0
    %1319 = vmatpush2.msra.mxu0 0.0
    %1320 = vmatprep.subr.mxu0 0.0
    %1321 = vmatpush2.msra.mxu0 0.0
    %1322 = vmatprep.subr.mxu0 0.0
    %1323 = vmatpush2.msra.mxu0 0.0
    %1324 = vmatprep.subr.mxu0 0.0
    %1325 = vmatpush2.msra.mxu0 0.0
    %1326 = vmatprep.subr.mxu0 0.0
    %1327 = vmatpush2.msra.mxu0 0.0
    %1328 = vmatprep.subr.mxu0 0.0
    %1329 = vmatpush2.msra.mxu0 0.0
    %1330 = vmatprep.subr.mxu0 0.0
    %1331 = vmatpush2.msra.mxu0 0.0
    %1332 = vmatprep.mubr.f32.mxu0 0.0
    %1333 = vmatmul.mubr.f32.gmra.mxu0 %v1194
    %v1334 = vpop.f32.mrf.mxu0
    %v1335 = vadd.f32 0.0, %v1334
    %v1336 = vpop.f32.mrf.mxu0
    %1337 = vdwg.mxu0
    %v1339 = vrot.slane %v1335, 3
    %v1341 = vadd.f32 %v148, %v1339
    %v1342 = vtanh.pop %v1341
    %v1344 = vsel %vm151, %v1267, 0
    %1346 = vmatprep.subr.mxu0 0.0
    %1347 = vmatpush1.msra.mxu0 0.0
    %1348 = vmatprep.subr.mxu0 0.0
    %1349 = vmatpush1.msra.mxu0 0.0
    %1350 = vmatprep.subr.mxu0 0.0
    %1351 = vmatpush1.msra.mxu0 0.0
    %1352 = vmatprep.subr.mxu0 0.0
    %1353 = vmatpush1.msra.mxu0 0.0
    %1354 = vmatprep.subr.mxu0 0.0
    %1355 = vmatpush1.msra.mxu0 0.0
    %1356 = vmatprep.subr.mxu0 0.0
    %1357 = vmatpush1.msra.mxu0 0.0
    %1358 = vmatprep.subr.mxu0 0.0
    %1359 = vmatpush1.msra.mxu0 0.0
    %1360 = vmatprep.subr.mxu0 0.0
    %1361 = vmatpush1.msra.mxu0 0.0
    %1362 = vmatprep.subr.mxu0 0.0
    %1363 = vmatpush1.msra.mxu0 0.0
    %1364 = vmatprep.subr.mxu0 0.0
    %1365 = vmatpush1.msra.mxu0 0.0
    %1366 = vmatprep.subr.mxu0 0.0
    %1367 = vmatpush1.msra.mxu0 0.0
    %1368 = vmatprep.subr.mxu0 0.0
    %1369 = vmatpush1.msra.mxu0 0.0
    %1370 = vmatprep.subr.mxu0 0.0
    %1371 = vmatpush1.msra.mxu0 %v44
    %1372 = vmatprep.subr.mxu0 0.0
    %1373 = vmatpush1.msra.mxu0 %v43
    %1374 = vmatprep.subr.mxu0 0.0
    %1375 = vmatpush1.msra.mxu0 %v42
    %1376 = vmatprep.subr.mxu0 0.0
    %1377 = vmatpush1.msra.mxu0 %v41
    %1378 = vmatprep.subr.mxu0 0.0
    %1379 = vmatpush2.msra.mxu0 0.0
    %1380 = vmatprep.subr.mxu0 0.0
    %1381 = vmatpush2.msra.mxu0 0.0
    %1382 = vmatprep.subr.mxu0 0.0
    %1383 = vmatpush2.msra.mxu0 0.0
    %1384 = vmatprep.subr.mxu0 0.0
    %1385 = vmatpush2.msra.mxu0 0.0
    %1386 = vmatprep.subr.mxu0 0.0
    %1387 = vmatpush2.msra.mxu0 0.0
    %1388 = vmatprep.subr.mxu0 0.0
    %1389 = vmatpush2.msra.mxu0 0.0
    %1390 = vmatprep.subr.mxu0 0.0
    %1391 = vmatpush2.msra.mxu0 0.0
    %1392 = vmatprep.subr.mxu0 0.0
    %1393 = vmatpush2.msra.mxu0 0.0
    %1394 = vmatprep.subr.mxu0 0.0
    %1395 = vmatpush2.msra.mxu0 0.0
    %1396 = vmatprep.subr.mxu0 0.0
    %1397 = vmatpush2.msra.mxu0 0.0
    %1398 = vmatprep.subr.mxu0 0.0
    %1399 = vmatpush2.msra.mxu0 0.0
    %1400 = vmatprep.subr.mxu0 0.0
    %1401 = vmatpush2.msra.mxu0 0.0
    %1402 = vmatprep.subr.mxu0 0.0
    %1403 = vmatpush2.msra.mxu0 0.0
    %1404 = vmatprep.subr.mxu0 0.0
    %1405 = vmatpush2.msra.mxu0 0.0
    %1406 = vmatprep.subr.mxu0 0.0
    %1407 = vmatpush2.msra.mxu0 0.0
    %1408 = vmatprep.subr.mxu0 0.0
    %1409 = vmatpush2.msra.mxu0 0.0
    %1410 = vmatprep.mubr.f32.mxu0 0.0
    %1411 = vmatmul.mubr.f32.gmra.mxu0 %v1344
    %v1412 = vpop.f32.mrf.mxu0
    %v1413 = vadd.f32 0.0, %v1412
    %v1414 = vpop.f32.mrf.mxu0
    %1415 = vdwg.mxu0
    %v1417 = vrot.slane %v1342, 5
    %v1418 = vsel %vm151, %v1417, 0
    %1420 = vmatprep.subr.mxu0 0.0
    %1421 = vmatpush1.msra.mxu0 0.0
    %1422 = vmatprep.subr.mxu0 0.0
    %1423 = vmatpush1.msra.mxu0 0.0
    %1424 = vmatprep.subr.mxu0 0.0
    %1425 = vmatpush1.msra.mxu0 0.0
    %1426 = vmatprep.subr.mxu0 0.0
    %1427 = vmatpush1.msra.mxu0 0.0
    %1428 = vmatprep.subr.mxu0 0.0
    %1429 = vmatpush1.msra.mxu0 0.0
    %1430 = vmatprep.subr.mxu0 0.0
    %1431 = vmatpush1.msra.mxu0 0.0
    %1432 = vmatprep.subr.mxu0 0.0
    %1433 = vmatpush1.msra.mxu0 0.0
    %1434 = vmatprep.subr.mxu0 0.0
    %1435 = vmatpush1.msra.mxu0 0.0
    %1436 = vmatprep.subr.mxu0 0.0
    %1437 = vmatpush1.msra.mxu0 0.0
    %1438 = vmatprep.subr.mxu0 0.0
    %1439 = vmatpush1.msra.mxu0 0.0
    %1440 = vmatprep.subr.mxu0 0.0
    %1441 = vmatpush1.msra.mxu0 0.0
    %1442 = vmatprep.subr.mxu0 0.0
    %1443 = vmatpush1.msra.mxu0 0.0
    %1444 = vmatprep.subr.mxu0 0.0
    %1445 = vmatpush1.msra.mxu0 %v40
    %1446 = vmatprep.subr.mxu0 0.0
    %1447 = vmatpush1.msra.mxu0 %v39
    %1448 = vmatprep.subr.mxu0 0.0
    %1449 = vmatpush1.msra.mxu0 %v38
    %1450 = vmatprep.subr.mxu0 0.0
    %1451 = vmatpush1.msra.mxu0 %v37
    %1452 = vmatprep.subr.mxu0 0.0
    %1453 = vmatpush2.msra.mxu0 0.0
    %1454 = vmatprep.subr.mxu0 0.0
    %1455 = vmatpush2.msra.mxu0 0.0
    %1456 = vmatprep.subr.mxu0 0.0
    %1457 = vmatpush2.msra.mxu0 0.0
    %1458 = vmatprep.subr.mxu0 0.0
    %1459 = vmatpush2.msra.mxu0 0.0
    %1460 = vmatprep.subr.mxu0 0.0
    %1461 = vmatpush2.msra.mxu0 0.0
    %1462 = vmatprep.subr.mxu0 0.0
    %1463 = vmatpush2.msra.mxu0 0.0
    %1464 = vmatprep.subr.mxu0 0.0
    %1465 = vmatpush2.msra.mxu0 0.0
    %1466 = vmatprep.subr.mxu0 0.0
    %1467 = vmatpush2.msra.mxu0 0.0
    %1468 = vmatprep.subr.mxu0 0.0
    %1469 = vmatpush2.msra.mxu0 0.0
    %1470 = vmatprep.subr.mxu0 0.0
    %1471 = vmatpush2.msra.mxu0 0.0
    %1472 = vmatprep.subr.mxu0 0.0
    %1473 = vmatpush2.msra.mxu0 0.0
    %1474 = vmatprep.subr.mxu0 0.0
    %1475 = vmatpush2.msra.mxu0 0.0
    %1476 = vmatprep.subr.mxu0 0.0
    %1477 = vmatpush2.msra.mxu0 0.0
    %1478 = vmatprep.subr.mxu0 0.0
    %1479 = vmatpush2.msra.mxu0 0.0
    %1480 = vmatprep.subr.mxu0 0.0
    %1481 = vmatpush2.msra.mxu0 0.0
    %1482 = vmatprep.subr.mxu0 0.0
    %1483 = vmatpush2.msra.mxu0 0.0
    %1484 = vmatprep.mubr.f32.mxu0 0.0
    %1485 = vmatmul.mubr.f32.gmra.mxu0 %v1418
    %v1486 = vpop.f32.mrf.mxu0
    %v1487 = vadd.f32 %v1413, %v1486
    %v1488 = vpop.f32.mrf.mxu0
    %1489 = vdwg.mxu0
    %v1490 = vadd.f32 %v1487, %v58
    %v1491 = vtanh.pop %v1490
    %1492 = vmatprep.subr.mxu0 0.0
    %1493 = vmatpush1.msra.mxu0 0.0
    %1494 = vmatprep.subr.mxu0 0.0
    %1495 = vmatpush1.msra.mxu0 0.0
    %1496 = vmatprep.subr.mxu0 0.0
    %1497 = vmatpush1.msra.mxu0 0.0
    %1498 = vmatprep.subr.mxu0 0.0
    %1499 = vmatpush1.msra.mxu0 0.0
    %1500 = vmatprep.subr.mxu0 0.0
    %1501 = vmatpush1.msra.mxu0 0.0
    %1502 = vmatprep.subr.mxu0 0.0
    %1503 = vmatpush1.msra.mxu0 0.0
    %1504 = vmatprep.subr.mxu0 0.0
    %1505 = vmatpush1.msra.mxu0 0.0
    %1506 = vmatprep.subr.mxu0 0.0
    %1507 = vmatpush1.msra.mxu0 0.0
    %1508 = vmatprep.subr.mxu0 0.0
    %1509 = vmatpush1.msra.mxu0 0.0
    %1510 = vmatprep.subr.mxu0 0.0
    %1511 = vmatpush1.msra.mxu0 0.0
    %1512 = vmatprep.subr.mxu0 0.0
    %1513 = vmatpush1.msra.mxu0 0.0
    %1514 = vmatprep.subr.mxu0 0.0
    %1515 = vmatpush1.msra.mxu0 0.0
    %1516 = vmatprep.subr.mxu0 0.0
    %1517 = vmatpush1.msra.mxu0 %v48
    %1518 = vmatprep.subr.mxu0 0.0
    %1519 = vmatpush1.msra.mxu0 %v47
    %1520 = vmatprep.subr.mxu0 0.0
    %1521 = vmatpush1.msra.mxu0 %v46
    %1522 = vmatprep.subr.mxu0 0.0
    %1523 = vmatpush1.msra.mxu0 %v45
    %1524 = vmatprep.subr.mxu0 0.0
    %1525 = vmatpush2.msra.mxu0 0.0
    %1526 = vmatprep.subr.mxu0 0.0
    %1527 = vmatpush2.msra.mxu0 0.0
    %1528 = vmatprep.subr.mxu0 0.0
    %1529 = vmatpush2.msra.mxu0 0.0
    %1530 = vmatprep.subr.mxu0 0.0
    %1531 = vmatpush2.msra.mxu0 0.0
    %1532 = vmatprep.subr.mxu0 0.0
    %1533 = vmatpush2.msra.mxu0 0.0
    %1534 = vmatprep.subr.mxu0 0.0
    %1535 = vmatpush2.msra.mxu0 0.0
    %1536 = vmatprep.subr.mxu0 0.0
    %1537 = vmatpush2.msra.mxu0 0.0
    %1538 = vmatprep.subr.mxu0 0.0
    %1539 = vmatpush2.msra.mxu0 0.0
    %1540 = vmatprep.subr.mxu0 0.0
    %1541 = vmatpush2.msra.mxu0 0.0
    %1542 = vmatprep.subr.mxu0 0.0
    %1543 = vmatpush2.msra.mxu0 0.0
    %1544 = vmatprep.subr.mxu0 0.0
    %1545 = vmatpush2.msra.mxu0 0.0
    %1546 = vmatprep.subr.mxu0 0.0
    %1547 = vmatpush2.msra.mxu0 0.0
    %1548 = vmatprep.subr.mxu0 0.0
    %1549 = vmatpush2.msra.mxu0 0.0
    %1550 = vmatprep.subr.mxu0 0.0
    %1551 = vmatpush2.msra.mxu0 0.0
    %1552 = vmatprep.subr.mxu0 0.0
    %1553 = vmatpush2.msra.mxu0 0.0
    %1554 = vmatprep.subr.mxu0 0.0
    %1555 = vmatpush2.msra.mxu0 0.0
    %1556 = vmatprep.mubr.f32.mxu0 0.0
    %1557 = vmatmul.mubr.f32.gmra.mxu0 %v1418
    %v1558 = vpop.f32.mrf.mxu0
    %v1559 = vadd.f32 %v59, %v1558
    %v1560 = vpop.f32.mrf.mxu0
    %1561 = vdwg.mxu0
    %v1562 = vtanh.pop %v1559
    %v1564 = vsel %vm151, %v1491, 0
    %1566 = vmatprep.subr.mxu0 0.0
    %1567 = vmatpush1.msra.mxu0 0.0
    %1568 = vmatprep.subr.mxu0 0.0
    %1569 = vmatpush1.msra.mxu0 0.0
    %1570 = vmatprep.subr.mxu0 0.0
    %1571 = vmatpush1.msra.mxu0 0.0
    %1572 = vmatprep.subr.mxu0 0.0
    %1573 = vmatpush1.msra.mxu0 0.0
    %1574 = vmatprep.subr.mxu0 0.0
    %1575 = vmatpush1.msra.mxu0 0.0
    %1576 = vmatprep.subr.mxu0 0.0
    %1577 = vmatpush1.msra.mxu0 0.0
    %1578 = vmatprep.subr.mxu0 0.0
    %1579 = vmatpush1.msra.mxu0 0.0
    %1580 = vmatprep.subr.mxu0 0.0
    %1581 = vmatpush1.msra.mxu0 0.0
    %1582 = vmatprep.subr.mxu0 0.0
    %1583 = vmatpush1.msra.mxu0 0.0
    %1584 = vmatprep.subr.mxu0 0.0
    %1585 = vmatpush1.msra.mxu0 0.0
    %1586 = vmatprep.subr.mxu0 0.0
    %1587 = vmatpush1.msra.mxu0 0.0
    %1588 = vmatprep.subr.mxu0 0.0
    %1589 = vmatpush1.msra.mxu0 0.0
    %1590 = vmatprep.subr.mxu0 0.0
    %1591 = vmatpush1.msra.mxu0 %v56
    %1592 = vmatprep.subr.mxu0 0.0
    %1593 = vmatpush1.msra.mxu0 %v55
    %1594 = vmatprep.subr.mxu0 0.0
    %1595 = vmatpush1.msra.mxu0 %v54
    %1596 = vmatprep.subr.mxu0 0.0
    %1597 = vmatpush1.msra.mxu0 %v53
    %1598 = vmatprep.subr.mxu0 0.0
    %1599 = vmatpush2.msra.mxu0 0.0
    %1600 = vmatprep.subr.mxu0 0.0
    %1601 = vmatpush2.msra.mxu0 0.0
    %1602 = vmatprep.subr.mxu0 0.0
    %1603 = vmatpush2.msra.mxu0 0.0
    %1604 = vmatprep.subr.mxu0 0.0
    %1605 = vmatpush2.msra.mxu0 0.0
    %1606 = vmatprep.subr.mxu0 0.0
    %1607 = vmatpush2.msra.mxu0 0.0
    %1608 = vmatprep.subr.mxu0 0.0
    %1609 = vmatpush2.msra.mxu0 0.0
    %1610 = vmatprep.subr.mxu0 0.0
    %1611 = vmatpush2.msra.mxu0 0.0
    %1612 = vmatprep.subr.mxu0 0.0
    %1613 = vmatpush2.msra.mxu0 0.0
    %1614 = vmatprep.subr.mxu0 0.0
    %1615 = vmatpush2.msra.mxu0 0.0
    %1616 = vmatprep.subr.mxu0 0.0
    %1617 = vmatpush2.msra.mxu0 0.0
    %1618 = vmatprep.subr.mxu0 0.0
    %1619 = vmatpush2.msra.mxu0 0.0
    %1620 = vmatprep.subr.mxu0 0.0
    %1621 = vmatpush2.msra.mxu0 0.0
    %1622 = vmatprep.subr.mxu0 0.0
    %1623 = vmatpush2.msra.mxu0 0.0
    %1624 = vmatprep.subr.mxu0 0.0
    %1625 = vmatpush2.msra.mxu0 0.0
    %1626 = vmatprep.subr.mxu0 0.0
    %1627 = vmatpush2.msra.mxu0 0.0
    %1628 = vmatprep.subr.mxu0 0.0
    %1629 = vmatpush2.msra.mxu0 0.0
    %1630 = vmatprep.mubr.f32.mxu0 0.0
    %1631 = vmatmul.mubr.f32.gmra.mxu0 %v1564
    %v1632 = vpop.f32.mrf.mxu0
    %v1633 = vadd.f32 0.0, %v1632
    %v1634 = vpop.f32.mrf.mxu0
    %1635 = vdwg.mxu0
    %v1637 = vsel %vm151, %v1562, 0
    %1639 = vmatprep.subr.mxu0 0.0
    %1640 = vmatpush1.msra.mxu0 0.0
    %1641 = vmatprep.subr.mxu0 0.0
    %1642 = vmatpush1.msra.mxu0 0.0
    %1643 = vmatprep.subr.mxu0 0.0
    %1644 = vmatpush1.msra.mxu0 0.0
    %1645 = vmatprep.subr.mxu0 0.0
    %1646 = vmatpush1.msra.mxu0 0.0
    %1647 = vmatprep.subr.mxu0 0.0
    %1648 = vmatpush1.msra.mxu0 0.0
    %1649 = vmatprep.subr.mxu0 0.0
    %1650 = vmatpush1.msra.mxu0 0.0
    %1651 = vmatprep.subr.mxu0 0.0
    %1652 = vmatpush1.msra.mxu0 0.0
    %1653 = vmatprep.subr.mxu0 0.0
    %1654 = vmatpush1.msra.mxu0 0.0
    %1655 = vmatprep.subr.mxu0 0.0
    %1656 = vmatpush1.msra.mxu0 0.0
    %1657 = vmatprep.subr.mxu0 0.0
    %1658 = vmatpush1.msra.mxu0 0.0
    %1659 = vmatprep.subr.mxu0 0.0
    %1660 = vmatpush1.msra.mxu0 0.0
    %1661 = vmatprep.subr.mxu0 0.0
    %1662 = vmatpush1.msra.mxu0 0.0
    %1663 = vmatprep.subr.mxu0 0.0
    %1664 = vmatpush1.msra.mxu0 %v52
    %1665 = vmatprep.subr.mxu0 0.0
    %1666 = vmatpush1.msra.mxu0 %v51
    %1667 = vmatprep.subr.mxu0 0.0
    %1668 = vmatpush1.msra.mxu0 %v50
    %1669 = vmatprep.subr.mxu0 0.0
    %1670 = vmatpush1.msra.mxu0 %v49
    %1671 = vmatprep.subr.mxu0 0.0
    %1672 = vmatpush2.msra.mxu0 0.0
    %1673 = vmatprep.subr.mxu0 0.0
    %1674 = vmatpush2.msra.mxu0 0.0
    %1675 = vmatprep.subr.mxu0 0.0
    %1676 = vmatpush2.msra.mxu0 0.0
    %1677 = vmatprep.subr.mxu0 0.0
    %1678 = vmatpush2.msra.mxu0 0.0
    %1679 = vmatprep.subr.mxu0 0.0
    %1680 = vmatpush2.msra.mxu0 0.0
    %1681 = vmatprep.subr.mxu0 0.0
    %1682 = vmatpush2.msra.mxu0 0.0
    %1683 = vmatprep.subr.mxu0 0.0
    %1684 = vmatpush2.msra.mxu0 0.0
    %1685 = vmatprep.subr.mxu0 0.0
    %1686 = vmatpush2.msra.mxu0 0.0
    %1687 = vmatprep.subr.mxu0 0.0
    %1688 = vmatpush2.msra.mxu0 0.0
    %1689 = vmatprep.subr.mxu0 0.0
    %1690 = vmatpush2.msra.mxu0 0.0
    %1691 = vmatprep.subr.mxu0 0.0
    %1692 = vmatpush2.msra.mxu0 0.0
    %1693 = vmatprep.subr.mxu0 0.0
    %1694 = vmatpush2.msra.mxu0 0.0
    %1695 = vmatprep.subr.mxu0 0.0
    %1696 = vmatpush2.msra.mxu0 0.0
    %1697 = vmatprep.subr.mxu0 0.0
    %1698 = vmatpush2.msra.mxu0 0.0
    %1699 = vmatprep.subr.mxu0 0.0
    %1700 = vmatpush2.msra.mxu0 0.0
    %1701 = vmatprep.subr.mxu0 0.0
    %1702 = vmatpush2.msra.mxu0 0.0
    %1703 = vmatprep.mubr.f32.mxu0 0.0
    %1704 = vmatmul.mubr.f32.gmra.mxu0 %v1637
    %v1705 = vpop.f32.mrf.mxu0
    %v1706 = vadd.f32 %v1633, %v1705
    %v1707 = vpop.f32.mrf.mxu0
    %1708 = vdwg.mxu0
    %v1709 = vadd.f32 %v1706, %v60
    %v1710 = vtanh.pop %v1709
    %1711 = vmatprep.subr.mxu0 0.0
    %1712 = vmatpush1.msra.mxu0 0.0
    %1713 = vmatprep.subr.mxu0 0.0
    %1714 = vmatpush1.msra.mxu0 0.0
    %1715 = vmatprep.subr.mxu0 0.0
    %1716 = vmatpush1.msra.mxu0 0.0
    %1717 = vmatprep.subr.mxu0 0.0
    %1718 = vmatpush1.msra.mxu0 0.0
    %1719 = vmatprep.subr.mxu0 0.0
    %1720 = vmatpush1.msra.mxu0 0.0
    %1721 = vmatprep.subr.mxu0 0.0
    %1722 = vmatpush1.msra.mxu0 0.0
    %1723 = vmatprep.subr.mxu0 0.0
    %1724 = vmatpush1.msra.mxu0 0.0
    %1725 = vmatprep.subr.mxu0 0.0
    %1726 = vmatpush1.msra.mxu0 0.0
    %1727 = vmatprep.subr.mxu0 0.0
    %1728 = vmatpush1.msra.mxu0 0.0
    %1729 = vmatprep.subr.mxu0 0.0
    %1730 = vmatpush1.msra.mxu0 0.0
    %1731 = vmatprep.subr.mxu0 0.0
    %1732 = vmatpush1.msra.mxu0 0.0
    %1733 = vmatprep.subr.mxu0 0.0
    %1734 = vmatpush1.msra.mxu0 0.0
    %1735 = vmatprep.subr.mxu0 0.0
    %1736 = vmatpush1.msra.mxu0 %v48
    %1737 = vmatprep.subr.mxu0 0.0
    %1738 = vmatpush1.msra.mxu0 %v47
    %1739 = vmatprep.subr.mxu0 0.0
    %1740 = vmatpush1.msra.mxu0 %v46
    %1741 = vmatprep.subr.mxu0 0.0
    %1742 = vmatpush1.msra.mxu0 %v45
    %1743 = vmatprep.subr.mxu0 0.0
    %1744 = vmatpush2.msra.mxu0 0.0
    %1745 = vmatprep.subr.mxu0 0.0
    %1746 = vmatpush2.msra.mxu0 0.0
    %1747 = vmatprep.subr.mxu0 0.0
    %1748 = vmatpush2.msra.mxu0 0.0
    %1749 = vmatprep.subr.mxu0 0.0
    %1750 = vmatpush2.msra.mxu0 0.0
    %1751 = vmatprep.subr.mxu0 0.0
    %1752 = vmatpush2.msra.mxu0 0.0
    %1753 = vmatprep.subr.mxu0 0.0
    %1754 = vmatpush2.msra.mxu0 0.0
    %1755 = vmatprep.subr.mxu0 0.0
    %1756 = vmatpush2.msra.mxu0 0.0
    %1757 = vmatprep.subr.mxu0 0.0
    %1758 = vmatpush2.msra.mxu0 0.0
    %1759 = vmatprep.subr.mxu0 0.0
    %1760 = vmatpush2.msra.mxu0 0.0
    %1761 = vmatprep.subr.mxu0 0.0
    %1762 = vmatpush2.msra.mxu0 0.0
    %1763 = vmatprep.subr.mxu0 0.0
    %1764 = vmatpush2.msra.mxu0 0.0
    %1765 = vmatprep.subr.mxu0 0.0
    %1766 = vmatpush2.msra.mxu0 0.0
    %1767 = vmatprep.subr.mxu0 0.0
    %1768 = vmatpush2.msra.mxu0 0.0
    %1769 = vmatprep.subr.mxu0 0.0
    %1770 = vmatpush2.msra.mxu0 0.0
    %1771 = vmatprep.subr.mxu0 0.0
    %1772 = vmatpush2.msra.mxu0 0.0
    %1773 = vmatprep.subr.mxu0 0.0
    %1774 = vmatpush2.msra.mxu0 0.0
    %1775 = vmatprep.mubr.f32.mxu0 0.0
    %1776 = vmatmul.mubr.f32.gmra.mxu0 %v1637
    %v1777 = vpop.f32.mrf.mxu0
    %v1778 = vadd.f32 %v59, %v1777
    %v1779 = vpop.f32.mrf.mxu0
    %1780 = vdwg.mxu0
    %v1781 = vtanh.pop %v1778
    %v1783 = vsel %vm151, %v1710, 0
    %1785 = vmatprep.subr.mxu0 0.0
    %1786 = vmatpush1.msra.mxu0 0.0
    %1787 = vmatprep.subr.mxu0 0.0
    %1788 = vmatpush1.msra.mxu0 0.0
    %1789 = vmatprep.subr.mxu0 0.0
    %1790 = vmatpush1.msra.mxu0 0.0
    %1791 = vmatprep.subr.mxu0 0.0
    %1792 = vmatpush1.msra.mxu0 0.0
    %1793 = vmatprep.subr.mxu0 0.0
    %1794 = vmatpush1.msra.mxu0 0.0
    %1795 = vmatprep.subr.mxu0 0.0
    %1796 = vmatpush1.msra.mxu0 0.0
    %1797 = vmatprep.subr.mxu0 0.0
    %1798 = vmatpush1.msra.mxu0 0.0
    %1799 = vmatprep.subr.mxu0 0.0
    %1800 = vmatpush1.msra.mxu0 0.0
    %1801 = vmatprep.subr.mxu0 0.0
    %1802 = vmatpush1.msra.mxu0 0.0
    %1803 = vmatprep.subr.mxu0 0.0
    %1804 = vmatpush1.msra.mxu0 0.0
    %1805 = vmatprep.subr.mxu0 0.0
    %1806 = vmatpush1.msra.mxu0 0.0
    %1807 = vmatprep.subr.mxu0 0.0
    %1808 = vmatpush1.msra.mxu0 0.0
    %1809 = vmatprep.subr.mxu0 0.0
    %1810 = vmatpush1.msra.mxu0 %v56
    %1811 = vmatprep.subr.mxu0 0.0
    %1812 = vmatpush1.msra.mxu0 %v55
    %1813 = vmatprep.subr.mxu0 0.0
    %1814 = vmatpush1.msra.mxu0 %v54
    %1815 = vmatprep.subr.mxu0 0.0
    %1816 = vmatpush1.msra.mxu0 %v53
    %1817 = vmatprep.subr.mxu0 0.0
    %1818 = vmatpush2.msra.mxu0 0.0
    %1819 = vmatprep.subr.mxu0 0.0
    %1820 = vmatpush2.msra.mxu0 0.0
    %1821 = vmatprep.subr.mxu0 0.0
    %1822 = vmatpush2.msra.mxu0 0.0
    %1823 = vmatprep.subr.mxu0 0.0
    %1824 = vmatpush2.msra.mxu0 0.0
    %1825 = vmatprep.subr.mxu0 0.0
    %1826 = vmatpush2.msra.mxu0 0.0
    %1827 = vmatprep.subr.mxu0 0.0
    %1828 = vmatpush2.msra.mxu0 0.0
    %1829 = vmatprep.subr.mxu0 0.0
    %1830 = vmatpush2.msra.mxu0 0.0
    %1831 = vmatprep.subr.mxu0 0.0
    %1832 = vmatpush2.msra.mxu0 0.0
    %1833 = vmatprep.subr.mxu0 0.0
    %1834 = vmatpush2.msra.mxu0 0.0
    %1835 = vmatprep.subr.mxu0 0.0
    %1836 = vmatpush2.msra.mxu0 0.0
    %1837 = vmatprep.subr.mxu0 0.0
    %1838 = vmatpush2.msra.mxu0 0.0
    %1839 = vmatprep.subr.mxu0 0.0
    %1840 = vmatpush2.msra.mxu0 0.0
    %1841 = vmatprep.subr.mxu0 0.0
    %1842 = vmatpush2.msra.mxu0 0.0
    %1843 = vmatprep.subr.mxu0 0.0
    %1844 = vmatpush2.msra.mxu0 0.0
    %1845 = vmatprep.subr.mxu0 0.0
    %1846 = vmatpush2.msra.mxu0 0.0
    %1847 = vmatprep.subr.mxu0 0.0
    %1848 = vmatpush2.msra.mxu0 0.0
    %1849 = vmatprep.mubr.f32.mxu0 0.0
    %1850 = vmatmul.mubr.f32.gmra.mxu0 %v1783
    %v1851 = vpop.f32.mrf.mxu0
    %v1852 = vadd.f32 0.0, %v1851
    %v1853 = vpop.f32.mrf.mxu0
    %1854 = vdwg.mxu0
    %v1856 = vsel %vm151, %v1781, 0
    %1858 = vmatprep.subr.mxu0 0.0
    %1859 = vmatpush1.msra.mxu0 0.0
    %1860 = vmatprep.subr.mxu0 0.0
    %1861 = vmatpush1.msra.mxu0 0.0
    %1862 = vmatprep.subr.mxu0 0.0
    %1863 = vmatpush1.msra.mxu0 0.0
    %1864 = vmatprep.subr.mxu0 0.0
    %1865 = vmatpush1.msra.mxu0 0.0
    %1866 = vmatprep.subr.mxu0 0.0
    %1867 = vmatpush1.msra.mxu0 0.0
    %1868 = vmatprep.subr.mxu0 0.0
    %1869 = vmatpush1.msra.mxu0 0.0
    %1870 = vmatprep.subr.mxu0 0.0
    %1871 = vmatpush1.msra.mxu0 0.0
    %1872 = vmatprep.subr.mxu0 0.0
    %1873 = vmatpush1.msra.mxu0 0.0
    %1874 = vmatprep.subr.mxu0 0.0
    %1875 = vmatpush1.msra.mxu0 0.0
    %1876 = vmatprep.subr.mxu0 0.0
    %1877 = vmatpush1.msra.mxu0 0.0
    %1878 = vmatprep.subr.mxu0 0.0
    %1879 = vmatpush1.msra.mxu0 0.0
    %1880 = vmatprep.subr.mxu0 0.0
    %1881 = vmatpush1.msra.mxu0 0.0
    %1882 = vmatprep.subr.mxu0 0.0
    %1883 = vmatpush1.msra.mxu0 %v52
    %1884 = vmatprep.subr.mxu0 0.0
    %1885 = vmatpush1.msra.mxu0 %v51
    %1886 = vmatprep.subr.mxu0 0.0
    %1887 = vmatpush1.msra.mxu0 %v50
    %1888 = vmatprep.subr.mxu0 0.0
    %1889 = vmatpush1.msra.mxu0 %v49
    %1890 = vmatprep.subr.mxu0 0.0
    %1891 = vmatpush2.msra.mxu0 0.0
    %1892 = vmatprep.subr.mxu0 0.0
    %1893 = vmatpush2.msra.mxu0 0.0
    %1894 = vmatprep.subr.mxu0 0.0
    %1895 = vmatpush2.msra.mxu0 0.0
    %1896 = vmatprep.subr.mxu0 0.0
    %1897 = vmatpush2.msra.mxu0 0.0
    %1898 = vmatprep.subr.mxu0 0.0
    %1899 = vmatpush2.msra.mxu0 0.0
    %1900 = vmatprep.subr.mxu0 0.0
    %1901 = vmatpush2.msra.mxu0 0.0
    %1902 = vmatprep.subr.mxu0 0.0
    %1903 = vmatpush2.msra.mxu0 0.0
    %1904 = vmatprep.subr.mxu0 0.0
    %1905 = vmatpush2.msra.mxu0 0.0
    %1906 = vmatprep.subr.mxu0 0.0
    %1907 = vmatpush2.msra.mxu0 0.0
    %1908 = vmatprep.subr.mxu0 0.0
    %1909 = vmatpush2.msra.mxu0 0.0
    %1910 = vmatprep.subr.mxu0 0.0
    %1911 = vmatpush2.msra.mxu0 0.0
    %1912 = vmatprep.subr.mxu0 0.0
    %1913 = vmatpush2.msra.mxu0 0.0
    %1914 = vmatprep.subr.mxu0 0.0
    %1915 = vmatpush2.msra.mxu0 0.0
    %1916 = vmatprep.subr.mxu0 0.0
    %1917 = vmatpush2.msra.mxu0 0.0
    %1918 = vmatprep.subr.mxu0 0.0
    %1919 = vmatpush2.msra.mxu0 0.0
    %1920 = vmatprep.subr.mxu0 0.0
    %1921 = vmatpush2.msra.mxu0 0.0
    %1922 = vmatprep.mubr.f32.mxu0 0.0
    %1923 = vmatmul.mubr.f32.gmra.mxu0 %v1856
    %v1924 = vpop.f32.mrf.mxu0
    %v1925 = vadd.f32 %v1852, %v1924
    %v1926 = vpop.f32.mrf.mxu0
    %1927 = vdwg.mxu0
    %v1928 = vadd.f32 %v1925, %v60
    %v1929 = vtanh.pop %v1928
    %1930 = vmatprep.subr.mxu0 0.0
    %1931 = vmatpush1.msra.mxu0 0.0
    %1932 = vmatprep.subr.mxu0 0.0
    %1933 = vmatpush1.msra.mxu0 0.0
    %1934 = vmatprep.subr.mxu0 0.0
    %1935 = vmatpush1.msra.mxu0 0.0
    %1936 = vmatprep.subr.mxu0 0.0
    %1937 = vmatpush1.msra.mxu0 0.0
    %1938 = vmatprep.subr.mxu0 0.0
    %1939 = vmatpush1.msra.mxu0 0.0
    %1940 = vmatprep.subr.mxu0 0.0
    %1941 = vmatpush1.msra.mxu0 0.0
    %1942 = vmatprep.subr.mxu0 0.0
    %1943 = vmatpush1.msra.mxu0 0.0
    %1944 = vmatprep.subr.mxu0 0.0
    %1945 = vmatpush1.msra.mxu0 0.0
    %1946 = vmatprep.subr.mxu0 0.0
    %1947 = vmatpush1.msra.mxu0 0.0
    %1948 = vmatprep.subr.mxu0 0.0
    %1949 = vmatpush1.msra.mxu0 0.0
    %1950 = vmatprep.subr.mxu0 0.0
    %1951 = vmatpush1.msra.mxu0 0.0
    %1952 = vmatprep.subr.mxu0 0.0
    %1953 = vmatpush1.msra.mxu0 0.0
    %1954 = vmatprep.subr.mxu0 0.0
    %1955 = vmatpush1.msra.mxu0 %v48
    %1956 = vmatprep.subr.mxu0 0.0
    %1957 = vmatpush1.msra.mxu0 %v47
    %1958 = vmatprep.subr.mxu0 0.0
    %1959 = vmatpush1.msra.mxu0 %v46
    %1960 = vmatprep.subr.mxu0 0.0
    %1961 = vmatpush1.msra.mxu0 %v45
    %1962 = vmatprep.subr.mxu0 0.0
    %1963 = vmatpush2.msra.mxu0 0.0
    %1964 = vmatprep.subr.mxu0 0.0
    %1965 = vmatpush2.msra.mxu0 0.0
    %1966 = vmatprep.subr.mxu0 0.0
    %1967 = vmatpush2.msra.mxu0 0.0
    %1968 = vmatprep.subr.mxu0 0.0
    %1969 = vmatpush2.msra.mxu0 0.0
    %1970 = vmatprep.subr.mxu0 0.0
    %1971 = vmatpush2.msra.mxu0 0.0
    %1972 = vmatprep.subr.mxu0 0.0
    %1973 = vmatpush2.msra.mxu0 0.0
    %1974 = vmatprep.subr.mxu0 0.0
    %1975 = vmatpush2.msra.mxu0 0.0
    %1976 = vmatprep.subr.mxu0 0.0
    %1977 = vmatpush2.msra.mxu0 0.0
    %1978 = vmatprep.subr.mxu0 0.0
    %1979 = vmatpush2.msra.mxu0 0.0
    %1980 = vmatprep.subr.mxu0 0.0
    %1981 = vmatpush2.msra.mxu0 0.0
    %1982 = vmatprep.subr.mxu0 0.0
    %1983 = vmatpush2.msra.mxu0 0.0
    %1984 = vmatprep.subr.mxu0 0.0
    %1985 = vmatpush2.msra.mxu0 0.0
    %1986 = vmatprep.subr.mxu0 0.0
    %1987 = vmatpush2.msra.mxu0 0.0
    %1988 = vmatprep.subr.mxu0 0.0
    %1989 = vmatpush2.msra.mxu0 0.0
    %1990 = vmatprep.subr.mxu0 0.0
    %1991 = vmatpush2.msra.mxu0 0.0
    %1992 = vmatprep.subr.mxu0 0.0
    %1993 = vmatpush2.msra.mxu0 0.0
    %1994 = vmatprep.mubr.f32.mxu0 0.0
    %1995 = vmatmul.mubr.f32.gmra.mxu0 %v1856
    %v1996 = vpop.f32.mrf.mxu0
    %v1997 = vadd.f32 %v59, %v1996
    %v1998 = vpop.f32.mrf.mxu0
    %1999 = vdwg.mxu0
    %v2000 = vtanh.pop %v1997
    %v2002 = vsel %vm151, %v1929, 0
    %2004 = vmatprep.subr.mxu0 0.0
    %2005 = vmatpush1.msra.mxu0 0.0
    %2006 = vmatprep.subr.mxu0 0.0
    %2007 = vmatpush1.msra.mxu0 0.0
    %2008 = vmatprep.subr.mxu0 0.0
    %2009 = vmatpush1.msra.mxu0 0.0
    %2010 = vmatprep.subr.mxu0 0.0
    %2011 = vmatpush1.msra.mxu0 0.0
    %2012 = vmatprep.subr.mxu0 0.0
    %2013 = vmatpush1.msra.mxu0 0.0
    %2014 = vmatprep.subr.mxu0 0.0
    %2015 = vmatpush1.msra.mxu0 0.0
    %2016 = vmatprep.subr.mxu0 0.0
    %2017 = vmatpush1.msra.mxu0 0.0
    %2018 = vmatprep.subr.mxu0 0.0
    %2019 = vmatpush1.msra.mxu0 0.0
    %2020 = vmatprep.subr.mxu0 0.0
    %2021 = vmatpush1.msra.mxu0 0.0
    %2022 = vmatprep.subr.mxu0 0.0
    %2023 = vmatpush1.msra.mxu0 0.0
    %2024 = vmatprep.subr.mxu0 0.0
    %2025 = vmatpush1.msra.mxu0 0.0
    %2026 = vmatprep.subr.mxu0 0.0
    %2027 = vmatpush1.msra.mxu0 0.0
    %2028 = vmatprep.subr.mxu0 0.0
    %2029 = vmatpush1.msra.mxu0 %v56
    %2030 = vmatprep.subr.mxu0 0.0
    %2031 = vmatpush1.msra.mxu0 %v55
    %2032 = vmatprep.subr.mxu0 0.0
    %2033 = vmatpush1.msra.mxu0 %v54
    %2034 = vmatprep.subr.mxu0 0.0
    %2035 = vmatpush1.msra.mxu0 %v53
    %2036 = vmatprep.subr.mxu0 0.0
    %2037 = vmatpush2.msra.mxu0 0.0
    %2038 = vmatprep.subr.mxu0 0.0
    %2039 = vmatpush2.msra.mxu0 0.0
    %2040 = vmatprep.subr.mxu0 0.0
    %2041 = vmatpush2.msra.mxu0 0.0
    %2042 = vmatprep.subr.mxu0 0.0
    %2043 = vmatpush2.msra.mxu0 0.0
    %2044 = vmatprep.subr.mxu0 0.0
    %2045 = vmatpush2.msra.mxu0 0.0
    %2046 = vmatprep.subr.mxu0 0.0
    %2047 = vmatpush2.msra.mxu0 0.0
    %2048 = vmatprep.subr.mxu0 0.0
    %2049 = vmatpush2.msra.mxu0 0.0
    %2050 = vmatprep.subr.mxu0 0.0
    %2051 = vmatpush2.msra.mxu0 0.0
    %2052 = vmatprep.subr.mxu0 0.0
    %2053 = vmatpush2.msra.mxu0 0.0
    %2054 = vmatprep.subr.mxu0 0.0
    %2055 = vmatpush2.msra.mxu0 0.0
    %2056 = vmatprep.subr.mxu0 0.0
    %2057 = vmatpush2.msra.mxu0 0.0
    %2058 = vmatprep.subr.mxu0 0.0
    %2059 = vmatpush2.msra.mxu0 0.0
    %2060 = vmatprep.subr.mxu0 0.0
    %2061 = vmatpush2.msra.mxu0 0.0
    %2062 = vmatprep.subr.mxu0 0.0
    %2063 = vmatpush2.msra.mxu0 0.0
    %2064 = vmatprep.subr.mxu0 0.0
    %2065 = vmatpush2.msra.mxu0 0.0
    %2066 = vmatprep.subr.mxu0 0.0
    %2067 = vmatpush2.msra.mxu0 0.0
    %2068 = vmatprep.mubr.f32.mxu0 0.0
    %2069 = vmatmul.mubr.f32.gmra.mxu0 %v2002
    %v2070 = vpop.f32.mrf.mxu0
    %v2071 = vadd.f32 0.0, %v2070
    %v2072 = vpop.f32.mrf.mxu0
    %2073 = vdwg.mxu0
    %v2075 = vsel %vm151, %v2000, 0
    %2077 = vmatprep.subr.mxu0 0.0
    %2078 = vmatpush1.msra.mxu0 0.0
    %2079 = vmatprep.subr.mxu0 0.0
    %2080 = vmatpush1.msra.mxu0 0.0
    %2081 = vmatprep.subr.mxu0 0.0
    %2082 = vmatpush1.msra.mxu0 0.0
    %2083 = vmatprep.subr.mxu0 0.0
    %2084 = vmatpush1.msra.mxu0 0.0
    %2085 = vmatprep.subr.mxu0 0.0
    %2086 = vmatpush1.msra.mxu0 0.0
    %2087 = vmatprep.subr.mxu0 0.0
    %2088 = vmatpush1.msra.mxu0 0.0
    %2089 = vmatprep.subr.mxu0 0.0
    %2090 = vmatpush1.msra.mxu0 0.0
    %2091 = vmatprep.subr.mxu0 0.0
    %2092 = vmatpush1.msra.mxu0 0.0
    %2093 = vmatprep.subr.mxu0 0.0
    %2094 = vmatpush1.msra.mxu0 0.0
    %2095 = vmatprep.subr.mxu0 0.0
    %2096 = vmatpush1.msra.mxu0 0.0
    %2097 = vmatprep.subr.mxu0 0.0
    %2098 = vmatpush1.msra.mxu0 0.0
    %2099 = vmatprep.subr.mxu0 0.0
    %2100 = vmatpush1.msra.mxu0 0.0
    %2101 = vmatprep.subr.mxu0 0.0
    %2102 = vmatpush1.msra.mxu0 %v52
    %2103 = vmatprep.subr.mxu0 0.0
    %2104 = vmatpush1.msra.mxu0 %v51
    %2105 = vmatprep.subr.mxu0 0.0
    %2106 = vmatpush1.msra.mxu0 %v50
    %2107 = vmatprep.subr.mxu0 0.0
    %2108 = vmatpush1.msra.mxu0 %v49
    %2109 = vmatprep.subr.mxu0 0.0
    %2110 = vmatpush2.msra.mxu0 0.0
    %2111 = vmatprep.subr.mxu0 0.0
    %2112 = vmatpush2.msra.mxu0 0.0
    %2113 = vmatprep.subr.mxu0 0.0
    %2114 = vmatpush2.msra.mxu0 0.0
    %2115 = vmatprep.subr.mxu0 0.0
    %2116 = vmatpush2.msra.mxu0 0.0
    %2117 = vmatprep.subr.mxu0 0.0
    %2118 = vmatpush2.msra.mxu0 0.0
    %2119 = vmatprep.subr.mxu0 0.0
    %2120 = vmatpush2.msra.mxu0 0.0
    %2121 = vmatprep.subr.mxu0 0.0
    %2122 = vmatpush2.msra.mxu0 0.0
    %2123 = vmatprep.subr.mxu0 0.0
    %2124 = vmatpush2.msra.mxu0 0.0
    %2125 = vmatprep.subr.mxu0 0.0
    %2126 = vmatpush2.msra.mxu0 0.0
    %2127 = vmatprep.subr.mxu0 0.0
    %2128 = vmatpush2.msra.mxu0 0.0
    %2129 = vmatprep.subr.mxu0 0.0
    %2130 = vmatpush2.msra.mxu0 0.0
    %2131 = vmatprep.subr.mxu0 0.0
    %2132 = vmatpush2.msra.mxu0 0.0
    %2133 = vmatprep.subr.mxu0 0.0
    %2134 = vmatpush2.msra.mxu0 0.0
    %2135 = vmatprep.subr.mxu0 0.0
    %2136 = vmatpush2.msra.mxu0 0.0
    %2137 = vmatprep.subr.mxu0 0.0
    %2138 = vmatpush2.msra.mxu0 0.0
    %2139 = vmatprep.subr.mxu0 0.0
    %2140 = vmatpush2.msra.mxu0 0.0
    %2141 = vmatprep.mubr.f32.mxu0 0.0
    %2142 = vmatmul.mubr.f32.gmra.mxu0 %v2075
    %v2143 = vpop.f32.mrf.mxu0
    %v2144 = vadd.f32 %v2071, %v2143
    %v2145 = vpop.f32.mrf.mxu0
    %2146 = vdwg.mxu0
    %v2147 = vadd.f32 %v2144, %v60
    %v2148 = vtanh.pop %v2147
    %2149 = vmatprep.subr.mxu0 0.0
    %2150 = vmatpush1.msra.mxu0 0.0
    %2151 = vmatprep.subr.mxu0 0.0
    %2152 = vmatpush1.msra.mxu0 0.0
    %2153 = vmatprep.subr.mxu0 0.0
    %2154 = vmatpush1.msra.mxu0 0.0
    %2155 = vmatprep.subr.mxu0 0.0
    %2156 = vmatpush1.msra.mxu0 0.0
    %2157 = vmatprep.subr.mxu0 0.0
    %2158 = vmatpush1.msra.mxu0 0.0
    %2159 = vmatprep.subr.mxu0 0.0
    %2160 = vmatpush1.msra.mxu0 0.0
    %2161 = vmatprep.subr.mxu0 0.0
    %2162 = vmatpush1.msra.mxu0 0.0
    %2163 = vmatprep.subr.mxu0 0.0
    %2164 = vmatpush1.msra.mxu0 0.0
    %2165 = vmatprep.subr.mxu0 0.0
    %2166 = vmatpush1.msra.mxu0 0.0
    %2167 = vmatprep.subr.mxu0 0.0
    %2168 = vmatpush1.msra.mxu0 0.0
    %2169 = vmatprep.subr.mxu0 0.0
    %2170 = vmatpush1.msra.mxu0 0.0
    %2171 = vmatprep.subr.mxu0 0.0
    %2172 = vmatpush1.msra.mxu0 0.0
    %2173 = vmatprep.subr.mxu0 0.0
    %2174 = vmatpush1.msra.mxu0 %v48
    %2175 = vmatprep.subr.mxu0 0.0
    %2176 = vmatpush1.msra.mxu0 %v47
    %2177 = vmatprep.subr.mxu0 0.0
    %2178 = vmatpush1.msra.mxu0 %v46
    %2179 = vmatprep.subr.mxu0 0.0
    %2180 = vmatpush1.msra.mxu0 %v45
    %2181 = vmatprep.subr.mxu0 0.0
    %2182 = vmatpush2.msra.mxu0 0.0
    %2183 = vmatprep.subr.mxu0 0.0
    %2184 = vmatpush2.msra.mxu0 0.0
    %2185 = vmatprep.subr.mxu0 0.0
    %2186 = vmatpush2.msra.mxu0 0.0
    %2187 = vmatprep.subr.mxu0 0.0
    %2188 = vmatpush2.msra.mxu0 0.0
    %2189 = vmatprep.subr.mxu0 0.0
    %2190 = vmatpush2.msra.mxu0 0.0
    %2191 = vmatprep.subr.mxu0 0.0
    %2192 = vmatpush2.msra.mxu0 0.0
    %2193 = vmatprep.subr.mxu0 0.0
    %2194 = vmatpush2.msra.mxu0 0.0
    %2195 = vmatprep.subr.mxu0 0.0
    %2196 = vmatpush2.msra.mxu0 0.0
    %2197 = vmatprep.subr.mxu0 0.0
    %2198 = vmatpush2.msra.mxu0 0.0
    %2199 = vmatprep.subr.mxu0 0.0
    %2200 = vmatpush2.msra.mxu0 0.0
    %2201 = vmatprep.subr.mxu0 0.0
    %2202 = vmatpush2.msra.mxu0 0.0
    %2203 = vmatprep.subr.mxu0 0.0
    %2204 = vmatpush2.msra.mxu0 0.0
    %2205 = vmatprep.subr.mxu0 0.0
    %2206 = vmatpush2.msra.mxu0 0.0
    %2207 = vmatprep.subr.mxu0 0.0
    %2208 = vmatpush2.msra.mxu0 0.0
    %2209 = vmatprep.subr.mxu0 0.0
    %2210 = vmatpush2.msra.mxu0 0.0
    %2211 = vmatprep.subr.mxu0 0.0
    %2212 = vmatpush2.msra.mxu0 0.0
    %2213 = vmatprep.mubr.f32.mxu0 0.0
    %2214 = vmatmul.mubr.f32.gmra.mxu0 %v2075
    %v2215 = vpop.f32.mrf.mxu0
    %v2216 = vadd.f32 %v59, %v2215
    %v2217 = vpop.f32.mrf.mxu0
    %2218 = vdwg.mxu0
    %v2219 = vtanh.pop %v2216
    %v2221 = vsel %vm151, %v2148, 0
    %2223 = vmatprep.subr.mxu0 0.0
    %2224 = vmatpush1.msra.mxu0 0.0
    %2225 = vmatprep.subr.mxu0 0.0
    %2226 = vmatpush1.msra.mxu0 0.0
    %2227 = vmatprep.subr.mxu0 0.0
    %2228 = vmatpush1.msra.mxu0 0.0
    %2229 = vmatprep.subr.mxu0 0.0
    %2230 = vmatpush1.msra.mxu0 0.0
    %2231 = vmatprep.subr.mxu0 0.0
    %2232 = vmatpush1.msra.mxu0 0.0
    %2233 = vmatprep.subr.mxu0 0.0
    %2234 = vmatpush1.msra.mxu0 0.0
    %2235 = vmatprep.subr.mxu0 0.0
    %2236 = vmatpush1.msra.mxu0 0.0
    %2237 = vmatprep.subr.mxu0 0.0
    %2238 = vmatpush1.msra.mxu0 0.0
    %2239 = vmatprep.subr.mxu0 0.0
    %2240 = vmatpush1.msra.mxu0 0.0
    %2241 = vmatprep.subr.mxu0 0.0
    %2242 = vmatpush1.msra.mxu0 0.0
    %2243 = vmatprep.subr.mxu0 0.0
    %2244 = vmatpush1.msra.mxu0 0.0
    %2245 = vmatprep.subr.mxu0 0.0
    %2246 = vmatpush1.msra.mxu0 0.0
    %2247 = vmatprep.subr.mxu0 0.0
    %2248 = vmatpush1.msra.mxu0 %v56
    %2249 = vmatprep.subr.mxu0 0.0
    %2250 = vmatpush1.msra.mxu0 %v55
    %2251 = vmatprep.subr.mxu0 0.0
    %2252 = vmatpush1.msra.mxu0 %v54
    %2253 = vmatprep.subr.mxu0 0.0
    %2254 = vmatpush1.msra.mxu0 %v53
    %2255 = vmatprep.subr.mxu0 0.0
    %2256 = vmatpush2.msra.mxu0 0.0
    %2257 = vmatprep.subr.mxu0 0.0
    %2258 = vmatpush2.msra.mxu0 0.0
    %2259 = vmatprep.subr.mxu0 0.0
    %2260 = vmatpush2.msra.mxu0 0.0
    %2261 = vmatprep.subr.mxu0 0.0
    %2262 = vmatpush2.msra.mxu0 0.0
    %2263 = vmatprep.subr.mxu0 0.0
    %2264 = vmatpush2.msra.mxu0 0.0
    %2265 = vmatprep.subr.mxu0 0.0
    %2266 = vmatpush2.msra.mxu0 0.0
    %2267 = vmatprep.subr.mxu0 0.0
    %2268 = vmatpush2.msra.mxu0 0.0
    %2269 = vmatprep.subr.mxu0 0.0
    %2270 = vmatpush2.msra.mxu0 0.0
    %2271 = vmatprep.subr.mxu0 0.0
    %2272 = vmatpush2.msra.mxu0 0.0
    %2273 = vmatprep.subr.mxu0 0.0
    %2274 = vmatpush2.msra.mxu0 0.0
    %2275 = vmatprep.subr.mxu0 0.0
    %2276 = vmatpush2.msra.mxu0 0.0
    %2277 = vmatprep.subr.mxu0 0.0
    %2278 = vmatpush2.msra.mxu0 0.0
    %2279 = vmatprep.subr.mxu0 0.0
    %2280 = vmatpush2.msra.mxu0 0.0
    %2281 = vmatprep.subr.mxu0 0.0
    %2282 = vmatpush2.msra.mxu0 0.0
    %2283 = vmatprep.subr.mxu0 0.0
    %2284 = vmatpush2.msra.mxu0 0.0
    %2285 = vmatprep.subr.mxu0 0.0
    %2286 = vmatpush2.msra.mxu0 0.0
    %2287 = vmatprep.mubr.f32.mxu0 0.0
    %2288 = vmatmul.mubr.f32.gmra.mxu0 %v2221
    %v2289 = vpop.f32.mrf.mxu0
    %v2290 = vadd.f32 0.0, %v2289
    %v2291 = vpop.f32.mrf.mxu0
    %2292 = vdwg.mxu0
    %v2294 = vsel %vm151, %v2219, 0
    %2296 = vmatprep.subr.mxu0 0.0
    %2297 = vmatpush1.msra.mxu0 0.0
    %2298 = vmatprep.subr.mxu0 0.0
    %2299 = vmatpush1.msra.mxu0 0.0
    %2300 = vmatprep.subr.mxu0 0.0
    %2301 = vmatpush1.msra.mxu0 0.0
    %2302 = vmatprep.subr.mxu0 0.0
    %2303 = vmatpush1.msra.mxu0 0.0
    %2304 = vmatprep.subr.mxu0 0.0
    %2305 = vmatpush1.msra.mxu0 0.0
    %2306 = vmatprep.subr.mxu0 0.0
    %2307 = vmatpush1.msra.mxu0 0.0
    %2308 = vmatprep.subr.mxu0 0.0
    %2309 = vmatpush1.msra.mxu0 0.0
    %2310 = vmatprep.subr.mxu0 0.0
    %2311 = vmatpush1.msra.mxu0 0.0
    %2312 = vmatprep.subr.mxu0 0.0
    %2313 = vmatpush1.msra.mxu0 0.0
    %2314 = vmatprep.subr.mxu0 0.0
    %2315 = vmatpush1.msra.mxu0 0.0
    %2316 = vmatprep.subr.mxu0 0.0
    %2317 = vmatpush1.msra.mxu0 0.0
    %2318 = vmatprep.subr.mxu0 0.0
    %2319 = vmatpush1.msra.mxu0 0.0
    %2320 = vmatprep.subr.mxu0 0.0
    %2321 = vmatpush1.msra.mxu0 %v52
    %2322 = vmatprep.subr.mxu0 0.0
    %2323 = vmatpush1.msra.mxu0 %v51
    %2324 = vmatprep.subr.mxu0 0.0
    %2325 = vmatpush1.msra.mxu0 %v50
    %2326 = vmatprep.subr.mxu0 0.0
    %2327 = vmatpush1.msra.mxu0 %v49
    %2328 = vmatprep.subr.mxu0 0.0
    %2329 = vmatpush2.msra.mxu0 0.0
    %2330 = vmatprep.subr.mxu0 0.0
    %2331 = vmatpush2.msra.mxu0 0.0
    %2332 = vmatprep.subr.mxu0 0.0
    %2333 = vmatpush2.msra.mxu0 0.0
    %2334 = vmatprep.subr.mxu0 0.0
    %2335 = vmatpush2.msra.mxu0 0.0
    %2336 = vmatprep.subr.mxu0 0.0
    %2337 = vmatpush2.msra.mxu0 0.0
    %2338 = vmatprep.subr.mxu0 0.0
    %2339 = vmatpush2.msra.mxu0 0.0
    %2340 = vmatprep.subr.mxu0 0.0
    %2341 = vmatpush2.msra.mxu0 0.0
    %2342 = vmatprep.subr.mxu0 0.0
    %2343 = vmatpush2.msra.mxu0 0.0
    %2344 = vmatprep.subr.mxu0 0.0
    %2345 = vmatpush2.msra.mxu0 0.0
    %2346 = vmatprep.subr.mxu0 0.0
    %2347 = vmatpush2.msra.mxu0 0.0
    %2348 = vmatprep.subr.mxu0 0.0
    %2349 = vmatpush2.msra.mxu0 0.0
    %2350 = vmatprep.subr.mxu0 0.0
    %2351 = vmatpush2.msra.mxu0 0.0
    %2352 = vmatprep.subr.mxu0 0.0
    %2353 = vmatpush2.msra.mxu0 0.0
    %2354 = vmatprep.subr.mxu0 0.0
    %2355 = vmatpush2.msra.mxu0 0.0
    %2356 = vmatprep.subr.mxu0 0.0
    %2357 = vmatpush2.msra.mxu0 0.0
    %2358 = vmatprep.subr.mxu0 0.0
    %2359 = vmatpush2.msra.mxu0 0.0
    %2360 = vmatprep.mubr.f32.mxu0 0.0
    %2361 = vmatmul.mubr.f32.gmra.mxu0 %v2294
    %v2362 = vpop.f32.mrf.mxu0
    %v2363 = vadd.f32 %v2290, %v2362
    %v2364 = vpop.f32.mrf.mxu0
    %2365 = vdwg.mxu0
    %v2366 = vadd.f32 %v2363, %v60
    %v2367 = vtanh.pop %v2366
    %2368 = vmatprep.subr.mxu0 0.0
    %2369 = vmatpush1.msra.mxu0 0.0
    %2370 = vmatprep.subr.mxu0 0.0
    %2371 = vmatpush1.msra.mxu0 0.0
    %2372 = vmatprep.subr.mxu0 0.0
    %2373 = vmatpush1.msra.mxu0 0.0
    %2374 = vmatprep.subr.mxu0 0.0
    %2375 = vmatpush1.msra.mxu0 0.0
    %2376 = vmatprep.subr.mxu0 0.0
    %2377 = vmatpush1.msra.mxu0 0.0
    %2378 = vmatprep.subr.mxu0 0.0
    %2379 = vmatpush1.msra.mxu0 0.0
    %2380 = vmatprep.subr.mxu0 0.0
    %2381 = vmatpush1.msra.mxu0 0.0
    %2382 = vmatprep.subr.mxu0 0.0
    %2383 = vmatpush1.msra.mxu0 0.0
    %2384 = vmatprep.subr.mxu0 0.0
    %2385 = vmatpush1.msra.mxu0 0.0
    %2386 = vmatprep.subr.mxu0 0.0
    %2387 = vmatpush1.msra.mxu0 0.0
    %2388 = vmatprep.subr.mxu0 0.0
    %2389 = vmatpush1.msra.mxu0 0.0
    %2390 = vmatprep.subr.mxu0 0.0
    %2391 = vmatpush1.msra.mxu0 0.0
    %2392 = vmatprep.subr.mxu0 0.0
    %2393 = vmatpush1.msra.mxu0 %v48
    %2394 = vmatprep.subr.mxu0 0.0
    %2395 = vmatpush1.msra.mxu0 %v47
    %2396 = vmatprep.subr.mxu0 0.0
    %2397 = vmatpush1.msra.mxu0 %v46
    %2398 = vmatprep.subr.mxu0 0.0
    %2399 = vmatpush1.msra.mxu0 %v45
    %2400 = vmatprep.subr.mxu0 0.0
    %2401 = vmatpush2.msra.mxu0 0.0
    %2402 = vmatprep.subr.mxu0 0.0
    %2403 = vmatpush2.msra.mxu0 0.0
    %2404 = vmatprep.subr.mxu0 0.0
    %2405 = vmatpush2.msra.mxu0 0.0
    %2406 = vmatprep.subr.mxu0 0.0
    %2407 = vmatpush2.msra.mxu0 0.0
    %2408 = vmatprep.subr.mxu0 0.0
    %2409 = vmatpush2.msra.mxu0 0.0
    %2410 = vmatprep.subr.mxu0 0.0
    %2411 = vmatpush2.msra.mxu0 0.0
    %2412 = vmatprep.subr.mxu0 0.0
    %2413 = vmatpush2.msra.mxu0 0.0
    %2414 = vmatprep.subr.mxu0 0.0
    %2415 = vmatpush2.msra.mxu0 0.0
    %2416 = vmatprep.subr.mxu0 0.0
    %2417 = vmatpush2.msra.mxu0 0.0
    %2418 = vmatprep.subr.mxu0 0.0
    %2419 = vmatpush2.msra.mxu0 0.0
    %2420 = vmatprep.subr.mxu0 0.0
    %2421 = vmatpush2.msra.mxu0 0.0
    %2422 = vmatprep.subr.mxu0 0.0
    %2423 = vmatpush2.msra.mxu0 0.0
    %2424 = vmatprep.subr.mxu0 0.0
    %2425 = vmatpush2.msra.mxu0 0.0
    %2426 = vmatprep.subr.mxu0 0.0
    %2427 = vmatpush2.msra.mxu0 0.0
    %2428 = vmatprep.subr.mxu0 0.0
    %2429 = vmatpush2.msra.mxu0 0.0
    %2430 = vmatprep.subr.mxu0 0.0
    %2431 = vmatpush2.msra.mxu0 0.0
    %2432 = vmatprep.mubr.f32.mxu0 0.0
    %2433 = vmatmul.mubr.f32.gmra.mxu0 %v2294
    %v2434 = vpop.f32.mrf.mxu0
    %v2435 = vadd.f32 %v59, %v2434
    %v2436 = vpop.f32.mrf.mxu0
    %2437 = vdwg.mxu0
    %v2438 = vtanh.pop %v2435
    %v2440 = vsel %vm151, %v2367, 0
    %2442 = vmatprep.subr.mxu0 0.0
    %2443 = vmatpush1.msra.mxu0 0.0
    %2444 = vmatprep.subr.mxu0 0.0
    %2445 = vmatpush1.msra.mxu0 0.0
    %2446 = vmatprep.subr.mxu0 0.0
    %2447 = vmatpush1.msra.mxu0 0.0
    %2448 = vmatprep.subr.mxu0 0.0
    %2449 = vmatpush1.msra.mxu0 0.0
    %2450 = vmatprep.subr.mxu0 0.0
    %2451 = vmatpush1.msra.mxu0 0.0
    %2452 = vmatprep.subr.mxu0 0.0
    %2453 = vmatpush1.msra.mxu0 0.0
    %2454 = vmatprep.subr.mxu0 0.0
    %2455 = vmatpush1.msra.mxu0 0.0
    %2456 = vmatprep.subr.mxu0 0.0
    %2457 = vmatpush1.msra.mxu0 0.0
    %2458 = vmatprep.subr.mxu0 0.0
    %2459 = vmatpush1.msra.mxu0 0.0
    %2460 = vmatprep.subr.mxu0 0.0
    %2461 = vmatpush1.msra.mxu0 0.0
    %2462 = vmatprep.subr.mxu0 0.0
    %2463 = vmatpush1.msra.mxu0 0.0
    %2464 = vmatprep.subr.mxu0 0.0
    %2465 = vmatpush1.msra.mxu0 0.0
    %2466 = vmatprep.subr.mxu0 0.0
    %2467 = vmatpush1.msra.mxu0 %v56
    %2468 = vmatprep.subr.mxu0 0.0
    %2469 = vmatpush1.msra.mxu0 %v55
    %2470 = vmatprep.subr.mxu0 0.0
    %2471 = vmatpush1.msra.mxu0 %v54
    %2472 = vmatprep.subr.mxu0 0.0
    %2473 = vmatpush1.msra.mxu0 %v53
    %2474 = vmatprep.subr.mxu0 0.0
    %2475 = vmatpush2.msra.mxu0 0.0
    %2476 = vmatprep.subr.mxu0 0.0
    %2477 = vmatpush2.msra.mxu0 0.0
    %2478 = vmatprep.subr.mxu0 0.0
    %2479 = vmatpush2.msra.mxu0 0.0
    %2480 = vmatprep.subr.mxu0 0.0
    %2481 = vmatpush2.msra.mxu0 0.0
    %2482 = vmatprep.subr.mxu0 0.0
    %2483 = vmatpush2.msra.mxu0 0.0
    %2484 = vmatprep.subr.mxu0 0.0
    %2485 = vmatpush2.msra.mxu0 0.0
    %2486 = vmatprep.subr.mxu0 0.0
    %2487 = vmatpush2.msra.mxu0 0.0
    %2488 = vmatprep.subr.mxu0 0.0
    %2489 = vmatpush2.msra.mxu0 0.0
    %2490 = vmatprep.subr.mxu0 0.0
    %2491 = vmatpush2.msra.mxu0 0.0
    %2492 = vmatprep.subr.mxu0 0.0
    %2493 = vmatpush2.msra.mxu0 0.0
    %2494 = vmatprep.subr.mxu0 0.0
    %2495 = vmatpush2.msra.mxu0 0.0
    %2496 = vmatprep.subr.mxu0 0.0
    %2497 = vmatpush2.msra.mxu0 0.0
    %2498 = vmatprep.subr.mxu0 0.0
    %2499 = vmatpush2.msra.mxu0 0.0
    %2500 = vmatprep.subr.mxu0 0.0
    %2501 = vmatpush2.msra.mxu0 0.0
    %2502 = vmatprep.subr.mxu0 0.0
    %2503 = vmatpush2.msra.mxu0 0.0
    %2504 = vmatprep.subr.mxu0 0.0
    %2505 = vmatpush2.msra.mxu0 0.0
    %2506 = vmatprep.mubr.f32.mxu0 0.0
    %2507 = vmatmul.mubr.f32.gmra.mxu0 %v2440
    %v2508 = vpop.f32.mrf.mxu0
    %v2509 = vadd.f32 0.0, %v2508
    %v2510 = vpop.f32.mrf.mxu0
    %2511 = vdwg.mxu0
    %v2513 = vsel %vm151, %v2438, 0
    %2515 = vmatprep.subr.mxu0 0.0
    %2516 = vmatpush1.msra.mxu0 0.0
    %2517 = vmatprep.subr.mxu0 0.0
    %2518 = vmatpush1.msra.mxu0 0.0
    %2519 = vmatprep.subr.mxu0 0.0
    %2520 = vmatpush1.msra.mxu0 0.0
    %2521 = vmatprep.subr.mxu0 0.0
    %2522 = vmatpush1.msra.mxu0 0.0
    %2523 = vmatprep.subr.mxu0 0.0
    %2524 = vmatpush1.msra.mxu0 0.0
    %2525 = vmatprep.subr.mxu0 0.0
    %2526 = vmatpush1.msra.mxu0 0.0
    %2527 = vmatprep.subr.mxu0 0.0
    %2528 = vmatpush1.msra.mxu0 0.0
    %2529 = vmatprep.subr.mxu0 0.0
    %2530 = vmatpush1.msra.mxu0 0.0
    %2531 = vmatprep.subr.mxu0 0.0
    %2532 = vmatpush1.msra.mxu0 0.0
    %2533 = vmatprep.subr.mxu0 0.0
    %2534 = vmatpush1.msra.mxu0 0.0
    %2535 = vmatprep.subr.mxu0 0.0
    %2536 = vmatpush1.msra.mxu0 0.0
    %2537 = vmatprep.subr.mxu0 0.0
    %2538 = vmatpush1.msra.mxu0 0.0
    %2539 = vmatprep.subr.mxu0 0.0
    %2540 = vmatpush1.msra.mxu0 %v52
    %2541 = vmatprep.subr.mxu0 0.0
    %2542 = vmatpush1.msra.mxu0 %v51
    %2543 = vmatprep.subr.mxu0 0.0
    %2544 = vmatpush1.msra.mxu0 %v50
    %2545 = vmatprep.subr.mxu0 0.0
    %2546 = vmatpush1.msra.mxu0 %v49
    %2547 = vmatprep.subr.mxu0 0.0
    %2548 = vmatpush2.msra.mxu0 0.0
    %2549 = vmatprep.subr.mxu0 0.0
    %2550 = vmatpush2.msra.mxu0 0.0
    %2551 = vmatprep.subr.mxu0 0.0
    %2552 = vmatpush2.msra.mxu0 0.0
    %2553 = vmatprep.subr.mxu0 0.0
    %2554 = vmatpush2.msra.mxu0 0.0
    %2555 = vmatprep.subr.mxu0 0.0
    %2556 = vmatpush2.msra.mxu0 0.0
    %2557 = vmatprep.subr.mxu0 0.0
    %2558 = vmatpush2.msra.mxu0 0.0
    %2559 = vmatprep.subr.mxu0 0.0
    %2560 = vmatpush2.msra.mxu0 0.0
    %2561 = vmatprep.subr.mxu0 0.0
    %2562 = vmatpush2.msra.mxu0 0.0
    %2563 = vmatprep.subr.mxu0 0.0
    %2564 = vmatpush2.msra.mxu0 0.0
    %2565 = vmatprep.subr.mxu0 0.0
    %2566 = vmatpush2.msra.mxu0 0.0
    %2567 = vmatprep.subr.mxu0 0.0
    %2568 = vmatpush2.msra.mxu0 0.0
    %2569 = vmatprep.subr.mxu0 0.0
    %2570 = vmatpush2.msra.mxu0 0.0
    %2571 = vmatprep.subr.mxu0 0.0
    %2572 = vmatpush2.msra.mxu0 0.0
    %2573 = vmatprep.subr.mxu0 0.0
    %2574 = vmatpush2.msra.mxu0 0.0
    %2575 = vmatprep.subr.mxu0 0.0
    %2576 = vmatpush2.msra.mxu0 0.0
    %2577 = vmatprep.subr.mxu0 0.0
    %2578 = vmatpush2.msra.mxu0 0.0
    %2579 = vmatprep.mubr.f32.mxu0 0.0
    %2580 = vmatmul.mubr.f32.gmra.mxu0 %v2513
    %v2581 = vpop.f32.mrf.mxu0
    %v2582 = vadd.f32 %v2509, %v2581
    %v2583 = vpop.f32.mrf.mxu0
    %2584 = vdwg.mxu0
    %v2585 = vadd.f32 %v2582, %v60
    %v2586 = vtanh.pop %v2585
    %2587 = vmatprep.subr.mxu0 0.0
    %2588 = vmatpush1.msra.mxu0 0.0
    %2589 = vmatprep.subr.mxu0 0.0
    %2590 = vmatpush1.msra.mxu0 0.0
    %2591 = vmatprep.subr.mxu0 0.0
    %2592 = vmatpush1.msra.mxu0 0.0
    %2593 = vmatprep.subr.mxu0 0.0
    %2594 = vmatpush1.msra.mxu0 0.0
    %2595 = vmatprep.subr.mxu0 0.0
    %2596 = vmatpush1.msra.mxu0 0.0
    %2597 = vmatprep.subr.mxu0 0.0
    %2598 = vmatpush1.msra.mxu0 0.0
    %2599 = vmatprep.subr.mxu0 0.0
    %2600 = vmatpush1.msra.mxu0 0.0
    %2601 = vmatprep.subr.mxu0 0.0
    %2602 = vmatpush1.msra.mxu0 0.0
    %2603 = vmatprep.subr.mxu0 0.0
    %2604 = vmatpush1.msra.mxu0 0.0
    %2605 = vmatprep.subr.mxu0 0.0
    %2606 = vmatpush1.msra.mxu0 0.0
    %2607 = vmatprep.subr.mxu0 0.0
    %2608 = vmatpush1.msra.mxu0 0.0
    %2609 = vmatprep.subr.mxu0 0.0
    %2610 = vmatpush1.msra.mxu0 0.0
    %2611 = vmatprep.subr.mxu0 0.0
    %2612 = vmatpush1.msra.mxu0 %v48
    %2613 = vmatprep.subr.mxu0 0.0
    %2614 = vmatpush1.msra.mxu0 %v47
    %2615 = vmatprep.subr.mxu0 0.0
    %2616 = vmatpush1.msra.mxu0 %v46
    %2617 = vmatprep.subr.mxu0 0.0
    %2618 = vmatpush1.msra.mxu0 %v45
    %2619 = vmatprep.subr.mxu0 0.0
    %2620 = vmatpush2.msra.mxu0 0.0
    %2621 = vmatprep.subr.mxu0 0.0
    %2622 = vmatpush2.msra.mxu0 0.0
    %2623 = vmatprep.subr.mxu0 0.0
    %2624 = vmatpush2.msra.mxu0 0.0
    %2625 = vmatprep.subr.mxu0 0.0
    %2626 = vmatpush2.msra.mxu0 0.0
    %2627 = vmatprep.subr.mxu0 0.0
    %2628 = vmatpush2.msra.mxu0 0.0
    %2629 = vmatprep.subr.mxu0 0.0
    %2630 = vmatpush2.msra.mxu0 0.0
    %2631 = vmatprep.subr.mxu0 0.0
    %2632 = vmatpush2.msra.mxu0 0.0
    %2633 = vmatprep.subr.mxu0 0.0
    %2634 = vmatpush2.msra.mxu0 0.0
    %2635 = vmatprep.subr.mxu0 0.0
    %2636 = vmatpush2.msra.mxu0 0.0
    %2637 = vmatprep.subr.mxu0 0.0
    %2638 = vmatpush2.msra.mxu0 0.0
    %2639 = vmatprep.subr.mxu0 0.0
    %2640 = vmatpush2.msra.mxu0 0.0
    %2641 = vmatprep.subr.mxu0 0.0
    %2642 = vmatpush2.msra.mxu0 0.0
    %2643 = vmatprep.subr.mxu0 0.0
    %2644 = vmatpush2.msra.mxu0 0.0
    %2645 = vmatprep.subr.mxu0 0.0
    %2646 = vmatpush2.msra.mxu0 0.0
    %2647 = vmatprep.subr.mxu0 0.0
    %2648 = vmatpush2.msra.mxu0 0.0
    %2649 = vmatprep.subr.mxu0 0.0
    %2650 = vmatpush2.msra.mxu0 0.0
    %2651 = vmatprep.mubr.f32.mxu0 0.0
    %2652 = vmatmul.mubr.f32.gmra.mxu0 %v2513
    %v2653 = vpop.f32.mrf.mxu0
    %v2654 = vadd.f32 %v59, %v2653
    %v2655 = vpop.f32.mrf.mxu0
    %2656 = vdwg.mxu0
    %v2657 = vtanh.pop %v2654
    %v2659 = vsel %vm151, %v2586, 0
    %2661 = vmatprep.subr.mxu0 0.0
    %2662 = vmatpush1.msra.mxu0 0.0
    %2663 = vmatprep.subr.mxu0 0.0
    %2664 = vmatpush1.msra.mxu0 0.0
    %2665 = vmatprep.subr.mxu0 0.0
    %2666 = vmatpush1.msra.mxu0 0.0
    %2667 = vmatprep.subr.mxu0 0.0
    %2668 = vmatpush1.msra.mxu0 0.0
    %2669 = vmatprep.subr.mxu0 0.0
    %2670 = vmatpush1.msra.mxu0 0.0
    %2671 = vmatprep.subr.mxu0 0.0
    %2672 = vmatpush1.msra.mxu0 0.0
    %2673 = vmatprep.subr.mxu0 0.0
    %2674 = vmatpush1.msra.mxu0 0.0
    %2675 = vmatprep.subr.mxu0 0.0
    %2676 = vmatpush1.msra.mxu0 0.0
    %2677 = vmatprep.subr.mxu0 0.0
    %2678 = vmatpush1.msra.mxu0 0.0
    %2679 = vmatprep.subr.mxu0 0.0
    %2680 = vmatpush1.msra.mxu0 0.0
    %2681 = vmatprep.subr.mxu0 0.0
    %2682 = vmatpush1.msra.mxu0 0.0
    %2683 = vmatprep.subr.mxu0 0.0
    %2684 = vmatpush1.msra.mxu0 0.0
    %2685 = vmatprep.subr.mxu0 0.0
    %2686 = vmatpush1.msra.mxu0 %v56
    %2687 = vmatprep.subr.mxu0 0.0
    %2688 = vmatpush1.msra.mxu0 %v55
    %2689 = vmatprep.subr.mxu0 0.0
    %2690 = vmatpush1.msra.mxu0 %v54
    %2691 = vmatprep.subr.mxu0 0.0
    %2692 = vmatpush1.msra.mxu0 %v53
    %2693 = vmatprep.subr.mxu0 0.0
    %2694 = vmatpush2.msra.mxu0 0.0
    %2695 = vmatprep.subr.mxu0 0.0
    %2696 = vmatpush2.msra.mxu0 0.0
    %2697 = vmatprep.subr.mxu0 0.0
    %2698 = vmatpush2.msra.mxu0 0.0
    %2699 = vmatprep.subr.mxu0 0.0
    %2700 = vmatpush2.msra.mxu0 0.0
    %2701 = vmatprep.subr.mxu0 0.0
    %2702 = vmatpush2.msra.mxu0 0.0
    %2703 = vmatprep.subr.mxu0 0.0
    %2704 = vmatpush2.msra.mxu0 0.0
    %2705 = vmatprep.subr.mxu0 0.0
    %2706 = vmatpush2.msra.mxu0 0.0
    %2707 = vmatprep.subr.mxu0 0.0
    %2708 = vmatpush2.msra.mxu0 0.0
    %2709 = vmatprep.subr.mxu0 0.0
    %2710 = vmatpush2.msra.mxu0 0.0
    %2711 = vmatprep.subr.mxu0 0.0
    %2712 = vmatpush2.msra.mxu0 0.0
    %2713 = vmatprep.subr.mxu0 0.0
    %2714 = vmatpush2.msra.mxu0 0.0
    %2715 = vmatprep.subr.mxu0 0.0
    %2716 = vmatpush2.msra.mxu0 0.0
    %2717 = vmatprep.subr.mxu0 0.0
    %2718 = vmatpush2.msra.mxu0 0.0
    %2719 = vmatprep.subr.mxu0 0.0
    %2720 = vmatpush2.msra.mxu0 0.0
    %2721 = vmatprep.subr.mxu0 0.0
    %2722 = vmatpush2.msra.mxu0 0.0
    %2723 = vmatprep.subr.mxu0 0.0
    %2724 = vmatpush2.msra.mxu0 0.0
    %2725 = vmatprep.mubr.f32.mxu0 0.0
    %2726 = vmatmul.mubr.f32.gmra.mxu0 %v2659
    %v2727 = vpop.f32.mrf.mxu0
    %v2728 = vadd.f32 0.0, %v2727
    %v2729 = vpop.f32.mrf.mxu0
    %2730 = vdwg.mxu0
    %v2732 = vsel %vm151, %v2657, 0
    %2734 = vmatprep.subr.mxu0 0.0
    %2735 = vmatpush1.msra.mxu0 0.0
    %2736 = vmatprep.subr.mxu0 0.0
    %2737 = vmatpush1.msra.mxu0 0.0
    %2738 = vmatprep.subr.mxu0 0.0
    %2739 = vmatpush1.msra.mxu0 0.0
    %2740 = vmatprep.subr.mxu0 0.0
    %2741 = vmatpush1.msra.mxu0 0.0
    %2742 = vmatprep.subr.mxu0 0.0
    %2743 = vmatpush1.msra.mxu0 0.0
    %2744 = vmatprep.subr.mxu0 0.0
    %2745 = vmatpush1.msra.mxu0 0.0
    %2746 = vmatprep.subr.mxu0 0.0
    %2747 = vmatpush1.msra.mxu0 0.0
    %2748 = vmatprep.subr.mxu0 0.0
    %2749 = vmatpush1.msra.mxu0 0.0
    %2750 = vmatprep.subr.mxu0 0.0
    %2751 = vmatpush1.msra.mxu0 0.0
    %2752 = vmatprep.subr.mxu0 0.0
    %2753 = vmatpush1.msra.mxu0 0.0
    %2754 = vmatprep.subr.mxu0 0.0
    %2755 = vmatpush1.msra.mxu0 0.0
    %2756 = vmatprep.subr.mxu0 0.0
    %2757 = vmatpush1.msra.mxu0 0.0
    %2758 = vmatprep.subr.mxu0 0.0
    %2759 = vmatpush1.msra.mxu0 %v52
    %2760 = vmatprep.subr.mxu0 0.0
    %2761 = vmatpush1.msra.mxu0 %v51
    %2762 = vmatprep.subr.mxu0 0.0
    %2763 = vmatpush1.msra.mxu0 %v50
    %2764 = vmatprep.subr.mxu0 0.0
    %2765 = vmatpush1.msra.mxu0 %v49
    %2766 = vmatprep.subr.mxu0 0.0
    %2767 = vmatpush2.msra.mxu0 0.0
    %2768 = vmatprep.subr.mxu0 0.0
    %2769 = vmatpush2.msra.mxu0 0.0
    %2770 = vmatprep.subr.mxu0 0.0
    %2771 = vmatpush2.msra.mxu0 0.0
    %2772 = vmatprep.subr.mxu0 0.0
    %2773 = vmatpush2.msra.mxu0 0.0
    %2774 = vmatprep.subr.mxu0 0.0
    %2775 = vmatpush2.msra.mxu0 0.0
    %2776 = vmatprep.subr.mxu0 0.0
    %2777 = vmatpush2.msra.mxu0 0.0
    %2778 = vmatprep.subr.mxu0 0.0
    %2779 = vmatpush2.msra.mxu0 0.0
    %2780 = vmatprep.subr.mxu0 0.0
    %2781 = vmatpush2.msra.mxu0 0.0
    %2782 = vmatprep.subr.mxu0 0.0
    %2783 = vmatpush2.msra.mxu0 0.0
    %2784 = vmatprep.subr.mxu0 0.0
    %2785 = vmatpush2.msra.mxu0 0.0
    %2786 = vmatprep.subr.mxu0 0.0
    %2787 = vmatpush2.msra.mxu0 0.0
    %2788 = vmatprep.subr.mxu0 0.0
    %2789 = vmatpush2.msra.mxu0 0.0
    %2790 = vmatprep.subr.mxu0 0.0
    %2791 = vmatpush2.msra.mxu0 0.0
    %2792 = vmatprep.subr.mxu0 0.0
    %2793 = vmatpush2.msra.mxu0 0.0
    %2794 = vmatprep.subr.mxu0 0.0
    %2795 = vmatpush2.msra.mxu0 0.0
    %2796 = vmatprep.subr.mxu0 0.0
    %2797 = vmatpush2.msra.mxu0 0.0
    %2798 = vmatprep.mubr.f32.mxu0 0.0
    %2799 = vmatmul.mubr.f32.gmra.mxu0 %v2732
    %v2800 = vpop.f32.mrf.mxu0
    %v2801 = vadd.f32 %v2728, %v2800
    %v2802 = vpop.f32.mrf.mxu0
    %2803 = vdwg.mxu0
    %v2804 = vadd.f32 %v2801, %v60
    %v2805 = vtanh.pop %v2804
    %2806 = vmatprep.subr.mxu0 0.0
    %2807 = vmatpush1.msra.mxu0 0.0
    %2808 = vmatprep.subr.mxu0 0.0
    %2809 = vmatpush1.msra.mxu0 0.0
    %2810 = vmatprep.subr.mxu0 0.0
    %2811 = vmatpush1.msra.mxu0 0.0
    %2812 = vmatprep.subr.mxu0 0.0
    %2813 = vmatpush1.msra.mxu0 0.0
    %2814 = vmatprep.subr.mxu0 0.0
    %2815 = vmatpush1.msra.mxu0 0.0
    %2816 = vmatprep.subr.mxu0 0.0
    %2817 = vmatpush1.msra.mxu0 0.0
    %2818 = vmatprep.subr.mxu0 0.0
    %2819 = vmatpush1.msra.mxu0 0.0
    %2820 = vmatprep.subr.mxu0 0.0
    %2821 = vmatpush1.msra.mxu0 0.0
    %2822 = vmatprep.subr.mxu0 0.0
    %2823 = vmatpush1.msra.mxu0 0.0
    %2824 = vmatprep.subr.mxu0 0.0
    %2825 = vmatpush1.msra.mxu0 0.0
    %2826 = vmatprep.subr.mxu0 0.0
    %2827 = vmatpush1.msra.mxu0 0.0
    %2828 = vmatprep.subr.mxu0 0.0
    %2829 = vmatpush1.msra.mxu0 0.0
    %2830 = vmatprep.subr.mxu0 0.0
    %2831 = vmatpush1.msra.mxu0 %v48
    %2832 = vmatprep.subr.mxu0 0.0
    %2833 = vmatpush1.msra.mxu0 %v47
    %2834 = vmatprep.subr.mxu0 0.0
    %2835 = vmatpush1.msra.mxu0 %v46
    %2836 = vmatprep.subr.mxu0 0.0
    %2837 = vmatpush1.msra.mxu0 %v45
    %2838 = vmatprep.subr.mxu0 0.0
    %2839 = vmatpush2.msra.mxu0 0.0
    %2840 = vmatprep.subr.mxu0 0.0
    %2841 = vmatpush2.msra.mxu0 0.0
    %2842 = vmatprep.subr.mxu0 0.0
    %2843 = vmatpush2.msra.mxu0 0.0
    %2844 = vmatprep.subr.mxu0 0.0
    %2845 = vmatpush2.msra.mxu0 0.0
    %2846 = vmatprep.subr.mxu0 0.0
    %2847 = vmatpush2.msra.mxu0 0.0
    %2848 = vmatprep.subr.mxu0 0.0
    %2849 = vmatpush2.msra.mxu0 0.0
    %2850 = vmatprep.subr.mxu0 0.0
    %2851 = vmatpush2.msra.mxu0 0.0
    %2852 = vmatprep.subr.mxu0 0.0
    %2853 = vmatpush2.msra.mxu0 0.0
    %2854 = vmatprep.subr.mxu0 0.0
    %2855 = vmatpush2.msra.mxu0 0.0
    %2856 = vmatprep.subr.mxu0 0.0
    %2857 = vmatpush2.msra.mxu0 0.0
    %2858 = vmatprep.subr.mxu0 0.0
    %2859 = vmatpush2.msra.mxu0 0.0
    %2860 = vmatprep.subr.mxu0 0.0
    %2861 = vmatpush2.msra.mxu0 0.0
    %2862 = vmatprep.subr.mxu0 0.0
    %2863 = vmatpush2.msra.mxu0 0.0
    %2864 = vmatprep.subr.mxu0 0.0
    %2865 = vmatpush2.msra.mxu0 0.0
    %2866 = vmatprep.subr.mxu0 0.0
    %2867 = vmatpush2.msra.mxu0 0.0
    %2868 = vmatprep.subr.mxu0 0.0
    %2869 = vmatpush2.msra.mxu0 0.0
    %2870 = vmatprep.mubr.f32.mxu0 0.0
    %2871 = vmatmul.mubr.f32.gmra.mxu0 %v2732
    %v2872 = vpop.f32.mrf.mxu0
    %v2873 = vadd.f32 %v59, %v2872
    %v2874 = vpop.f32.mrf.mxu0
    %2875 = vdwg.mxu0
    %v2876 = vtanh.pop %v2873
    %v2878 = vsel %vm151, %v2805, 0
    %2880 = vmatprep.subr.mxu0 0.0
    %2881 = vmatpush1.msra.mxu0 0.0
    %2882 = vmatprep.subr.mxu0 0.0
    %2883 = vmatpush1.msra.mxu0 0.0
    %2884 = vmatprep.subr.mxu0 0.0
    %2885 = vmatpush1.msra.mxu0 0.0
    %2886 = vmatprep.subr.mxu0 0.0
    %2887 = vmatpush1.msra.mxu0 0.0
    %2888 = vmatprep.subr.mxu0 0.0
    %2889 = vmatpush1.msra.mxu0 0.0
    %2890 = vmatprep.subr.mxu0 0.0
    %2891 = vmatpush1.msra.mxu0 0.0
    %2892 = vmatprep.subr.mxu0 0.0
    %2893 = vmatpush1.msra.mxu0 0.0
    %2894 = vmatprep.subr.mxu0 0.0
    %2895 = vmatpush1.msra.mxu0 0.0
    %2896 = vmatprep.subr.mxu0 0.0
    %2897 = vmatpush1.msra.mxu0 0.0
    %2898 = vmatprep.subr.mxu0 0.0
    %2899 = vmatpush1.msra.mxu0 0.0
    %2900 = vmatprep.subr.mxu0 0.0
    %2901 = vmatpush1.msra.mxu0 0.0
    %2902 = vmatprep.subr.mxu0 0.0
    %2903 = vmatpush1.msra.mxu0 0.0
    %2904 = vmatprep.subr.mxu0 0.0
    %2905 = vmatpush1.msra.mxu0 %v56
    %2906 = vmatprep.subr.mxu0 0.0
    %2907 = vmatpush1.msra.mxu0 %v55
    %2908 = vmatprep.subr.mxu0 0.0
    %2909 = vmatpush1.msra.mxu0 %v54
    %2910 = vmatprep.subr.mxu0 0.0
    %2911 = vmatpush1.msra.mxu0 %v53
    %2912 = vmatprep.subr.mxu0 0.0
    %2913 = vmatpush2.msra.mxu0 0.0
    %2914 = vmatprep.subr.mxu0 0.0
    %2915 = vmatpush2.msra.mxu0 0.0
    %2916 = vmatprep.subr.mxu0 0.0
    %2917 = vmatpush2.msra.mxu0 0.0
    %2918 = vmatprep.subr.mxu0 0.0
    %2919 = vmatpush2.msra.mxu0 0.0
    %2920 = vmatprep.subr.mxu0 0.0
    %2921 = vmatpush2.msra.mxu0 0.0
    %2922 = vmatprep.subr.mxu0 0.0
    %2923 = vmatpush2.msra.mxu0 0.0
    %2924 = vmatprep.subr.mxu0 0.0
    %2925 = vmatpush2.msra.mxu0 0.0
    %2926 = vmatprep.subr.mxu0 0.0
    %2927 = vmatpush2.msra.mxu0 0.0
    %2928 = vmatprep.subr.mxu0 0.0
    %2929 = vmatpush2.msra.mxu0 0.0
    %2930 = vmatprep.subr.mxu0 0.0
    %2931 = vmatpush2.msra.mxu0 0.0
    %2932 = vmatprep.subr.mxu0 0.0
    %2933 = vmatpush2.msra.mxu0 0.0
    %2934 = vmatprep.subr.mxu0 0.0
    %2935 = vmatpush2.msra.mxu0 0.0
    %2936 = vmatprep.subr.mxu0 0.0
    %2937 = vmatpush2.msra.mxu0 0.0
    %2938 = vmatprep.subr.mxu0 0.0
    %2939 = vmatpush2.msra.mxu0 0.0
    %2940 = vmatprep.subr.mxu0 0.0
    %2941 = vmatpush2.msra.mxu0 0.0
    %2942 = vmatprep.subr.mxu0 0.0
    %2943 = vmatpush2.msra.mxu0 0.0
    %2944 = vmatprep.mubr.f32.mxu0 0.0
    %2945 = vmatmul.mubr.f32.gmra.mxu0 %v2878
    %v2946 = vpop.f32.mrf.mxu0
    %v2947 = vadd.f32 0.0, %v2946
    %v2948 = vpop.f32.mrf.mxu0
    %2949 = vdwg.mxu0
    %v2951 = vsel %vm151, %v2876, 0
    %2953 = vmatprep.subr.mxu0 0.0
    %2954 = vmatpush1.msra.mxu0 0.0
    %2955 = vmatprep.subr.mxu0 0.0
    %2956 = vmatpush1.msra.mxu0 0.0
    %2957 = vmatprep.subr.mxu0 0.0
    %2958 = vmatpush1.msra.mxu0 0.0
    %2959 = vmatprep.subr.mxu0 0.0
    %2960 = vmatpush1.msra.mxu0 0.0
    %2961 = vmatprep.subr.mxu0 0.0
    %2962 = vmatpush1.msra.mxu0 0.0
    %2963 = vmatprep.subr.mxu0 0.0
    %2964 = vmatpush1.msra.mxu0 0.0
    %2965 = vmatprep.subr.mxu0 0.0
    %2966 = vmatpush1.msra.mxu0 0.0
    %2967 = vmatprep.subr.mxu0 0.0
    %2968 = vmatpush1.msra.mxu0 0.0
    %2969 = vmatprep.subr.mxu0 0.0
    %2970 = vmatpush1.msra.mxu0 0.0
    %2971 = vmatprep.subr.mxu0 0.0
    %2972 = vmatpush1.msra.mxu0 0.0
    %2973 = vmatprep.subr.mxu0 0.0
    %2974 = vmatpush1.msra.mxu0 0.0
    %2975 = vmatprep.subr.mxu0 0.0
    %2976 = vmatpush1.msra.mxu0 0.0
    %2977 = vmatprep.subr.mxu0 0.0
    %2978 = vmatpush1.msra.mxu0 %v52
    %2979 = vmatprep.subr.mxu0 0.0
    %2980 = vmatpush1.msra.mxu0 %v51
    %2981 = vmatprep.subr.mxu0 0.0
    %2982 = vmatpush1.msra.mxu0 %v50
    %2983 = vmatprep.subr.mxu0 0.0
    %2984 = vmatpush1.msra.mxu0 %v49
    %2985 = vmatprep.subr.mxu0 0.0
    %2986 = vmatpush2.msra.mxu0 0.0
    %2987 = vmatprep.subr.mxu0 0.0
    %2988 = vmatpush2.msra.mxu0 0.0
    %2989 = vmatprep.subr.mxu0 0.0
    %2990 = vmatpush2.msra.mxu0 0.0
    %2991 = vmatprep.subr.mxu0 0.0
    %2992 = vmatpush2.msra.mxu0 0.0
    %2993 = vmatprep.subr.mxu0 0.0
    %2994 = vmatpush2.msra.mxu0 0.0
    %2995 = vmatprep.subr.mxu0 0.0
    %2996 = vmatpush2.msra.mxu0 0.0
    %2997 = vmatprep.subr.mxu0 0.0
    %2998 = vmatpush2.msra.mxu0 0.0
    %2999 = vmatprep.subr.mxu0 0.0
    %3000 = vmatpush2.msra.mxu0 0.0
    %3001 = vmatprep.subr.mxu0 0.0
    %3002 = vmatpush2.msra.mxu0 0.0
    %3003 = vmatprep.subr.mxu0 0.0
    %3004 = vmatpush2.msra.mxu0 0.0
    %3005 = vmatprep.subr.mxu0 0.0
    %3006 = vmatpush2.msra.mxu0 0.0
    %3007 = vmatprep.subr.mxu0 0.0
    %3008 = vmatpush2.msra.mxu0 0.0
    %3009 = vmatprep.subr.mxu0 0.0
    %3010 = vmatpush2.msra.mxu0 0.0
    %3011 = vmatprep.subr.mxu0 0.0
    %3012 = vmatpush2.msra.mxu0 0.0
    %3013 = vmatprep.subr.mxu0 0.0
    %3014 = vmatpush2.msra.mxu0 0.0
    %3015 = vmatprep.subr.mxu0 0.0
    %3016 = vmatpush2.msra.mxu0 0.0
    %3017 = vmatprep.mubr.f32.mxu0 0.0
    %3018 = vmatmul.mubr.f32.gmra.mxu0 %v2951
    %v3019 = vpop.f32.mrf.mxu0
    %v3020 = vadd.f32 %v2947, %v3019
    %v3021 = vpop.f32.mrf.mxu0
    %3022 = vdwg.mxu0
    %v3023 = vadd.f32 %v3020, %v60
    %v3024 = vtanh.pop %v3023
    %3025 = vmatprep.subr.mxu0 0.0
    %3026 = vmatpush1.msra.mxu0 0.0
    %3027 = vmatprep.subr.mxu0 0.0
    %3028 = vmatpush1.msra.mxu0 0.0
    %3029 = vmatprep.subr.mxu0 0.0
    %3030 = vmatpush1.msra.mxu0 0.0
    %3031 = vmatprep.subr.mxu0 0.0
    %3032 = vmatpush1.msra.mxu0 0.0
    %3033 = vmatprep.subr.mxu0 0.0
    %3034 = vmatpush1.msra.mxu0 0.0
    %3035 = vmatprep.subr.mxu0 0.0
    %3036 = vmatpush1.msra.mxu0 0.0
    %3037 = vmatprep.subr.mxu0 0.0
    %3038 = vmatpush1.msra.mxu0 0.0
    %3039 = vmatprep.subr.mxu0 0.0
    %3040 = vmatpush1.msra.mxu0 0.0
    %3041 = vmatprep.subr.mxu0 0.0
    %3042 = vmatpush1.msra.mxu0 0.0
    %3043 = vmatprep.subr.mxu0 0.0
    %3044 = vmatpush1.msra.mxu0 0.0
    %3045 = vmatprep.subr.mxu0 0.0
    %3046 = vmatpush1.msra.mxu0 0.0
    %3047 = vmatprep.subr.mxu0 0.0
    %3048 = vmatpush1.msra.mxu0 0.0
    %3049 = vmatprep.subr.mxu0 0.0
    %3050 = vmatpush1.msra.mxu0 %v48
    %3051 = vmatprep.subr.mxu0 0.0
    %3052 = vmatpush1.msra.mxu0 %v47
    %3053 = vmatprep.subr.mxu0 0.0
    %3054 = vmatpush1.msra.mxu0 %v46
    %3055 = vmatprep.subr.mxu0 0.0
    %3056 = vmatpush1.msra.mxu0 %v45
    %3057 = vmatprep.subr.mxu0 0.0
    %3058 = vmatpush2.msra.mxu0 0.0
    %3059 = vmatprep.subr.mxu0 0.0
    %3060 = vmatpush2.msra.mxu0 0.0
    %3061 = vmatprep.subr.mxu0 0.0
    %3062 = vmatpush2.msra.mxu0 0.0
    %3063 = vmatprep.subr.mxu0 0.0
    %3064 = vmatpush2.msra.mxu0 0.0
    %3065 = vmatprep.subr.mxu0 0.0
    %3066 = vmatpush2.msra.mxu0 0.0
    %3067 = vmatprep.subr.mxu0 0.0
    %3068 = vmatpush2.msra.mxu0 0.0
    %3069 = vmatprep.subr.mxu0 0.0
    %3070 = vmatpush2.msra.mxu0 0.0
    %3071 = vmatprep.subr.mxu0 0.0
    %3072 = vmatpush2.msra.mxu0 0.0
    %3073 = vmatprep.subr.mxu0 0.0
    %3074 = vmatpush2.msra.mxu0 0.0
    %3075 = vmatprep.subr.mxu0 0.0
    %3076 = vmatpush2.msra.mxu0 0.0
    %3077 = vmatprep.subr.mxu0 0.0
    %3078 = vmatpush2.msra.mxu0 0.0
    %3079 = vmatprep.subr.mxu0 0.0
    %3080 = vmatpush2.msra.mxu0 0.0
    %3081 = vmatprep.subr.mxu0 0.0
    %3082 = vmatpush2.msra.mxu0 0.0
    %3083 = vmatprep.subr.mxu0 0.0
    %3084 = vmatpush2.msra.mxu0 0.0
    %3085 = vmatprep.subr.mxu0 0.0
    %3086 = vmatpush2.msra.mxu0 0.0
    %3087 = vmatprep.subr.mxu0 0.0
    %3088 = vmatpush2.msra.mxu0 0.0
    %3089 = vmatprep.mubr.f32.mxu0 0.0
    %3090 = vmatmul.mubr.f32.gmra.mxu0 %v2951
    %v3091 = vpop.f32.mrf.mxu0
    %v3092 = vadd.f32 %v59, %v3091
    %v3093 = vpop.f32.mrf.mxu0
    %3094 = vdwg.mxu0
    %v3095 = vtanh.pop %v3092
    %v3097 = vsel %vm151, %v3024, 0
    %3099 = vmatprep.subr.mxu0 0.0
    %3100 = vmatpush1.msra.mxu0 0.0
    %3101 = vmatprep.subr.mxu0 0.0
    %3102 = vmatpush1.msra.mxu0 0.0
    %3103 = vmatprep.subr.mxu0 0.0
    %3104 = vmatpush1.msra.mxu0 0.0
    %3105 = vmatprep.subr.mxu0 0.0
    %3106 = vmatpush1.msra.mxu0 0.0
    %3107 = vmatprep.subr.mxu0 0.0
    %3108 = vmatpush1.msra.mxu0 0.0
    %3109 = vmatprep.subr.mxu0 0.0
    %3110 = vmatpush1.msra.mxu0 0.0
    %3111 = vmatprep.subr.mxu0 0.0
    %3112 = vmatpush1.msra.mxu0 0.0
    %3113 = vmatprep.subr.mxu0 0.0
    %3114 = vmatpush1.msra.mxu0 0.0
    %3115 = vmatprep.subr.mxu0 0.0
    %3116 = vmatpush1.msra.mxu0 0.0
    %3117 = vmatprep.subr.mxu0 0.0
    %3118 = vmatpush1.msra.mxu0 0.0
    %3119 = vmatprep.subr.mxu0 0.0
    %3120 = vmatpush1.msra.mxu0 0.0
    %3121 = vmatprep.subr.mxu0 0.0
    %3122 = vmatpush1.msra.mxu0 0.0
    %3123 = vmatprep.subr.mxu0 0.0
    %3124 = vmatpush1.msra.mxu0 %v56
    %3125 = vmatprep.subr.mxu0 0.0
    %3126 = vmatpush1.msra.mxu0 %v55
    %3127 = vmatprep.subr.mxu0 0.0
    %3128 = vmatpush1.msra.mxu0 %v54
    %3129 = vmatprep.subr.mxu0 0.0
    %3130 = vmatpush1.msra.mxu0 %v53
    %3131 = vmatprep.subr.mxu0 0.0
    %3132 = vmatpush2.msra.mxu0 0.0
    %3133 = vmatprep.subr.mxu0 0.0
    %3134 = vmatpush2.msra.mxu0 0.0
    %3135 = vmatprep.subr.mxu0 0.0
    %3136 = vmatpush2.msra.mxu0 0.0
    %3137 = vmatprep.subr.mxu0 0.0
    %3138 = vmatpush2.msra.mxu0 0.0
    %3139 = vmatprep.subr.mxu0 0.0
    %3140 = vmatpush2.msra.mxu0 0.0
    %3141 = vmatprep.subr.mxu0 0.0
    %3142 = vmatpush2.msra.mxu0 0.0
    %3143 = vmatprep.subr.mxu0 0.0
    %3144 = vmatpush2.msra.mxu0 0.0
    %3145 = vmatprep.subr.mxu0 0.0
    %3146 = vmatpush2.msra.mxu0 0.0
    %3147 = vmatprep.subr.mxu0 0.0
    %3148 = vmatpush2.msra.mxu0 0.0
    %3149 = vmatprep.subr.mxu0 0.0
    %3150 = vmatpush2.msra.mxu0 0.0
    %3151 = vmatprep.subr.mxu0 0.0
    %3152 = vmatpush2.msra.mxu0 0.0
    %3153 = vmatprep.subr.mxu0 0.0
    %3154 = vmatpush2.msra.mxu0 0.0
    %3155 = vmatprep.subr.mxu0 0.0
    %3156 = vmatpush2.msra.mxu0 0.0
    %3157 = vmatprep.subr.mxu0 0.0
    %3158 = vmatpush2.msra.mxu0 0.0
    %3159 = vmatprep.subr.mxu0 0.0
    %3160 = vmatpush2.msra.mxu0 0.0
    %3161 = vmatprep.subr.mxu0 0.0
    %3162 = vmatpush2.msra.mxu0 0.0
    %3163 = vmatprep.mubr.f32.mxu0 0.0
    %3164 = vmatmul.mubr.f32.gmra.mxu0 %v3097
    %v3165 = vpop.f32.mrf.mxu0
    %v3166 = vadd.f32 0.0, %v3165
    %v3167 = vpop.f32.mrf.mxu0
    %3168 = vdwg.mxu0
    %v3170 = vsel %vm151, %v3095, 0
    %3172 = vmatprep.subr.mxu0 0.0
    %3173 = vmatpush1.msra.mxu0 0.0
    %3174 = vmatprep.subr.mxu0 0.0
    %3175 = vmatpush1.msra.mxu0 0.0
    %3176 = vmatprep.subr.mxu0 0.0
    %3177 = vmatpush1.msra.mxu0 0.0
    %3178 = vmatprep.subr.mxu0 0.0
    %3179 = vmatpush1.msra.mxu0 0.0
    %3180 = vmatprep.subr.mxu0 0.0
    %3181 = vmatpush1.msra.mxu0 0.0
    %3182 = vmatprep.subr.mxu0 0.0
    %3183 = vmatpush1.msra.mxu0 0.0
    %3184 = vmatprep.subr.mxu0 0.0
    %3185 = vmatpush1.msra.mxu0 0.0
    %3186 = vmatprep.subr.mxu0 0.0
    %3187 = vmatpush1.msra.mxu0 0.0
    %3188 = vmatprep.subr.mxu0 0.0
    %3189 = vmatpush1.msra.mxu0 0.0
    %3190 = vmatprep.subr.mxu0 0.0
    %3191 = vmatpush1.msra.mxu0 0.0
    %3192 = vmatprep.subr.mxu0 0.0
    %3193 = vmatpush1.msra.mxu0 0.0
    %3194 = vmatprep.subr.mxu0 0.0
    %3195 = vmatpush1.msra.mxu0 0.0
    %3196 = vmatprep.subr.mxu0 0.0
    %3197 = vmatpush1.msra.mxu0 %v52
    %3198 = vmatprep.subr.mxu0 0.0
    %3199 = vmatpush1.msra.mxu0 %v51
    %3200 = vmatprep.subr.mxu0 0.0
    %3201 = vmatpush1.msra.mxu0 %v50
    %3202 = vmatprep.subr.mxu0 0.0
    %3203 = vmatpush1.msra.mxu0 %v49
    %3204 = vmatprep.subr.mxu0 0.0
    %3205 = vmatpush2.msra.mxu0 0.0
    %3206 = vmatprep.subr.mxu0 0.0
    %3207 = vmatpush2.msra.mxu0 0.0
    %3208 = vmatprep.subr.mxu0 0.0
    %3209 = vmatpush2.msra.mxu0 0.0
    %3210 = vmatprep.subr.mxu0 0.0
    %3211 = vmatpush2.msra.mxu0 0.0
    %3212 = vmatprep.subr.mxu0 0.0
    %3213 = vmatpush2.msra.mxu0 0.0
    %3214 = vmatprep.subr.mxu0 0.0
    %3215 = vmatpush2.msra.mxu0 0.0
    %3216 = vmatprep.subr.mxu0 0.0
    %3217 = vmatpush2.msra.mxu0 0.0
    %3218 = vmatprep.subr.mxu0 0.0
    %3219 = vmatpush2.msra.mxu0 0.0
    %3220 = vmatprep.subr.mxu0 0.0
    %3221 = vmatpush2.msra.mxu0 0.0
    %3222 = vmatprep.subr.mxu0 0.0
    %3223 = vmatpush2.msra.mxu0 0.0
    %3224 = vmatprep.subr.mxu0 0.0
    %3225 = vmatpush2.msra.mxu0 0.0
    %3226 = vmatprep.subr.mxu0 0.0
    %3227 = vmatpush2.msra.mxu0 0.0
    %3228 = vmatprep.subr.mxu0 0.0
    %3229 = vmatpush2.msra.mxu0 0.0
    %3230 = vmatprep.subr.mxu0 0.0
    %3231 = vmatpush2.msra.mxu0 0.0
    %3232 = vmatprep.subr.mxu0 0.0
    %3233 = vmatpush2.msra.mxu0 0.0
    %3234 = vmatprep.subr.mxu0 0.0
    %3235 = vmatpush2.msra.mxu0 0.0
    %3236 = vmatprep.mubr.f32.mxu0 0.0
    %3237 = vmatmul.mubr.f32.gmra.mxu0 %v3170
    %v3238 = vpop.f32.mrf.mxu0
    %v3239 = vadd.f32 %v3166, %v3238
    %v3240 = vpop.f32.mrf.mxu0
    %3241 = vdwg.mxu0
    %v3242 = vadd.f32 %v3239, %v60
    %v3243 = vtanh.pop %v3242
    %3244 = vmatprep.subr.mxu0 0.0
    %3245 = vmatpush1.msra.mxu0 0.0
    %3246 = vmatprep.subr.mxu0 0.0
    %3247 = vmatpush1.msra.mxu0 0.0
    %3248 = vmatprep.subr.mxu0 0.0
    %3249 = vmatpush1.msra.mxu0 0.0
    %3250 = vmatprep.subr.mxu0 0.0
    %3251 = vmatpush1.msra.mxu0 0.0
    %3252 = vmatprep.subr.mxu0 0.0
    %3253 = vmatpush1.msra.mxu0 0.0
    %3254 = vmatprep.subr.mxu0 0.0
    %3255 = vmatpush1.msra.mxu0 0.0
    %3256 = vmatprep.subr.mxu0 0.0
    %3257 = vmatpush1.msra.mxu0 0.0
    %3258 = vmatprep.subr.mxu0 0.0
    %3259 = vmatpush1.msra.mxu0 0.0
    %3260 = vmatprep.subr.mxu0 0.0
    %3261 = vmatpush1.msra.mxu0 0.0
    %3262 = vmatprep.subr.mxu0 0.0
    %3263 = vmatpush1.msra.mxu0 0.0
    %3264 = vmatprep.subr.mxu0 0.0
    %3265 = vmatpush1.msra.mxu0 0.0
    %3266 = vmatprep.subr.mxu0 0.0
    %3267 = vmatpush1.msra.mxu0 0.0
    %3268 = vmatprep.subr.mxu0 0.0
    %3269 = vmatpush1.msra.mxu0 %v48
    %3270 = vmatprep.subr.mxu0 0.0
    %3271 = vmatpush1.msra.mxu0 %v47
    %3272 = vmatprep.subr.mxu0 0.0
    %3273 = vmatpush1.msra.mxu0 %v46
    %3274 = vmatprep.subr.mxu0 0.0
    %3275 = vmatpush1.msra.mxu0 %v45
    %3276 = vmatprep.subr.mxu0 0.0
    %3277 = vmatpush2.msra.mxu0 0.0
    %3278 = vmatprep.subr.mxu0 0.0
    %3279 = vmatpush2.msra.mxu0 0.0
    %3280 = vmatprep.subr.mxu0 0.0
    %3281 = vmatpush2.msra.mxu0 0.0
    %3282 = vmatprep.subr.mxu0 0.0
    %3283 = vmatpush2.msra.mxu0 0.0
    %3284 = vmatprep.subr.mxu0 0.0
    %3285 = vmatpush2.msra.mxu0 0.0
    %3286 = vmatprep.subr.mxu0 0.0
    %3287 = vmatpush2.msra.mxu0 0.0
    %3288 = vmatprep.subr.mxu0 0.0
    %3289 = vmatpush2.msra.mxu0 0.0
    %3290 = vmatprep.subr.mxu0 0.0
    %3291 = vmatpush2.msra.mxu0 0.0
    %3292 = vmatprep.subr.mxu0 0.0
    %3293 = vmatpush2.msra.mxu0 0.0
    %3294 = vmatprep.subr.mxu0 0.0
    %3295 = vmatpush2.msra.mxu0 0.0
    %3296 = vmatprep.subr.mxu0 0.0
    %3297 = vmatpush2.msra.mxu0 0.0
    %3298 = vmatprep.subr.mxu0 0.0
    %3299 = vmatpush2.msra.mxu0 0.0
    %3300 = vmatprep.subr.mxu0 0.0
    %3301 = vmatpush2.msra.mxu0 0.0
    %3302 = vmatprep.subr.mxu0 0.0
    %3303 = vmatpush2.msra.mxu0 0.0
    %3304 = vmatprep.subr.mxu0 0.0
    %3305 = vmatpush2.msra.mxu0 0.0
    %3306 = vmatprep.subr.mxu0 0.0
    %3307 = vmatpush2.msra.mxu0 0.0
    %3308 = vmatprep.mubr.f32.mxu0 0.0
    %3309 = vmatmul.mubr.f32.gmra.mxu0 %v3170
    %v3310 = vpop.f32.mrf.mxu0
    %v3311 = vadd.f32 %v59, %v3310
    %v3312 = vpop.f32.mrf.mxu0
    %3313 = vdwg.mxu0
    %v3314 = vtanh.pop %v3311
    %v3316 = vsel %vm151, %v3243, 0
    %3318 = vmatprep.subr.mxu0 0.0
    %3319 = vmatpush1.msra.mxu0 0.0
    %3320 = vmatprep.subr.mxu0 0.0
    %3321 = vmatpush1.msra.mxu0 0.0
    %3322 = vmatprep.subr.mxu0 0.0
    %3323 = vmatpush1.msra.mxu0 0.0
    %3324 = vmatprep.subr.mxu0 0.0
    %3325 = vmatpush1.msra.mxu0 0.0
    %3326 = vmatprep.subr.mxu0 0.0
    %3327 = vmatpush1.msra.mxu0 0.0
    %3328 = vmatprep.subr.mxu0 0.0
    %3329 = vmatpush1.msra.mxu0 0.0
    %3330 = vmatprep.subr.mxu0 0.0
    %3331 = vmatpush1.msra.mxu0 0.0
    %3332 = vmatprep.subr.mxu0 0.0
    %3333 = vmatpush1.msra.mxu0 0.0
    %3334 = vmatprep.subr.mxu0 0.0
    %3335 = vmatpush1.msra.mxu0 0.0
    %3336 = vmatprep.subr.mxu0 0.0
    %3337 = vmatpush1.msra.mxu0 0.0
    %3338 = vmatprep.subr.mxu0 0.0
    %3339 = vmatpush1.msra.mxu0 0.0
    %3340 = vmatprep.subr.mxu0 0.0
    %3341 = vmatpush1.msra.mxu0 0.0
    %3342 = vmatprep.subr.mxu0 0.0
    %3343 = vmatpush1.msra.mxu0 %v56
    %3344 = vmatprep.subr.mxu0 0.0
    %3345 = vmatpush1.msra.mxu0 %v55
    %3346 = vmatprep.subr.mxu0 0.0
    %3347 = vmatpush1.msra.mxu0 %v54
    %3348 = vmatprep.subr.mxu0 0.0
    %3349 = vmatpush1.msra.mxu0 %v53
    %3350 = vmatprep.subr.mxu0 0.0
    %3351 = vmatpush2.msra.mxu0 0.0
    %3352 = vmatprep.subr.mxu0 0.0
    %3353 = vmatpush2.msra.mxu0 0.0
    %3354 = vmatprep.subr.mxu0 0.0
    %3355 = vmatpush2.msra.mxu0 0.0
    %3356 = vmatprep.subr.mxu0 0.0
    %3357 = vmatpush2.msra.mxu0 0.0
    %3358 = vmatprep.subr.mxu0 0.0
    %3359 = vmatpush2.msra.mxu0 0.0
    %3360 = vmatprep.subr.mxu0 0.0
    %3361 = vmatpush2.msra.mxu0 0.0
    %3362 = vmatprep.subr.mxu0 0.0
    %3363 = vmatpush2.msra.mxu0 0.0
    %3364 = vmatprep.subr.mxu0 0.0
    %3365 = vmatpush2.msra.mxu0 0.0
    %3366 = vmatprep.subr.mxu0 0.0
    %3367 = vmatpush2.msra.mxu0 0.0
    %3368 = vmatprep.subr.mxu0 0.0
    %3369 = vmatpush2.msra.mxu0 0.0
    %3370 = vmatprep.subr.mxu0 0.0
    %3371 = vmatpush2.msra.mxu0 0.0
    %3372 = vmatprep.subr.mxu0 0.0
    %3373 = vmatpush2.msra.mxu0 0.0
    %3374 = vmatprep.subr.mxu0 0.0
    %3375 = vmatpush2.msra.mxu0 0.0
    %3376 = vmatprep.subr.mxu0 0.0
    %3377 = vmatpush2.msra.mxu0 0.0
    %3378 = vmatprep.subr.mxu0 0.0
    %3379 = vmatpush2.msra.mxu0 0.0
    %3380 = vmatprep.subr.mxu0 0.0
    %3381 = vmatpush2.msra.mxu0 0.0
    %3382 = vmatprep.mubr.f32.mxu0 0.0
    %3383 = vmatmul.mubr.f32.gmra.mxu0 %v3316
    %v3384 = vpop.f32.mrf.mxu0
    %v3385 = vadd.f32 0.0, %v3384
    %v3386 = vpop.f32.mrf.mxu0
    %3387 = vdwg.mxu0
    %v3389 = vsel %vm151, %v3314, 0
    %3391 = vmatprep.subr.mxu0 0.0
    %3392 = vmatpush1.msra.mxu0 0.0
    %3393 = vmatprep.subr.mxu0 0.0
    %3394 = vmatpush1.msra.mxu0 0.0
    %3395 = vmatprep.subr.mxu0 0.0
    %3396 = vmatpush1.msra.mxu0 0.0
    %3397 = vmatprep.subr.mxu0 0.0
    %3398 = vmatpush1.msra.mxu0 0.0
    %3399 = vmatprep.subr.mxu0 0.0
    %3400 = vmatpush1.msra.mxu0 0.0
    %3401 = vmatprep.subr.mxu0 0.0
    %3402 = vmatpush1.msra.mxu0 0.0
    %3403 = vmatprep.subr.mxu0 0.0
    %3404 = vmatpush1.msra.mxu0 0.0
    %3405 = vmatprep.subr.mxu0 0.0
    %3406 = vmatpush1.msra.mxu0 0.0
    %3407 = vmatprep.subr.mxu0 0.0
    %3408 = vmatpush1.msra.mxu0 0.0
    %3409 = vmatprep.subr.mxu0 0.0
    %3410 = vmatpush1.msra.mxu0 0.0
    %3411 = vmatprep.subr.mxu0 0.0
    %3412 = vmatpush1.msra.mxu0 0.0
    %3413 = vmatprep.subr.mxu0 0.0
    %3414 = vmatpush1.msra.mxu0 0.0
    %3415 = vmatprep.subr.mxu0 0.0
    %3416 = vmatpush1.msra.mxu0 %v52
    %3417 = vmatprep.subr.mxu0 0.0
    %3418 = vmatpush1.msra.mxu0 %v51
    %3419 = vmatprep.subr.mxu0 0.0
    %3420 = vmatpush1.msra.mxu0 %v50
    %3421 = vmatprep.subr.mxu0 0.0
    %3422 = vmatpush1.msra.mxu0 %v49
    %3423 = vmatprep.subr.mxu0 0.0
    %3424 = vmatpush2.msra.mxu0 0.0
    %3425 = vmatprep.subr.mxu0 0.0
    %3426 = vmatpush2.msra.mxu0 0.0
    %3427 = vmatprep.subr.mxu0 0.0
    %3428 = vmatpush2.msra.mxu0 0.0
    %3429 = vmatprep.subr.mxu0 0.0
    %3430 = vmatpush2.msra.mxu0 0.0
    %3431 = vmatprep.subr.mxu0 0.0
    %3432 = vmatpush2.msra.mxu0 0.0
    %3433 = vmatprep.subr.mxu0 0.0
    %3434 = vmatpush2.msra.mxu0 0.0
    %3435 = vmatprep.subr.mxu0 0.0
    %3436 = vmatpush2.msra.mxu0 0.0
    %3437 = vmatprep.subr.mxu0 0.0
    %3438 = vmatpush2.msra.mxu0 0.0
    %3439 = vmatprep.subr.mxu0 0.0
    %3440 = vmatpush2.msra.mxu0 0.0
    %3441 = vmatprep.subr.mxu0 0.0
    %3442 = vmatpush2.msra.mxu0 0.0
    %3443 = vmatprep.subr.mxu0 0.0
    %3444 = vmatpush2.msra.mxu0 0.0
    %3445 = vmatprep.subr.mxu0 0.0
    %3446 = vmatpush2.msra.mxu0 0.0
    %3447 = vmatprep.subr.mxu0 0.0
    %3448 = vmatpush2.msra.mxu0 0.0
    %3449 = vmatprep.subr.mxu0 0.0
    %3450 = vmatpush2.msra.mxu0 0.0
    %3451 = vmatprep.subr.mxu0 0.0
    %3452 = vmatpush2.msra.mxu0 0.0
    %3453 = vmatprep.subr.mxu0 0.0
    %3454 = vmatpush2.msra.mxu0 0.0
    %3455 = vmatprep.mubr.f32.mxu0 0.0
    %3456 = vmatmul.mubr.f32.gmra.mxu0 %v3389
    %v3457 = vpop.f32.mrf.mxu0
    %v3458 = vadd.f32 %v3385, %v3457
    %v3459 = vpop.f32.mrf.mxu0
    %3460 = vdwg.mxu0
    %v3461 = vadd.f32 %v3458, %v60
    %v3462 = vtanh.pop %v3461
    %3463 = vmatprep.subr.mxu0 0.0
    %3464 = vmatpush1.msra.mxu0 0.0
    %3465 = vmatprep.subr.mxu0 0.0
    %3466 = vmatpush1.msra.mxu0 0.0
    %3467 = vmatprep.subr.mxu0 0.0
    %3468 = vmatpush1.msra.mxu0 0.0
    %3469 = vmatprep.subr.mxu0 0.0
    %3470 = vmatpush1.msra.mxu0 0.0
    %3471 = vmatprep.subr.mxu0 0.0
    %3472 = vmatpush1.msra.mxu0 0.0
    %3473 = vmatprep.subr.mxu0 0.0
    %3474 = vmatpush1.msra.mxu0 0.0
    %3475 = vmatprep.subr.mxu0 0.0
    %3476 = vmatpush1.msra.mxu0 0.0
    %3477 = vmatprep.subr.mxu0 0.0
    %3478 = vmatpush1.msra.mxu0 0.0
    %3479 = vmatprep.subr.mxu0 0.0
    %3480 = vmatpush1.msra.mxu0 0.0
    %3481 = vmatprep.subr.mxu0 0.0
    %3482 = vmatpush1.msra.mxu0 0.0
    %3483 = vmatprep.subr.mxu0 0.0
    %3484 = vmatpush1.msra.mxu0 0.0
    %3485 = vmatprep.subr.mxu0 0.0
    %3486 = vmatpush1.msra.mxu0 0.0
    %3487 = vmatprep.subr.mxu0 0.0
    %3488 = vmatpush1.msra.mxu0 %v48
    %3489 = vmatprep.subr.mxu0 0.0
    %3490 = vmatpush1.msra.mxu0 %v47
    %3491 = vmatprep.subr.mxu0 0.0
    %3492 = vmatpush1.msra.mxu0 %v46
    %3493 = vmatprep.subr.mxu0 0.0
    %3494 = vmatpush1.msra.mxu0 %v45
    %3495 = vmatprep.subr.mxu0 0.0
    %3496 = vmatpush2.msra.mxu0 0.0
    %3497 = vmatprep.subr.mxu0 0.0
    %3498 = vmatpush2.msra.mxu0 0.0
    %3499 = vmatprep.subr.mxu0 0.0
    %3500 = vmatpush2.msra.mxu0 0.0
    %3501 = vmatprep.subr.mxu0 0.0
    %3502 = vmatpush2.msra.mxu0 0.0
    %3503 = vmatprep.subr.mxu0 0.0
    %3504 = vmatpush2.msra.mxu0 0.0
    %3505 = vmatprep.subr.mxu0 0.0
    %3506 = vmatpush2.msra.mxu0 0.0
    %3507 = vmatprep.subr.mxu0 0.0
    %3508 = vmatpush2.msra.mxu0 0.0
    %3509 = vmatprep.subr.mxu0 0.0
    %3510 = vmatpush2.msra.mxu0 0.0
    %3511 = vmatprep.subr.mxu0 0.0
    %3512 = vmatpush2.msra.mxu0 0.0
    %3513 = vmatprep.subr.mxu0 0.0
    %3514 = vmatpush2.msra.mxu0 0.0
    %3515 = vmatprep.subr.mxu0 0.0
    %3516 = vmatpush2.msra.mxu0 0.0
    %3517 = vmatprep.subr.mxu0 0.0
    %3518 = vmatpush2.msra.mxu0 0.0
    %3519 = vmatprep.subr.mxu0 0.0
    %3520 = vmatpush2.msra.mxu0 0.0
    %3521 = vmatprep.subr.mxu0 0.0
    %3522 = vmatpush2.msra.mxu0 0.0
    %3523 = vmatprep.subr.mxu0 0.0
    %3524 = vmatpush2.msra.mxu0 0.0
    %3525 = vmatprep.subr.mxu0 0.0
    %3526 = vmatpush2.msra.mxu0 0.0
    %3527 = vmatprep.mubr.f32.mxu0 0.0
    %3528 = vmatmul.mubr.f32.gmra.mxu0 %v3389
    %v3529 = vpop.f32.mrf.mxu0
    %v3530 = vadd.f32 %v59, %v3529
    %v3531 = vpop.f32.mrf.mxu0
    %3532 = vdwg.mxu0
    %v3533 = vtanh.pop %v3530
    %v3535 = vsel %vm151, %v3462, 0
    %3537 = vmatprep.subr.mxu0 0.0
    %3538 = vmatpush1.msra.mxu0 0.0
    %3539 = vmatprep.subr.mxu0 0.0
    %3540 = vmatpush1.msra.mxu0 0.0
    %3541 = vmatprep.subr.mxu0 0.0
    %3542 = vmatpush1.msra.mxu0 0.0
    %3543 = vmatprep.subr.mxu0 0.0
    %3544 = vmatpush1.msra.mxu0 0.0
    %3545 = vmatprep.subr.mxu0 0.0
    %3546 = vmatpush1.msra.mxu0 0.0
    %3547 = vmatprep.subr.mxu0 0.0
    %3548 = vmatpush1.msra.mxu0 0.0
    %3549 = vmatprep.subr.mxu0 0.0
    %3550 = vmatpush1.msra.mxu0 0.0
    %3551 = vmatprep.subr.mxu0 0.0
    %3552 = vmatpush1.msra.mxu0 0.0
    %3553 = vmatprep.subr.mxu0 0.0
    %3554 = vmatpush1.msra.mxu0 0.0
    %3555 = vmatprep.subr.mxu0 0.0
    %3556 = vmatpush1.msra.mxu0 0.0
    %3557 = vmatprep.subr.mxu0 0.0
    %3558 = vmatpush1.msra.mxu0 0.0
    %3559 = vmatprep.subr.mxu0 0.0
    %3560 = vmatpush1.msra.mxu0 0.0
    %3561 = vmatprep.subr.mxu0 0.0
    %3562 = vmatpush1.msra.mxu0 %v56
    %3563 = vmatprep.subr.mxu0 0.0
    %3564 = vmatpush1.msra.mxu0 %v55
    %3565 = vmatprep.subr.mxu0 0.0
    %3566 = vmatpush1.msra.mxu0 %v54
    %3567 = vmatprep.subr.mxu0 0.0
    %3568 = vmatpush1.msra.mxu0 %v53
    %3569 = vmatprep.subr.mxu0 0.0
    %3570 = vmatpush2.msra.mxu0 0.0
    %3571 = vmatprep.subr.mxu0 0.0
    %3572 = vmatpush2.msra.mxu0 0.0
    %3573 = vmatprep.subr.mxu0 0.0
    %3574 = vmatpush2.msra.mxu0 0.0
    %3575 = vmatprep.subr.mxu0 0.0
    %3576 = vmatpush2.msra.mxu0 0.0
    %3577 = vmatprep.subr.mxu0 0.0
    %3578 = vmatpush2.msra.mxu0 0.0
    %3579 = vmatprep.subr.mxu0 0.0
    %3580 = vmatpush2.msra.mxu0 0.0
    %3581 = vmatprep.subr.mxu0 0.0
    %3582 = vmatpush2.msra.mxu0 0.0
    %3583 = vmatprep.subr.mxu0 0.0
    %3584 = vmatpush2.msra.mxu0 0.0
    %3585 = vmatprep.subr.mxu0 0.0
    %3586 = vmatpush2.msra.mxu0 0.0
    %3587 = vmatprep.subr.mxu0 0.0
    %3588 = vmatpush2.msra.mxu0 0.0
    %3589 = vmatprep.subr.mxu0 0.0
    %3590 = vmatpush2.msra.mxu0 0.0
    %3591 = vmatprep.subr.mxu0 0.0
    %3592 = vmatpush2.msra.mxu0 0.0
    %3593 = vmatprep.subr.mxu0 0.0
    %3594 = vmatpush2.msra.mxu0 0.0
    %3595 = vmatprep.subr.mxu0 0.0
    %3596 = vmatpush2.msra.mxu0 0.0
    %3597 = vmatprep.subr.mxu0 0.0
    %3598 = vmatpush2.msra.mxu0 0.0
    %3599 = vmatprep.subr.mxu0 0.0
    %3600 = vmatpush2.msra.mxu0 0.0
    %3601 = vmatprep.mubr.f32.mxu0 0.0
    %3602 = vmatmul.mubr.f32.gmra.mxu0 %v3535
    %v3603 = vpop.f32.mrf.mxu0
    %v3604 = vadd.f32 0.0, %v3603
    %v3605 = vpop.f32.mrf.mxu0
    %3606 = vdwg.mxu0
    %v3608 = vsel %vm151, %v3533, 0
    %3610 = vmatprep.subr.mxu0 0.0
    %3611 = vmatpush1.msra.mxu0 0.0
    %3612 = vmatprep.subr.mxu0 0.0
    %3613 = vmatpush1.msra.mxu0 0.0
    %3614 = vmatprep.subr.mxu0 0.0
    %3615 = vmatpush1.msra.mxu0 0.0
    %3616 = vmatprep.subr.mxu0 0.0
    %3617 = vmatpush1.msra.mxu0 0.0
    %3618 = vmatprep.subr.mxu0 0.0
    %3619 = vmatpush1.msra.mxu0 0.0
    %3620 = vmatprep.subr.mxu0 0.0
    %3621 = vmatpush1.msra.mxu0 0.0
    %3622 = vmatprep.subr.mxu0 0.0
    %3623 = vmatpush1.msra.mxu0 0.0
    %3624 = vmatprep.subr.mxu0 0.0
    %3625 = vmatpush1.msra.mxu0 0.0
    %3626 = vmatprep.subr.mxu0 0.0
    %3627 = vmatpush1.msra.mxu0 0.0
    %3628 = vmatprep.subr.mxu0 0.0
    %3629 = vmatpush1.msra.mxu0 0.0
    %3630 = vmatprep.subr.mxu0 0.0
    %3631 = vmatpush1.msra.mxu0 0.0
    %3632 = vmatprep.subr.mxu0 0.0
    %3633 = vmatpush1.msra.mxu0 0.0
    %3634 = vmatprep.subr.mxu0 0.0
    %3635 = vmatpush1.msra.mxu0 %v52
    %3636 = vmatprep.subr.mxu0 0.0
    %3637 = vmatpush1.msra.mxu0 %v51
    %3638 = vmatprep.subr.mxu0 0.0
    %3639 = vmatpush1.msra.mxu0 %v50
    %3640 = vmatprep.subr.mxu0 0.0
    %3641 = vmatpush1.msra.mxu0 %v49
    %3642 = vmatprep.subr.mxu0 0.0
    %3643 = vmatpush2.msra.mxu0 0.0
    %3644 = vmatprep.subr.mxu0 0.0
    %3645 = vmatpush2.msra.mxu0 0.0
    %3646 = vmatprep.subr.mxu0 0.0
    %3647 = vmatpush2.msra.mxu0 0.0
    %3648 = vmatprep.subr.mxu0 0.0
    %3649 = vmatpush2.msra.mxu0 0.0
    %3650 = vmatprep.subr.mxu0 0.0
    %3651 = vmatpush2.msra.mxu0 0.0
    %3652 = vmatprep.subr.mxu0 0.0
    %3653 = vmatpush2.msra.mxu0 0.0
    %3654 = vmatprep.subr.mxu0 0.0
    %3655 = vmatpush2.msra.mxu0 0.0
    %3656 = vmatprep.subr.mxu0 0.0
    %3657 = vmatpush2.msra.mxu0 0.0
    %3658 = vmatprep.subr.mxu0 0.0
    %3659 = vmatpush2.msra.mxu0 0.0
    %3660 = vmatprep.subr.mxu0 0.0
    %3661 = vmatpush2.msra.mxu0 0.0
    %3662 = vmatprep.subr.mxu0 0.0
    %3663 = vmatpush2.msra.mxu0 0.0
    %3664 = vmatprep.subr.mxu0 0.0
    %3665 = vmatpush2.msra.mxu0 0.0
    %3666 = vmatprep.subr.mxu0 0.0
    %3667 = vmatpush2.msra.mxu0 0.0
    %3668 = vmatprep.subr.mxu0 0.0
    %3669 = vmatpush2.msra.mxu0 0.0
    %3670 = vmatprep.subr.mxu0 0.0
    %3671 = vmatpush2.msra.mxu0 0.0
    %3672 = vmatprep.subr.mxu0 0.0
    %3673 = vmatpush2.msra.mxu0 0.0
    %3674 = vmatprep.mubr.f32.mxu0 0.0
    %3675 = vmatmul.mubr.f32.gmra.mxu0 %v3608
    %v3676 = vpop.f32.mrf.mxu0
    %v3677 = vadd.f32 %v3604, %v3676
    %v3678 = vpop.f32.mrf.mxu0
    %3679 = vdwg.mxu0
    %v3680 = vadd.f32 %v3677, %v60
    %v3681 = vtanh.pop %v3680
    %3682 = vmatprep.subr.mxu0 0.0
    %3683 = vmatpush1.msra.mxu0 0.0
    %3684 = vmatprep.subr.mxu0 0.0
    %3685 = vmatpush1.msra.mxu0 0.0
    %3686 = vmatprep.subr.mxu0 0.0
    %3687 = vmatpush1.msra.mxu0 0.0
    %3688 = vmatprep.subr.mxu0 0.0
    %3689 = vmatpush1.msra.mxu0 0.0
    %3690 = vmatprep.subr.mxu0 0.0
    %3691 = vmatpush1.msra.mxu0 0.0
    %3692 = vmatprep.subr.mxu0 0.0
    %3693 = vmatpush1.msra.mxu0 0.0
    %3694 = vmatprep.subr.mxu0 0.0
    %3695 = vmatpush1.msra.mxu0 0.0
    %3696 = vmatprep.subr.mxu0 0.0
    %3697 = vmatpush1.msra.mxu0 0.0
    %3698 = vmatprep.subr.mxu0 0.0
    %3699 = vmatpush1.msra.mxu0 0.0
    %3700 = vmatprep.subr.mxu0 0.0
    %3701 = vmatpush1.msra.mxu0 0.0
    %3702 = vmatprep.subr.mxu0 0.0
    %3703 = vmatpush1.msra.mxu0 0.0
    %3704 = vmatprep.subr.mxu0 0.0
    %3705 = vmatpush1.msra.mxu0 0.0
    %3706 = vmatprep.subr.mxu0 0.0
    %3707 = vmatpush1.msra.mxu0 %v48
    %3708 = vmatprep.subr.mxu0 0.0
    %3709 = vmatpush1.msra.mxu0 %v47
    %3710 = vmatprep.subr.mxu0 0.0
    %3711 = vmatpush1.msra.mxu0 %v46
    %3712 = vmatprep.subr.mxu0 0.0
    %3713 = vmatpush1.msra.mxu0 %v45
    %3714 = vmatprep.subr.mxu0 0.0
    %3715 = vmatpush2.msra.mxu0 0.0
    %3716 = vmatprep.subr.mxu0 0.0
    %3717 = vmatpush2.msra.mxu0 0.0
    %3718 = vmatprep.subr.mxu0 0.0
    %3719 = vmatpush2.msra.mxu0 0.0
    %3720 = vmatprep.subr.mxu0 0.0
    %3721 = vmatpush2.msra.mxu0 0.0
    %3722 = vmatprep.subr.mxu0 0.0
    %3723 = vmatpush2.msra.mxu0 0.0
    %3724 = vmatprep.subr.mxu0 0.0
    %3725 = vmatpush2.msra.mxu0 0.0
    %3726 = vmatprep.subr.mxu0 0.0
    %3727 = vmatpush2.msra.mxu0 0.0
    %3728 = vmatprep.subr.mxu0 0.0
    %3729 = vmatpush2.msra.mxu0 0.0
    %3730 = vmatprep.subr.mxu0 0.0
    %3731 = vmatpush2.msra.mxu0 0.0
    %3732 = vmatprep.subr.mxu0 0.0
    %3733 = vmatpush2.msra.mxu0 0.0
    %3734 = vmatprep.subr.mxu0 0.0
    %3735 = vmatpush2.msra.mxu0 0.0
    %3736 = vmatprep.subr.mxu0 0.0
    %3737 = vmatpush2.msra.mxu0 0.0
    %3738 = vmatprep.subr.mxu0 0.0
    %3739 = vmatpush2.msra.mxu0 0.0
    %3740 = vmatprep.subr.mxu0 0.0
    %3741 = vmatpush2.msra.mxu0 0.0
    %3742 = vmatprep.subr.mxu0 0.0
    %3743 = vmatpush2.msra.mxu0 0.0
    %3744 = vmatprep.subr.mxu0 0.0
    %3745 = vmatpush2.msra.mxu0 0.0
    %3746 = vmatprep.mubr.f32.mxu0 0.0
    %3747 = vmatmul.mubr.f32.gmra.mxu0 %v3608
    %v3748 = vpop.f32.mrf.mxu0
    %v3749 = vadd.f32 %v59, %v3748
    %v3750 = vpop.f32.mrf.mxu0
    %3751 = vdwg.mxu0
    %v3752 = vtanh.pop %v3749
    %v3754 = vsel %vm151, %v3681, 0
    %3756 = vmatprep.subr.mxu0 0.0
    %3757 = vmatpush1.msra.mxu0 0.0
    %3758 = vmatprep.subr.mxu0 0.0
    %3759 = vmatpush1.msra.mxu0 0.0
    %3760 = vmatprep.subr.mxu0 0.0
    %3761 = vmatpush1.msra.mxu0 0.0
    %3762 = vmatprep.subr.mxu0 0.0
    %3763 = vmatpush1.msra.mxu0 0.0
    %3764 = vmatprep.subr.mxu0 0.0
    %3765 = vmatpush1.msra.mxu0 0.0
    %3766 = vmatprep.subr.mxu0 0.0
    %3767 = vmatpush1.msra.mxu0 0.0
    %3768 = vmatprep.subr.mxu0 0.0
    %3769 = vmatpush1.msra.mxu0 0.0
    %3770 = vmatprep.subr.mxu0 0.0
    %3771 = vmatpush1.msra.mxu0 0.0
    %3772 = vmatprep.subr.mxu0 0.0
    %3773 = vmatpush1.msra.mxu0 0.0
    %3774 = vmatprep.subr.mxu0 0.0
    %3775 = vmatpush1.msra.mxu0 0.0
    %3776 = vmatprep.subr.mxu0 0.0
    %3777 = vmatpush1.msra.mxu0 0.0
    %3778 = vmatprep.subr.mxu0 0.0
    %3779 = vmatpush1.msra.mxu0 0.0
    %3780 = vmatprep.subr.mxu0 0.0
    %3781 = vmatpush1.msra.mxu0 %v56
    %3782 = vmatprep.subr.mxu0 0.0
    %3783 = vmatpush1.msra.mxu0 %v55
    %3784 = vmatprep.subr.mxu0 0.0
    %3785 = vmatpush1.msra.mxu0 %v54
    %3786 = vmatprep.subr.mxu0 0.0
    %3787 = vmatpush1.msra.mxu0 %v53
    %3788 = vmatprep.subr.mxu0 0.0
    %3789 = vmatpush2.msra.mxu0 0.0
    %3790 = vmatprep.subr.mxu0 0.0
    %3791 = vmatpush2.msra.mxu0 0.0
    %3792 = vmatprep.subr.mxu0 0.0
    %3793 = vmatpush2.msra.mxu0 0.0
    %3794 = vmatprep.subr.mxu0 0.0
    %3795 = vmatpush2.msra.mxu0 0.0
    %3796 = vmatprep.subr.mxu0 0.0
    %3797 = vmatpush2.msra.mxu0 0.0
    %3798 = vmatprep.subr.mxu0 0.0
    %3799 = vmatpush2.msra.mxu0 0.0
    %3800 = vmatprep.subr.mxu0 0.0
    %3801 = vmatpush2.msra.mxu0 0.0
    %3802 = vmatprep.subr.mxu0 0.0
    %3803 = vmatpush2.msra.mxu0 0.0
    %3804 = vmatprep.subr.mxu0 0.0
    %3805 = vmatpush2.msra.mxu0 0.0
    %3806 = vmatprep.subr.mxu0 0.0
    %3807 = vmatpush2.msra.mxu0 0.0
    %3808 = vmatprep.subr.mxu0 0.0
    %3809 = vmatpush2.msra.mxu0 0.0
    %3810 = vmatprep.subr.mxu0 0.0
    %3811 = vmatpush2.msra.mxu0 0.0
    %3812 = vmatprep.subr.mxu0 0.0
    %3813 = vmatpush2.msra.mxu0 0.0
    %3814 = vmatprep.subr.mxu0 0.0
    %3815 = vmatpush2.msra.mxu0 0.0
    %3816 = vmatprep.subr.mxu0 0.0
    %3817 = vmatpush2.msra.mxu0 0.0
    %3818 = vmatprep.subr.mxu0 0.0
    %3819 = vmatpush2.msra.mxu0 0.0
    %3820 = vmatprep.mubr.f32.mxu0 0.0
    %3821 = vmatmul.mubr.f32.gmra.mxu0 %v3754
    %v3822 = vpop.f32.mrf.mxu0
    %v3823 = vadd.f32 0.0, %v3822
    %v3824 = vpop.f32.mrf.mxu0
    %3825 = vdwg.mxu0
    %v3827 = vsel %vm151, %v3752, 0
    %3829 = vmatprep.subr.mxu0 0.0
    %3830 = vmatpush1.msra.mxu0 0.0
    %3831 = vmatprep.subr.mxu0 0.0
    %3832 = vmatpush1.msra.mxu0 0.0
    %3833 = vmatprep.subr.mxu0 0.0
    %3834 = vmatpush1.msra.mxu0 0.0
    %3835 = vmatprep.subr.mxu0 0.0
    %3836 = vmatpush1.msra.mxu0 0.0
    %3837 = vmatprep.subr.mxu0 0.0
    %3838 = vmatpush1.msra.mxu0 0.0
    %3839 = vmatprep.subr.mxu0 0.0
    %3840 = vmatpush1.msra.mxu0 0.0
    %3841 = vmatprep.subr.mxu0 0.0
    %3842 = vmatpush1.msra.mxu0 0.0
    %3843 = vmatprep.subr.mxu0 0.0
    %3844 = vmatpush1.msra.mxu0 0.0
    %3845 = vmatprep.subr.mxu0 0.0
    %3846 = vmatpush1.msra.mxu0 0.0
    %3847 = vmatprep.subr.mxu0 0.0
    %3848 = vmatpush1.msra.mxu0 0.0
    %3849 = vmatprep.subr.mxu0 0.0
    %3850 = vmatpush1.msra.mxu0 0.0
    %3851 = vmatprep.subr.mxu0 0.0
    %3852 = vmatpush1.msra.mxu0 0.0
    %3853 = vmatprep.subr.mxu0 0.0
    %3854 = vmatpush1.msra.mxu0 %v52
    %3855 = vmatprep.subr.mxu0 0.0
    %3856 = vmatpush1.msra.mxu0 %v51
    %3857 = vmatprep.subr.mxu0 0.0
    %3858 = vmatpush1.msra.mxu0 %v50
    %3859 = vmatprep.subr.mxu0 0.0
    %3860 = vmatpush1.msra.mxu0 %v49
    %3861 = vmatprep.subr.mxu0 0.0
    %3862 = vmatpush2.msra.mxu0 0.0
    %3863 = vmatprep.subr.mxu0 0.0
    %3864 = vmatpush2.msra.mxu0 0.0
    %3865 = vmatprep.subr.mxu0 0.0
    %3866 = vmatpush2.msra.mxu0 0.0
    %3867 = vmatprep.subr.mxu0 0.0
    %3868 = vmatpush2.msra.mxu0 0.0
    %3869 = vmatprep.subr.mxu0 0.0
    %3870 = vmatpush2.msra.mxu0 0.0
    %3871 = vmatprep.subr.mxu0 0.0
    %3872 = vmatpush2.msra.mxu0 0.0
    %3873 = vmatprep.subr.mxu0 0.0
    %3874 = vmatpush2.msra.mxu0 0.0
    %3875 = vmatprep.subr.mxu0 0.0
    %3876 = vmatpush2.msra.mxu0 0.0
    %3877 = vmatprep.subr.mxu0 0.0
    %3878 = vmatpush2.msra.mxu0 0.0
    %3879 = vmatprep.subr.mxu0 0.0
    %3880 = vmatpush2.msra.mxu0 0.0
    %3881 = vmatprep.subr.mxu0 0.0
    %3882 = vmatpush2.msra.mxu0 0.0
    %3883 = vmatprep.subr.mxu0 0.0
    %3884 = vmatpush2.msra.mxu0 0.0
    %3885 = vmatprep.subr.mxu0 0.0
    %3886 = vmatpush2.msra.mxu0 0.0
    %3887 = vmatprep.subr.mxu0 0.0
    %3888 = vmatpush2.msra.mxu0 0.0
    %3889 = vmatprep.subr.mxu0 0.0
    %3890 = vmatpush2.msra.mxu0 0.0
    %3891 = vmatprep.subr.mxu0 0.0
    %3892 = vmatpush2.msra.mxu0 0.0
    %3893 = vmatprep.mubr.f32.mxu0 0.0
    %3894 = vmatmul.mubr.f32.gmra.mxu0 %v3827
    %v3895 = vpop.f32.mrf.mxu0
    %v3896 = vadd.f32 %v3823, %v3895
    %v3897 = vpop.f32.mrf.mxu0
    %3898 = vdwg.mxu0
    %v3899 = vadd.f32 %v3896, %v60
    %v3900 = vtanh.pop %v3899
    %3901 = vmatprep.subr.mxu0 0.0
    %3902 = vmatpush1.msra.mxu0 0.0
    %3903 = vmatprep.subr.mxu0 0.0
    %3904 = vmatpush1.msra.mxu0 0.0
    %3905 = vmatprep.subr.mxu0 0.0
    %3906 = vmatpush1.msra.mxu0 0.0
    %3907 = vmatprep.subr.mxu0 0.0
    %3908 = vmatpush1.msra.mxu0 0.0
    %3909 = vmatprep.subr.mxu0 0.0
    %3910 = vmatpush1.msra.mxu0 0.0
    %3911 = vmatprep.subr.mxu0 0.0
    %3912 = vmatpush1.msra.mxu0 0.0
    %3913 = vmatprep.subr.mxu0 0.0
    %3914 = vmatpush1.msra.mxu0 0.0
    %3915 = vmatprep.subr.mxu0 0.0
    %3916 = vmatpush1.msra.mxu0 0.0
    %3917 = vmatprep.subr.mxu0 0.0
    %3918 = vmatpush1.msra.mxu0 0.0
    %3919 = vmatprep.subr.mxu0 0.0
    %3920 = vmatpush1.msra.mxu0 0.0
    %3921 = vmatprep.subr.mxu0 0.0
    %3922 = vmatpush1.msra.mxu0 0.0
    %3923 = vmatprep.subr.mxu0 0.0
    %3924 = vmatpush1.msra.mxu0 0.0
    %3925 = vmatprep.subr.mxu0 0.0
    %3926 = vmatpush1.msra.mxu0 %v48
    %3927 = vmatprep.subr.mxu0 0.0
    %3928 = vmatpush1.msra.mxu0 %v47
    %3929 = vmatprep.subr.mxu0 0.0
    %3930 = vmatpush1.msra.mxu0 %v46
    %3931 = vmatprep.subr.mxu0 0.0
    %3932 = vmatpush1.msra.mxu0 %v45
    %3933 = vmatprep.subr.mxu0 0.0
    %3934 = vmatpush2.msra.mxu0 0.0
    %3935 = vmatprep.subr.mxu0 0.0
    %3936 = vmatpush2.msra.mxu0 0.0
    %3937 = vmatprep.subr.mxu0 0.0
    %3938 = vmatpush2.msra.mxu0 0.0
    %3939 = vmatprep.subr.mxu0 0.0
    %3940 = vmatpush2.msra.mxu0 0.0
    %3941 = vmatprep.subr.mxu0 0.0
    %3942 = vmatpush2.msra.mxu0 0.0
    %3943 = vmatprep.subr.mxu0 0.0
    %3944 = vmatpush2.msra.mxu0 0.0
    %3945 = vmatprep.subr.mxu0 0.0
    %3946 = vmatpush2.msra.mxu0 0.0
    %3947 = vmatprep.subr.mxu0 0.0
    %3948 = vmatpush2.msra.mxu0 0.0
    %3949 = vmatprep.subr.mxu0 0.0
    %3950 = vmatpush2.msra.mxu0 0.0
    %3951 = vmatprep.subr.mxu0 0.0
    %3952 = vmatpush2.msra.mxu0 0.0
    %3953 = vmatprep.subr.mxu0 0.0
    %3954 = vmatpush2.msra.mxu0 0.0
    %3955 = vmatprep.subr.mxu0 0.0
    %3956 = vmatpush2.msra.mxu0 0.0
    %3957 = vmatprep.subr.mxu0 0.0
    %3958 = vmatpush2.msra.mxu0 0.0
    %3959 = vmatprep.subr.mxu0 0.0
    %3960 = vmatpush2.msra.mxu0 0.0
    %3961 = vmatprep.subr.mxu0 0.0
    %3962 = vmatpush2.msra.mxu0 0.0
    %3963 = vmatprep.subr.mxu0 0.0
    %3964 = vmatpush2.msra.mxu0 0.0
    %3965 = vmatprep.mubr.f32.mxu0 0.0
    %3966 = vmatmul.mubr.f32.gmra.mxu0 %v3827
    %v3967 = vpop.f32.mrf.mxu0
    %v3968 = vadd.f32 %v59, %v3967
    %v3969 = vpop.f32.mrf.mxu0
    %3970 = vdwg.mxu0
    %v3971 = vtanh.pop %v3968
    %v3973 = vsel %vm151, %v3900, 0
    %3975 = vmatprep.subr.mxu0 0.0
    %3976 = vmatpush1.msra.mxu0 0.0
    %3977 = vmatprep.subr.mxu0 0.0
    %3978 = vmatpush1.msra.mxu0 0.0
    %3979 = vmatprep.subr.mxu0 0.0
    %3980 = vmatpush1.msra.mxu0 0.0
    %3981 = vmatprep.subr.mxu0 0.0
    %3982 = vmatpush1.msra.mxu0 0.0
    %3983 = vmatprep.subr.mxu0 0.0
    %3984 = vmatpush1.msra.mxu0 0.0
    %3985 = vmatprep.subr.mxu0 0.0
    %3986 = vmatpush1.msra.mxu0 0.0
    %3987 = vmatprep.subr.mxu0 0.0
    %3988 = vmatpush1.msra.mxu0 0.0
    %3989 = vmatprep.subr.mxu0 0.0
    %3990 = vmatpush1.msra.mxu0 0.0
    %3991 = vmatprep.subr.mxu0 0.0
    %3992 = vmatpush1.msra.mxu0 0.0
    %3993 = vmatprep.subr.mxu0 0.0
    %3994 = vmatpush1.msra.mxu0 0.0
    %3995 = vmatprep.subr.mxu0 0.0
    %3996 = vmatpush1.msra.mxu0 0.0
    %3997 = vmatprep.subr.mxu0 0.0
    %3998 = vmatpush1.msra.mxu0 0.0
    %3999 = vmatprep.subr.mxu0 0.0
    %4000 = vmatpush1.msra.mxu0 %v56
    %4001 = vmatprep.subr.mxu0 0.0
    %4002 = vmatpush1.msra.mxu0 %v55
    %4003 = vmatprep.subr.mxu0 0.0
    %4004 = vmatpush1.msra.mxu0 %v54
    %4005 = vmatprep.subr.mxu0 0.0
    %4006 = vmatpush1.msra.mxu0 %v53
    %4007 = vmatprep.subr.mxu0 0.0
    %4008 = vmatpush2.msra.mxu0 0.0
    %4009 = vmatprep.subr.mxu0 0.0
    %4010 = vmatpush2.msra.mxu0 0.0
    %4011 = vmatprep.subr.mxu0 0.0
    %4012 = vmatpush2.msra.mxu0 0.0
    %4013 = vmatprep.subr.mxu0 0.0
    %4014 = vmatpush2.msra.mxu0 0.0
    %4015 = vmatprep.subr.mxu0 0.0
    %4016 = vmatpush2.msra.mxu0 0.0
    %4017 = vmatprep.subr.mxu0 0.0
    %4018 = vmatpush2.msra.mxu0 0.0
    %4019 = vmatprep.subr.mxu0 0.0
    %4020 = vmatpush2.msra.mxu0 0.0
    %4021 = vmatprep.subr.mxu0 0.0
    %4022 = vmatpush2.msra.mxu0 0.0
    %4023 = vmatprep.subr.mxu0 0.0
    %4024 = vmatpush2.msra.mxu0 0.0
    %4025 = vmatprep.subr.mxu0 0.0
    %4026 = vmatpush2.msra.mxu0 0.0
    %4027 = vmatprep.subr.mxu0 0.0
    %4028 = vmatpush2.msra.mxu0 0.0
    %4029 = vmatprep.subr.mxu0 0.0
    %4030 = vmatpush2.msra.mxu0 0.0
    %4031 = vmatprep.subr.mxu0 0.0
    %4032 = vmatpush2.msra.mxu0 0.0
    %4033 = vmatprep.subr.mxu0 0.0
    %4034 = vmatpush2.msra.mxu0 0.0
    %4035 = vmatprep.subr.mxu0 0.0
    %4036 = vmatpush2.msra.mxu0 0.0
    %4037 = vmatprep.subr.mxu0 0.0
    %4038 = vmatpush2.msra.mxu0 0.0
    %4039 = vmatprep.mubr.f32.mxu0 0.0
    %4040 = vmatmul.mubr.f32.gmra.mxu0 %v3973
    %v4041 = vpop.f32.mrf.mxu0
    %v4042 = vadd.f32 0.0, %v4041
    %v4043 = vpop.f32.mrf.mxu0
    %4044 = vdwg.mxu0
    %v4046 = vsel %vm151, %v3971, 0
    %4048 = vmatprep.subr.mxu0 0.0
    %4049 = vmatpush1.msra.mxu0 0.0
    %4050 = vmatprep.subr.mxu0 0.0
    %4051 = vmatpush1.msra.mxu0 0.0
    %4052 = vmatprep.subr.mxu0 0.0
    %4053 = vmatpush1.msra.mxu0 0.0
    %4054 = vmatprep.subr.mxu0 0.0
    %4055 = vmatpush1.msra.mxu0 0.0
    %4056 = vmatprep.subr.mxu0 0.0
    %4057 = vmatpush1.msra.mxu0 0.0
    %4058 = vmatprep.subr.mxu0 0.0
    %4059 = vmatpush1.msra.mxu0 0.0
    %4060 = vmatprep.subr.mxu0 0.0
    %4061 = vmatpush1.msra.mxu0 0.0
    %4062 = vmatprep.subr.mxu0 0.0
    %4063 = vmatpush1.msra.mxu0 0.0
    %4064 = vmatprep.subr.mxu0 0.0
    %4065 = vmatpush1.msra.mxu0 0.0
    %4066 = vmatprep.subr.mxu0 0.0
    %4067 = vmatpush1.msra.mxu0 0.0
    %4068 = vmatprep.subr.mxu0 0.0
    %4069 = vmatpush1.msra.mxu0 0.0
    %4070 = vmatprep.subr.mxu0 0.0
    %4071 = vmatpush1.msra.mxu0 0.0
    %4072 = vmatprep.subr.mxu0 0.0
    %4073 = vmatpush1.msra.mxu0 %v52
    %4074 = vmatprep.subr.mxu0 0.0
    %4075 = vmatpush1.msra.mxu0 %v51
    %4076 = vmatprep.subr.mxu0 0.0
    %4077 = vmatpush1.msra.mxu0 %v50
    %4078 = vmatprep.subr.mxu0 0.0
    %4079 = vmatpush1.msra.mxu0 %v49
    %4080 = vmatprep.subr.mxu0 0.0
    %4081 = vmatpush2.msra.mxu0 0.0
    %4082 = vmatprep.subr.mxu0 0.0
    %4083 = vmatpush2.msra.mxu0 0.0
    %4084 = vmatprep.subr.mxu0 0.0
    %4085 = vmatpush2.msra.mxu0 0.0
    %4086 = vmatprep.subr.mxu0 0.0
    %4087 = vmatpush2.msra.mxu0 0.0
    %4088 = vmatprep.subr.mxu0 0.0
    %4089 = vmatpush2.msra.mxu0 0.0
    %4090 = vmatprep.subr.mxu0 0.0
    %4091 = vmatpush2.msra.mxu0 0.0
    %4092 = vmatprep.subr.mxu0 0.0
    %4093 = vmatpush2.msra.mxu0 0.0
    %4094 = vmatprep.subr.mxu0 0.0
    %4095 = vmatpush2.msra.mxu0 0.0
    %4096 = vmatprep.subr.mxu0 0.0
    %4097 = vmatpush2.msra.mxu0 0.0
    %4098 = vmatprep.subr.mxu0 0.0
    %4099 = vmatpush2.msra.mxu0 0.0
    %4100 = vmatprep.subr.mxu0 0.0
    %4101 = vmatpush2.msra.mxu0 0.0
    %4102 = vmatprep.subr.mxu0 0.0
    %4103 = vmatpush2.msra.mxu0 0.0
    %4104 = vmatprep.subr.mxu0 0.0
    %4105 = vmatpush2.msra.mxu0 0.0
    %4106 = vmatprep.subr.mxu0 0.0
    %4107 = vmatpush2.msra.mxu0 0.0
    %4108 = vmatprep.subr.mxu0 0.0
    %4109 = vmatpush2.msra.mxu0 0.0
    %4110 = vmatprep.subr.mxu0 0.0
    %4111 = vmatpush2.msra.mxu0 0.0
    %4112 = vmatprep.mubr.f32.mxu0 0.0
    %4113 = vmatmul.mubr.f32.gmra.mxu0 %v4046
    %v4114 = vpop.f32.mrf.mxu0
    %v4115 = vadd.f32 %v4042, %v4114
    %v4116 = vpop.f32.mrf.mxu0
    %4117 = vdwg.mxu0
    %v4118 = vadd.f32 %v4115, %v60
    %v4119 = vtanh.pop %v4118
    %4120 = vmatprep.subr.mxu0 0.0
    %4121 = vmatpush1.msra.mxu0 0.0
    %4122 = vmatprep.subr.mxu0 0.0
    %4123 = vmatpush1.msra.mxu0 0.0
    %4124 = vmatprep.subr.mxu0 0.0
    %4125 = vmatpush1.msra.mxu0 0.0
    %4126 = vmatprep.subr.mxu0 0.0
    %4127 = vmatpush1.msra.mxu0 0.0
    %4128 = vmatprep.subr.mxu0 0.0
    %4129 = vmatpush1.msra.mxu0 0.0
    %4130 = vmatprep.subr.mxu0 0.0
    %4131 = vmatpush1.msra.mxu0 0.0
    %4132 = vmatprep.subr.mxu0 0.0
    %4133 = vmatpush1.msra.mxu0 0.0
    %4134 = vmatprep.subr.mxu0 0.0
    %4135 = vmatpush1.msra.mxu0 0.0
    %4136 = vmatprep.subr.mxu0 0.0
    %4137 = vmatpush1.msra.mxu0 0.0
    %4138 = vmatprep.subr.mxu0 0.0
    %4139 = vmatpush1.msra.mxu0 0.0
    %4140 = vmatprep.subr.mxu0 0.0
    %4141 = vmatpush1.msra.mxu0 0.0
    %4142 = vmatprep.subr.mxu0 0.0
    %4143 = vmatpush1.msra.mxu0 0.0
    %4144 = vmatprep.subr.mxu0 0.0
    %4145 = vmatpush1.msra.mxu0 %v48
    %4146 = vmatprep.subr.mxu0 0.0
    %4147 = vmatpush1.msra.mxu0 %v47
    %4148 = vmatprep.subr.mxu0 0.0
    %4149 = vmatpush1.msra.mxu0 %v46
    %4150 = vmatprep.subr.mxu0 0.0
    %4151 = vmatpush1.msra.mxu0 %v45
    %4152 = vmatprep.subr.mxu0 0.0
    %4153 = vmatpush2.msra.mxu0 0.0
    %4154 = vmatprep.subr.mxu0 0.0
    %4155 = vmatpush2.msra.mxu0 0.0
    %4156 = vmatprep.subr.mxu0 0.0
    %4157 = vmatpush2.msra.mxu0 0.0
    %4158 = vmatprep.subr.mxu0 0.0
    %4159 = vmatpush2.msra.mxu0 0.0
    %4160 = vmatprep.subr.mxu0 0.0
    %4161 = vmatpush2.msra.mxu0 0.0
    %4162 = vmatprep.subr.mxu0 0.0
    %4163 = vmatpush2.msra.mxu0 0.0
    %4164 = vmatprep.subr.mxu0 0.0
    %4165 = vmatpush2.msra.mxu0 0.0
    %4166 = vmatprep.subr.mxu0 0.0
    %4167 = vmatpush2.msra.mxu0 0.0
    %4168 = vmatprep.subr.mxu0 0.0
    %4169 = vmatpush2.msra.mxu0 0.0
    %4170 = vmatprep.subr.mxu0 0.0
    %4171 = vmatpush2.msra.mxu0 0.0
    %4172 = vmatprep.subr.mxu0 0.0
    %4173 = vmatpush2.msra.mxu0 0.0
    %4174 = vmatprep.subr.mxu0 0.0
    %4175 = vmatpush2.msra.mxu0 0.0
    %4176 = vmatprep.subr.mxu0 0.0
    %4177 = vmatpush2.msra.mxu0 0.0
    %4178 = vmatprep.subr.mxu0 0.0
    %4179 = vmatpush2.msra.mxu0 0.0
    %4180 = vmatprep.subr.mxu0 0.0
    %4181 = vmatpush2.msra.mxu0 0.0
    %4182 = vmatprep.subr.mxu0 0.0
    %4183 = vmatpush2.msra.mxu0 0.0
    %4184 = vmatprep.mubr.f32.mxu0 0.0
    %4185 = vmatmul.mubr.f32.gmra.mxu0 %v4046
    %v4186 = vpop.f32.mrf.mxu0
    %v4187 = vadd.f32 %v59, %v4186
    %v4188 = vpop.f32.mrf.mxu0
    %4189 = vdwg.mxu0
    %v4190 = vtanh.pop %v4187
    %v4192 = vsel %vm151, %v4119, 0
    %4194 = vmatprep.subr.mxu0 0.0
    %4195 = vmatpush1.msra.mxu0 0.0
    %4196 = vmatprep.subr.mxu0 0.0
    %4197 = vmatpush1.msra.mxu0 0.0
    %4198 = vmatprep.subr.mxu0 0.0
    %4199 = vmatpush1.msra.mxu0 0.0
    %4200 = vmatprep.subr.mxu0 0.0
    %4201 = vmatpush1.msra.mxu0 0.0
    %4202 = vmatprep.subr.mxu0 0.0
    %4203 = vmatpush1.msra.mxu0 0.0
    %4204 = vmatprep.subr.mxu0 0.0
    %4205 = vmatpush1.msra.mxu0 0.0
    %4206 = vmatprep.subr.mxu0 0.0
    %4207 = vmatpush1.msra.mxu0 0.0
    %4208 = vmatprep.subr.mxu0 0.0
    %4209 = vmatpush1.msra.mxu0 0.0
    %4210 = vmatprep.subr.mxu0 0.0
    %4211 = vmatpush1.msra.mxu0 0.0
    %4212 = vmatprep.subr.mxu0 0.0
    %4213 = vmatpush1.msra.mxu0 0.0
    %4214 = vmatprep.subr.mxu0 0.0
    %4215 = vmatpush1.msra.mxu0 0.0
    %4216 = vmatprep.subr.mxu0 0.0
    %4217 = vmatpush1.msra.mxu0 0.0
    %4218 = vmatprep.subr.mxu0 0.0
    %4219 = vmatpush1.msra.mxu0 %v56
    %4220 = vmatprep.subr.mxu0 0.0
    %4221 = vmatpush1.msra.mxu0 %v55
    %4222 = vmatprep.subr.mxu0 0.0
    %4223 = vmatpush1.msra.mxu0 %v54
    %4224 = vmatprep.subr.mxu0 0.0
    %4225 = vmatpush1.msra.mxu0 %v53
    %4226 = vmatprep.subr.mxu0 0.0
    %4227 = vmatpush2.msra.mxu0 0.0
    %4228 = vmatprep.subr.mxu0 0.0
    %4229 = vmatpush2.msra.mxu0 0.0
    %4230 = vmatprep.subr.mxu0 0.0
    %4231 = vmatpush2.msra.mxu0 0.0
    %4232 = vmatprep.subr.mxu0 0.0
    %4233 = vmatpush2.msra.mxu0 0.0
    %4234 = vmatprep.subr.mxu0 0.0
    %4235 = vmatpush2.msra.mxu0 0.0
    %4236 = vmatprep.subr.mxu0 0.0
    %4237 = vmatpush2.msra.mxu0 0.0
    %4238 = vmatprep.subr.mxu0 0.0
    %4239 = vmatpush2.msra.mxu0 0.0
    %4240 = vmatprep.subr.mxu0 0.0
    %4241 = vmatpush2.msra.mxu0 0.0
    %4242 = vmatprep.subr.mxu0 0.0
    %4243 = vmatpush2.msra.mxu0 0.0
    %4244 = vmatprep.subr.mxu0 0.0
    %4245 = vmatpush2.msra.mxu0 0.0
    %4246 = vmatprep.subr.mxu0 0.0
    %4247 = vmatpush2.msra.mxu0 0.0
    %4248 = vmatprep.subr.mxu0 0.0
    %4249 = vmatpush2.msra.mxu0 0.0
    %4250 = vmatprep.subr.mxu0 0.0
    %4251 = vmatpush2.msra.mxu0 0.0
    %4252 = vmatprep.subr.mxu0 0.0
    %4253 = vmatpush2.msra.mxu0 0.0
    %4254 = vmatprep.subr.mxu0 0.0
    %4255 = vmatpush2.msra.mxu0 0.0
    %4256 = vmatprep.subr.mxu0 0.0
    %4257 = vmatpush2.msra.mxu0 0.0
    %4258 = vmatprep.mubr.f32.mxu0 0.0
    %4259 = vmatmul.mubr.f32.gmra.mxu0 %v4192
    %v4260 = vpop.f32.mrf.mxu0
    %v4261 = vadd.f32 0.0, %v4260
    %v4262 = vpop.f32.mrf.mxu0
    %4263 = vdwg.mxu0
    %v4265 = vsel %vm151, %v4190, 0
    %4267 = vmatprep.subr.mxu0 0.0
    %4268 = vmatpush1.msra.mxu0 0.0
    %4269 = vmatprep.subr.mxu0 0.0
    %4270 = vmatpush1.msra.mxu0 0.0
    %4271 = vmatprep.subr.mxu0 0.0
    %4272 = vmatpush1.msra.mxu0 0.0
    %4273 = vmatprep.subr.mxu0 0.0
    %4274 = vmatpush1.msra.mxu0 0.0
    %4275 = vmatprep.subr.mxu0 0.0
    %4276 = vmatpush1.msra.mxu0 0.0
    %4277 = vmatprep.subr.mxu0 0.0
    %4278 = vmatpush1.msra.mxu0 0.0
    %4279 = vmatprep.subr.mxu0 0.0
    %4280 = vmatpush1.msra.mxu0 0.0
    %4281 = vmatprep.subr.mxu0 0.0
    %4282 = vmatpush1.msra.mxu0 0.0
    %4283 = vmatprep.subr.mxu0 0.0
    %4284 = vmatpush1.msra.mxu0 0.0
    %4285 = vmatprep.subr.mxu0 0.0
    %4286 = vmatpush1.msra.mxu0 0.0
    %4287 = vmatprep.subr.mxu0 0.0
    %4288 = vmatpush1.msra.mxu0 0.0
    %4289 = vmatprep.subr.mxu0 0.0
    %4290 = vmatpush1.msra.mxu0 0.0
    %4291 = vmatprep.subr.mxu0 0.0
    %4292 = vmatpush1.msra.mxu0 %v52
    %4293 = vmatprep.subr.mxu0 0.0
    %4294 = vmatpush1.msra.mxu0 %v51
    %4295 = vmatprep.subr.mxu0 0.0
    %4296 = vmatpush1.msra.mxu0 %v50
    %4297 = vmatprep.subr.mxu0 0.0
    %4298 = vmatpush1.msra.mxu0 %v49
    %4299 = vmatprep.subr.mxu0 0.0
    %4300 = vmatpush2.msra.mxu0 0.0
    %4301 = vmatprep.subr.mxu0 0.0
    %4302 = vmatpush2.msra.mxu0 0.0
    %4303 = vmatprep.subr.mxu0 0.0
    %4304 = vmatpush2.msra.mxu0 0.0
    %4305 = vmatprep.subr.mxu0 0.0
    %4306 = vmatpush2.msra.mxu0 0.0
    %4307 = vmatprep.subr.mxu0 0.0
    %4308 = vmatpush2.msra.mxu0 0.0
    %4309 = vmatprep.subr.mxu0 0.0
    %4310 = vmatpush2.msra.mxu0 0.0
    %4311 = vmatprep.subr.mxu0 0.0
    %4312 = vmatpush2.msra.mxu0 0.0
    %4313 = vmatprep.subr.mxu0 0.0
    %4314 = vmatpush2.msra.mxu0 0.0
    %4315 = vmatprep.subr.mxu0 0.0
    %4316 = vmatpush2.msra.mxu0 0.0
    %4317 = vmatprep.subr.mxu0 0.0
    %4318 = vmatpush2.msra.mxu0 0.0
    %4319 = vmatprep.subr.mxu0 0.0
    %4320 = vmatpush2.msra.mxu0 0.0
    %4321 = vmatprep.subr.mxu0 0.0
    %4322 = vmatpush2.msra.mxu0 0.0
    %4323 = vmatprep.subr.mxu0 0.0
    %4324 = vmatpush2.msra.mxu0 0.0
    %4325 = vmatprep.subr.mxu0 0.0
    %4326 = vmatpush2.msra.mxu0 0.0
    %4327 = vmatprep.subr.mxu0 0.0
    %4328 = vmatpush2.msra.mxu0 0.0
    %4329 = vmatprep.subr.mxu0 0.0
    %4330 = vmatpush2.msra.mxu0 0.0
    %4331 = vmatprep.mubr.f32.mxu0 0.0
    %4332 = vmatmul.mubr.f32.gmra.mxu0 %v4265
    %v4333 = vpop.f32.mrf.mxu0
    %v4334 = vadd.f32 %v4261, %v4333
    %v4335 = vpop.f32.mrf.mxu0
    %4336 = vdwg.mxu0
    %v4337 = vadd.f32 %v4334, %v60
    %v4338 = vtanh.pop %v4337
    %4339 = vmatprep.subr.mxu0 0.0
    %4340 = vmatpush1.msra.mxu0 0.0
    %4341 = vmatprep.subr.mxu0 0.0
    %4342 = vmatpush1.msra.mxu0 0.0
    %4343 = vmatprep.subr.mxu0 0.0
    %4344 = vmatpush1.msra.mxu0 0.0
    %4345 = vmatprep.subr.mxu0 0.0
    %4346 = vmatpush1.msra.mxu0 0.0
    %4347 = vmatprep.subr.mxu0 0.0
    %4348 = vmatpush1.msra.mxu0 0.0
    %4349 = vmatprep.subr.mxu0 0.0
    %4350 = vmatpush1.msra.mxu0 0.0
    %4351 = vmatprep.subr.mxu0 0.0
    %4352 = vmatpush1.msra.mxu0 0.0
    %4353 = vmatprep.subr.mxu0 0.0
    %4354 = vmatpush1.msra.mxu0 0.0
    %4355 = vmatprep.subr.mxu0 0.0
    %4356 = vmatpush1.msra.mxu0 0.0
    %4357 = vmatprep.subr.mxu0 0.0
    %4358 = vmatpush1.msra.mxu0 0.0
    %4359 = vmatprep.subr.mxu0 0.0
    %4360 = vmatpush1.msra.mxu0 0.0
    %4361 = vmatprep.subr.mxu0 0.0
    %4362 = vmatpush1.msra.mxu0 0.0
    %4363 = vmatprep.subr.mxu0 0.0
    %4364 = vmatpush1.msra.mxu0 %v48
    %4365 = vmatprep.subr.mxu0 0.0
    %4366 = vmatpush1.msra.mxu0 %v47
    %4367 = vmatprep.subr.mxu0 0.0
    %4368 = vmatpush1.msra.mxu0 %v46
    %4369 = vmatprep.subr.mxu0 0.0
    %4370 = vmatpush1.msra.mxu0 %v45
    %4371 = vmatprep.subr.mxu0 0.0
    %4372 = vmatpush2.msra.mxu0 0.0
    %4373 = vmatprep.subr.mxu0 0.0
    %4374 = vmatpush2.msra.mxu0 0.0
    %4375 = vmatprep.subr.mxu0 0.0
    %4376 = vmatpush2.msra.mxu0 0.0
    %4377 = vmatprep.subr.mxu0 0.0
    %4378 = vmatpush2.msra.mxu0 0.0
    %4379 = vmatprep.subr.mxu0 0.0
    %4380 = vmatpush2.msra.mxu0 0.0
    %4381 = vmatprep.subr.mxu0 0.0
    %4382 = vmatpush2.msra.mxu0 0.0
    %4383 = vmatprep.subr.mxu0 0.0
    %4384 = vmatpush2.msra.mxu0 0.0
    %4385 = vmatprep.subr.mxu0 0.0
    %4386 = vmatpush2.msra.mxu0 0.0
    %4387 = vmatprep.subr.mxu0 0.0
    %4388 = vmatpush2.msra.mxu0 0.0
    %4389 = vmatprep.subr.mxu0 0.0
    %4390 = vmatpush2.msra.mxu0 0.0
    %4391 = vmatprep.subr.mxu0 0.0
    %4392 = vmatpush2.msra.mxu0 0.0
    %4393 = vmatprep.subr.mxu0 0.0
    %4394 = vmatpush2.msra.mxu0 0.0
    %4395 = vmatprep.subr.mxu0 0.0
    %4396 = vmatpush2.msra.mxu0 0.0
    %4397 = vmatprep.subr.mxu0 0.0
    %4398 = vmatpush2.msra.mxu0 0.0
    %4399 = vmatprep.subr.mxu0 0.0
    %4400 = vmatpush2.msra.mxu0 0.0
    %4401 = vmatprep.subr.mxu0 0.0
    %4402 = vmatpush2.msra.mxu0 0.0
    %4403 = vmatprep.mubr.f32.mxu0 0.0
    %4404 = vmatmul.mubr.f32.gmra.mxu0 %v4265
    %v4405 = vpop.f32.mrf.mxu0
    %v4406 = vadd.f32 %v59, %v4405
    %v4407 = vpop.f32.mrf.mxu0
    %4408 = vdwg.mxu0
    %v4409 = vtanh.pop %v4406
    %v4411 = vsel %vm151, %v4338, 0
    %4413 = vmatprep.subr.mxu0 0.0
    %4414 = vmatpush1.msra.mxu0 0.0
    %4415 = vmatprep.subr.mxu0 0.0
    %4416 = vmatpush1.msra.mxu0 0.0
    %4417 = vmatprep.subr.mxu0 0.0
    %4418 = vmatpush1.msra.mxu0 0.0
    %4419 = vmatprep.subr.mxu0 0.0
    %4420 = vmatpush1.msra.mxu0 0.0
    %4421 = vmatprep.subr.mxu0 0.0
    %4422 = vmatpush1.msra.mxu0 0.0
    %4423 = vmatprep.subr.mxu0 0.0
    %4424 = vmatpush1.msra.mxu0 0.0
    %4425 = vmatprep.subr.mxu0 0.0
    %4426 = vmatpush1.msra.mxu0 0.0
    %4427 = vmatprep.subr.mxu0 0.0
    %4428 = vmatpush1.msra.mxu0 0.0
    %4429 = vmatprep.subr.mxu0 0.0
    %4430 = vmatpush1.msra.mxu0 0.0
    %4431 = vmatprep.subr.mxu0 0.0
    %4432 = vmatpush1.msra.mxu0 0.0
    %4433 = vmatprep.subr.mxu0 0.0
    %4434 = vmatpush1.msra.mxu0 0.0
    %4435 = vmatprep.subr.mxu0 0.0
    %4436 = vmatpush1.msra.mxu0 0.0
    %4437 = vmatprep.subr.mxu0 0.0
    %4438 = vmatpush1.msra.mxu0 %v56
    %4439 = vmatprep.subr.mxu0 0.0
    %4440 = vmatpush1.msra.mxu0 %v55
    %4441 = vmatprep.subr.mxu0 0.0
    %4442 = vmatpush1.msra.mxu0 %v54
    %4443 = vmatprep.subr.mxu0 0.0
    %4444 = vmatpush1.msra.mxu0 %v53
    %4445 = vmatprep.subr.mxu0 0.0
    %4446 = vmatpush2.msra.mxu0 0.0
    %4447 = vmatprep.subr.mxu0 0.0
    %4448 = vmatpush2.msra.mxu0 0.0
    %4449 = vmatprep.subr.mxu0 0.0
    %4450 = vmatpush2.msra.mxu0 0.0
    %4451 = vmatprep.subr.mxu0 0.0
    %4452 = vmatpush2.msra.mxu0 0.0
    %4453 = vmatprep.subr.mxu0 0.0
    %4454 = vmatpush2.msra.mxu0 0.0
    %4455 = vmatprep.subr.mxu0 0.0
    %4456 = vmatpush2.msra.mxu0 0.0
    %4457 = vmatprep.subr.mxu0 0.0
    %4458 = vmatpush2.msra.mxu0 0.0
    %4459 = vmatprep.subr.mxu0 0.0
    %4460 = vmatpush2.msra.mxu0 0.0
    %4461 = vmatprep.subr.mxu0 0.0
    %4462 = vmatpush2.msra.mxu0 0.0
    %4463 = vmatprep.subr.mxu0 0.0
    %4464 = vmatpush2.msra.mxu0 0.0
    %4465 = vmatprep.subr.mxu0 0.0
    %4466 = vmatpush2.msra.mxu0 0.0
    %4467 = vmatprep.subr.mxu0 0.0
    %4468 = vmatpush2.msra.mxu0 0.0
    %4469 = vmatprep.subr.mxu0 0.0
    %4470 = vmatpush2.msra.mxu0 0.0
    %4471 = vmatprep.subr.mxu0 0.0
    %4472 = vmatpush2.msra.mxu0 0.0
    %4473 = vmatprep.subr.mxu0 0.0
    %4474 = vmatpush2.msra.mxu0 0.0
    %4475 = vmatprep.subr.mxu0 0.0
    %4476 = vmatpush2.msra.mxu0 0.0
    %4477 = vmatprep.mubr.f32.mxu0 0.0
    %4478 = vmatmul.mubr.f32.gmra.mxu0 %v4411
    %v4479 = vpop.f32.mrf.mxu0
    %v4480 = vadd.f32 0.0, %v4479
    %v4481 = vpop.f32.mrf.mxu0
    %4482 = vdwg.mxu0
    %v4484 = vsel %vm151, %v4409, 0
    %4486 = vmatprep.subr.mxu0 0.0
    %4487 = vmatpush1.msra.mxu0 0.0
    %4488 = vmatprep.subr.mxu0 0.0
    %4489 = vmatpush1.msra.mxu0 0.0
    %4490 = vmatprep.subr.mxu0 0.0
    %4491 = vmatpush1.msra.mxu0 0.0
    %4492 = vmatprep.subr.mxu0 0.0
    %4493 = vmatpush1.msra.mxu0 0.0
    %4494 = vmatprep.subr.mxu0 0.0
    %4495 = vmatpush1.msra.mxu0 0.0
    %4496 = vmatprep.subr.mxu0 0.0
    %4497 = vmatpush1.msra.mxu0 0.0
    %4498 = vmatprep.subr.mxu0 0.0
    %4499 = vmatpush1.msra.mxu0 0.0
    %4500 = vmatprep.subr.mxu0 0.0
    %4501 = vmatpush1.msra.mxu0 0.0
    %4502 = vmatprep.subr.mxu0 0.0
    %4503 = vmatpush1.msra.mxu0 0.0
    %4504 = vmatprep.subr.mxu0 0.0
    %4505 = vmatpush1.msra.mxu0 0.0
    %4506 = vmatprep.subr.mxu0 0.0
    %4507 = vmatpush1.msra.mxu0 0.0
    %4508 = vmatprep.subr.mxu0 0.0
    %4509 = vmatpush1.msra.mxu0 0.0
    %4510 = vmatprep.subr.mxu0 0.0
    %4511 = vmatpush1.msra.mxu0 %v52
    %4512 = vmatprep.subr.mxu0 0.0
    %4513 = vmatpush1.msra.mxu0 %v51
    %4514 = vmatprep.subr.mxu0 0.0
    %4515 = vmatpush1.msra.mxu0 %v50
    %4516 = vmatprep.subr.mxu0 0.0
    %4517 = vmatpush1.msra.mxu0 %v49
    %4518 = vmatprep.subr.mxu0 0.0
    %4519 = vmatpush2.msra.mxu0 0.0
    %4520 = vmatprep.subr.mxu0 0.0
    %4521 = vmatpush2.msra.mxu0 0.0
    %4522 = vmatprep.subr.mxu0 0.0
    %4523 = vmatpush2.msra.mxu0 0.0
    %4524 = vmatprep.subr.mxu0 0.0
    %4525 = vmatpush2.msra.mxu0 0.0
    %4526 = vmatprep.subr.mxu0 0.0
    %4527 = vmatpush2.msra.mxu0 0.0
    %4528 = vmatprep.subr.mxu0 0.0
    %4529 = vmatpush2.msra.mxu0 0.0
    %4530 = vmatprep.subr.mxu0 0.0
    %4531 = vmatpush2.msra.mxu0 0.0
    %4532 = vmatprep.subr.mxu0 0.0
    %4533 = vmatpush2.msra.mxu0 0.0
    %4534 = vmatprep.subr.mxu0 0.0
    %4535 = vmatpush2.msra.mxu0 0.0
    %4536 = vmatprep.subr.mxu0 0.0
    %4537 = vmatpush2.msra.mxu0 0.0
    %4538 = vmatprep.subr.mxu0 0.0
    %4539 = vmatpush2.msra.mxu0 0.0
    %4540 = vmatprep.subr.mxu0 0.0
    %4541 = vmatpush2.msra.mxu0 0.0
    %4542 = vmatprep.subr.mxu0 0.0
    %4543 = vmatpush2.msra.mxu0 0.0
    %4544 = vmatprep.subr.mxu0 0.0
    %4545 = vmatpush2.msra.mxu0 0.0
    %4546 = vmatprep.subr.mxu0 0.0
    %4547 = vmatpush2.msra.mxu0 0.0
    %4548 = vmatprep.subr.mxu0 0.0
    %4549 = vmatpush2.msra.mxu0 0.0
    %4550 = vmatprep.mubr.f32.mxu0 0.0
    %4551 = vmatmul.mubr.f32.gmra.mxu0 %v4484
    %v4552 = vpop.f32.mrf.mxu0
    %v4553 = vadd.f32 %v4480, %v4552
    %v4554 = vpop.f32.mrf.mxu0
    %4555 = vdwg.mxu0
    %v4556 = vadd.f32 %v4553, %v60
    %v4557 = vtanh.pop %v4556
    %4558 = vmatprep.subr.mxu0 0.0
    %4559 = vmatpush1.msra.mxu0 0.0
    %4560 = vmatprep.subr.mxu0 0.0
    %4561 = vmatpush1.msra.mxu0 0.0
    %4562 = vmatprep.subr.mxu0 0.0
    %4563 = vmatpush1.msra.mxu0 0.0
    %4564 = vmatprep.subr.mxu0 0.0
    %4565 = vmatpush1.msra.mxu0 0.0
    %4566 = vmatprep.subr.mxu0 0.0
    %4567 = vmatpush1.msra.mxu0 0.0
    %4568 = vmatprep.subr.mxu0 0.0
    %4569 = vmatpush1.msra.mxu0 0.0
    %4570 = vmatprep.subr.mxu0 0.0
    %4571 = vmatpush1.msra.mxu0 0.0
    %4572 = vmatprep.subr.mxu0 0.0
    %4573 = vmatpush1.msra.mxu0 0.0
    %4574 = vmatprep.subr.mxu0 0.0
    %4575 = vmatpush1.msra.mxu0 0.0
    %4576 = vmatprep.subr.mxu0 0.0
    %4577 = vmatpush1.msra.mxu0 0.0
    %4578 = vmatprep.subr.mxu0 0.0
    %4579 = vmatpush1.msra.mxu0 0.0
    %4580 = vmatprep.subr.mxu0 0.0
    %4581 = vmatpush1.msra.mxu0 0.0
    %4582 = vmatprep.subr.mxu0 0.0
    %4583 = vmatpush1.msra.mxu0 %v48
    %4584 = vmatprep.subr.mxu0 0.0
    %4585 = vmatpush1.msra.mxu0 %v47
    %4586 = vmatprep.subr.mxu0 0.0
    %4587 = vmatpush1.msra.mxu0 %v46
    %4588 = vmatprep.subr.mxu0 0.0
    %4589 = vmatpush1.msra.mxu0 %v45
    %4590 = vmatprep.subr.mxu0 0.0
    %4591 = vmatpush2.msra.mxu0 0.0
    %4592 = vmatprep.subr.mxu0 0.0
    %4593 = vmatpush2.msra.mxu0 0.0
    %4594 = vmatprep.subr.mxu0 0.0
    %4595 = vmatpush2.msra.mxu0 0.0
    %4596 = vmatprep.subr.mxu0 0.0
    %4597 = vmatpush2.msra.mxu0 0.0
    %4598 = vmatprep.subr.mxu0 0.0
    %4599 = vmatpush2.msra.mxu0 0.0
    %4600 = vmatprep.subr.mxu0 0.0
    %4601 = vmatpush2.msra.mxu0 0.0
    %4602 = vmatprep.subr.mxu0 0.0
    %4603 = vmatpush2.msra.mxu0 0.0
    %4604 = vmatprep.subr.mxu0 0.0
    %4605 = vmatpush2.msra.mxu0 0.0
    %4606 = vmatprep.subr.mxu0 0.0
    %4607 = vmatpush2.msra.mxu0 0.0
    %4608 = vmatprep.subr.mxu0 0.0
    %4609 = vmatpush2.msra.mxu0 0.0
    %4610 = vmatprep.subr.mxu0 0.0
    %4611 = vmatpush2.msra.mxu0 0.0
    %4612 = vmatprep.subr.mxu0 0.0
    %4613 = vmatpush2.msra.mxu0 0.0
    %4614 = vmatprep.subr.mxu0 0.0
    %4615 = vmatpush2.msra.mxu0 0.0
    %4616 = vmatprep.subr.mxu0 0.0
    %4617 = vmatpush2.msra.mxu0 0.0
    %4618 = vmatprep.subr.mxu0 0.0
    %4619 = vmatpush2.msra.mxu0 0.0
    %4620 = vmatprep.subr.mxu0 0.0
    %4621 = vmatpush2.msra.mxu0 0.0
    %4622 = vmatprep.mubr.f32.mxu0 0.0
    %4623 = vmatmul.mubr.f32.gmra.mxu0 %v4484
    %v4624 = vpop.f32.mrf.mxu0
    %v4625 = vadd.f32 %v59, %v4624
    %v4626 = vpop.f32.mrf.mxu0
    %4627 = vdwg.mxu0
    %v4628 = vtanh.pop %v4625
    %v4630 = vsel %vm151, %v4557, 0
    %4632 = vmatprep.subr.mxu0 0.0
    %4633 = vmatpush1.msra.mxu0 0.0
    %4634 = vmatprep.subr.mxu0 0.0
    %4635 = vmatpush1.msra.mxu0 0.0
    %4636 = vmatprep.subr.mxu0 0.0
    %4637 = vmatpush1.msra.mxu0 0.0
    %4638 = vmatprep.subr.mxu0 0.0
    %4639 = vmatpush1.msra.mxu0 0.0
    %4640 = vmatprep.subr.mxu0 0.0
    %4641 = vmatpush1.msra.mxu0 0.0
    %4642 = vmatprep.subr.mxu0 0.0
    %4643 = vmatpush1.msra.mxu0 0.0
    %4644 = vmatprep.subr.mxu0 0.0
    %4645 = vmatpush1.msra.mxu0 0.0
    %4646 = vmatprep.subr.mxu0 0.0
    %4647 = vmatpush1.msra.mxu0 0.0
    %4648 = vmatprep.subr.mxu0 0.0
    %4649 = vmatpush1.msra.mxu0 0.0
    %4650 = vmatprep.subr.mxu0 0.0
    %4651 = vmatpush1.msra.mxu0 0.0
    %4652 = vmatprep.subr.mxu0 0.0
    %4653 = vmatpush1.msra.mxu0 0.0
    %4654 = vmatprep.subr.mxu0 0.0
    %4655 = vmatpush1.msra.mxu0 0.0
    %4656 = vmatprep.subr.mxu0 0.0
    %4657 = vmatpush1.msra.mxu0 %v56
    %4658 = vmatprep.subr.mxu0 0.0
    %4659 = vmatpush1.msra.mxu0 %v55
    %4660 = vmatprep.subr.mxu0 0.0
    %4661 = vmatpush1.msra.mxu0 %v54
    %4662 = vmatprep.subr.mxu0 0.0
    %4663 = vmatpush1.msra.mxu0 %v53
    %4664 = vmatprep.subr.mxu0 0.0
    %4665 = vmatpush2.msra.mxu0 0.0
    %4666 = vmatprep.subr.mxu0 0.0
    %4667 = vmatpush2.msra.mxu0 0.0
    %4668 = vmatprep.subr.mxu0 0.0
    %4669 = vmatpush2.msra.mxu0 0.0
    %4670 = vmatprep.subr.mxu0 0.0
    %4671 = vmatpush2.msra.mxu0 0.0
    %4672 = vmatprep.subr.mxu0 0.0
    %4673 = vmatpush2.msra.mxu0 0.0
    %4674 = vmatprep.subr.mxu0 0.0
    %4675 = vmatpush2.msra.mxu0 0.0
    %4676 = vmatprep.subr.mxu0 0.0
    %4677 = vmatpush2.msra.mxu0 0.0
    %4678 = vmatprep.subr.mxu0 0.0
    %4679 = vmatpush2.msra.mxu0 0.0
    %4680 = vmatprep.subr.mxu0 0.0
    %4681 = vmatpush2.msra.mxu0 0.0
    %4682 = vmatprep.subr.mxu0 0.0
    %4683 = vmatpush2.msra.mxu0 0.0
    %4684 = vmatprep.subr.mxu0 0.0
    %4685 = vmatpush2.msra.mxu0 0.0
    %4686 = vmatprep.subr.mxu0 0.0
    %4687 = vmatpush2.msra.mxu0 0.0
    %4688 = vmatprep.subr.mxu0 0.0
    %4689 = vmatpush2.msra.mxu0 0.0
    %4690 = vmatprep.subr.mxu0 0.0
    %4691 = vmatpush2.msra.mxu0 0.0
    %4692 = vmatprep.subr.mxu0 0.0
    %4693 = vmatpush2.msra.mxu0 0.0
    %4694 = vmatprep.subr.mxu0 0.0
    %4695 = vmatpush2.msra.mxu0 0.0
    %4696 = vmatprep.mubr.f32.mxu0 0.0
    %4697 = vmatmul.mubr.f32.gmra.mxu0 %v4630
    %v4698 = vpop.f32.mrf.mxu0
    %v4699 = vadd.f32 0.0, %v4698
    %v4700 = vpop.f32.mrf.mxu0
    %4701 = vdwg.mxu0
    %v4703 = vsel %vm151, %v4628, 0
    %4705 = vmatprep.subr.mxu0 0.0
    %4706 = vmatpush1.msra.mxu0 0.0
    %4707 = vmatprep.subr.mxu0 0.0
    %4708 = vmatpush1.msra.mxu0 0.0
    %4709 = vmatprep.subr.mxu0 0.0
    %4710 = vmatpush1.msra.mxu0 0.0
    %4711 = vmatprep.subr.mxu0 0.0
    %4712 = vmatpush1.msra.mxu0 0.0
    %4713 = vmatprep.subr.mxu0 0.0
    %4714 = vmatpush1.msra.mxu0 0.0
    %4715 = vmatprep.subr.mxu0 0.0
    %4716 = vmatpush1.msra.mxu0 0.0
    %4717 = vmatprep.subr.mxu0 0.0
    %4718 = vmatpush1.msra.mxu0 0.0
    %4719 = vmatprep.subr.mxu0 0.0
    %4720 = vmatpush1.msra.mxu0 0.0
    %4721 = vmatprep.subr.mxu0 0.0
    %4722 = vmatpush1.msra.mxu0 0.0
    %4723 = vmatprep.subr.mxu0 0.0
    %4724 = vmatpush1.msra.mxu0 0.0
    %4725 = vmatprep.subr.mxu0 0.0
    %4726 = vmatpush1.msra.mxu0 0.0
    %4727 = vmatprep.subr.mxu0 0.0
    %4728 = vmatpush1.msra.mxu0 0.0
    %4729 = vmatprep.subr.mxu0 0.0
    %4730 = vmatpush1.msra.mxu0 %v52
    %4731 = vmatprep.subr.mxu0 0.0
    %4732 = vmatpush1.msra.mxu0 %v51
    %4733 = vmatprep.subr.mxu0 0.0
    %4734 = vmatpush1.msra.mxu0 %v50
    %4735 = vmatprep.subr.mxu0 0.0
    %4736 = vmatpush1.msra.mxu0 %v49
    %4737 = vmatprep.subr.mxu0 0.0
    %4738 = vmatpush2.msra.mxu0 0.0
    %4739 = vmatprep.subr.mxu0 0.0
    %4740 = vmatpush2.msra.mxu0 0.0
    %4741 = vmatprep.subr.mxu0 0.0
    %4742 = vmatpush2.msra.mxu0 0.0
    %4743 = vmatprep.subr.mxu0 0.0
    %4744 = vmatpush2.msra.mxu0 0.0
    %4745 = vmatprep.subr.mxu0 0.0
    %4746 = vmatpush2.msra.mxu0 0.0
    %4747 = vmatprep.subr.mxu0 0.0
    %4748 = vmatpush2.msra.mxu0 0.0
    %4749 = vmatprep.subr.mxu0 0.0
    %4750 = vmatpush2.msra.mxu0 0.0
    %4751 = vmatprep.subr.mxu0 0.0
    %4752 = vmatpush2.msra.mxu0 0.0
    %4753 = vmatprep.subr.mxu0 0.0
    %4754 = vmatpush2.msra.mxu0 0.0
    %4755 = vmatprep.subr.mxu0 0.0
    %4756 = vmatpush2.msra.mxu0 0.0
    %4757 = vmatprep.subr.mxu0 0.0
    %4758 = vmatpush2.msra.mxu0 0.0
    %4759 = vmatprep.subr.mxu0 0.0
    %4760 = vmatpush2.msra.mxu0 0.0
    %4761 = vmatprep.subr.mxu0 0.0
    %4762 = vmatpush2.msra.mxu0 0.0
    %4763 = vmatprep.subr.mxu0 0.0
    %4764 = vmatpush2.msra.mxu0 0.0
    %4765 = vmatprep.subr.mxu0 0.0
    %4766 = vmatpush2.msra.mxu0 0.0
    %4767 = vmatprep.subr.mxu0 0.0
    %4768 = vmatpush2.msra.mxu0 0.0
    %4769 = vmatprep.mubr.f32.mxu0 0.0
    %4770 = vmatmul.mubr.f32.gmra.mxu0 %v4703
    %v4771 = vpop.f32.mrf.mxu0
    %v4772 = vadd.f32 %v4699, %v4771
    %v4773 = vpop.f32.mrf.mxu0
    %4774 = vdwg.mxu0
    %v4775 = vadd.f32 %v4772, %v60
    %v4776 = vtanh.pop %v4775
    %4777 = vmatprep.subr.mxu0 0.0
    %4778 = vmatpush1.msra.mxu0 0.0
    %4779 = vmatprep.subr.mxu0 0.0
    %4780 = vmatpush1.msra.mxu0 0.0
    %4781 = vmatprep.subr.mxu0 0.0
    %4782 = vmatpush1.msra.mxu0 0.0
    %4783 = vmatprep.subr.mxu0 0.0
    %4784 = vmatpush1.msra.mxu0 0.0
    %4785 = vmatprep.subr.mxu0 0.0
    %4786 = vmatpush1.msra.mxu0 0.0
    %4787 = vmatprep.subr.mxu0 0.0
    %4788 = vmatpush1.msra.mxu0 0.0
    %4789 = vmatprep.subr.mxu0 0.0
    %4790 = vmatpush1.msra.mxu0 0.0
    %4791 = vmatprep.subr.mxu0 0.0
    %4792 = vmatpush1.msra.mxu0 0.0
    %4793 = vmatprep.subr.mxu0 0.0
    %4794 = vmatpush1.msra.mxu0 0.0
    %4795 = vmatprep.subr.mxu0 0.0
    %4796 = vmatpush1.msra.mxu0 0.0
    %4797 = vmatprep.subr.mxu0 0.0
    %4798 = vmatpush1.msra.mxu0 0.0
    %4799 = vmatprep.subr.mxu0 0.0
    %4800 = vmatpush1.msra.mxu0 0.0
    %4801 = vmatprep.subr.mxu0 0.0
    %4802 = vmatpush1.msra.mxu0 %v48
    %4803 = vmatprep.subr.mxu0 0.0
    %4804 = vmatpush1.msra.mxu0 %v47
    %4805 = vmatprep.subr.mxu0 0.0
    %4806 = vmatpush1.msra.mxu0 %v46
    %4807 = vmatprep.subr.mxu0 0.0
    %4808 = vmatpush1.msra.mxu0 %v45
    %4809 = vmatprep.subr.mxu0 0.0
    %4810 = vmatpush2.msra.mxu0 0.0
    %4811 = vmatprep.subr.mxu0 0.0
    %4812 = vmatpush2.msra.mxu0 0.0
    %4813 = vmatprep.subr.mxu0 0.0
    %4814 = vmatpush2.msra.mxu0 0.0
    %4815 = vmatprep.subr.mxu0 0.0
    %4816 = vmatpush2.msra.mxu0 0.0
    %4817 = vmatprep.subr.mxu0 0.0
    %4818 = vmatpush2.msra.mxu0 0.0
    %4819 = vmatprep.subr.mxu0 0.0
    %4820 = vmatpush2.msra.mxu0 0.0
    %4821 = vmatprep.subr.mxu0 0.0
    %4822 = vmatpush2.msra.mxu0 0.0
    %4823 = vmatprep.subr.mxu0 0.0
    %4824 = vmatpush2.msra.mxu0 0.0
    %4825 = vmatprep.subr.mxu0 0.0
    %4826 = vmatpush2.msra.mxu0 0.0
    %4827 = vmatprep.subr.mxu0 0.0
    %4828 = vmatpush2.msra.mxu0 0.0
    %4829 = vmatprep.subr.mxu0 0.0
    %4830 = vmatpush2.msra.mxu0 0.0
    %4831 = vmatprep.subr.mxu0 0.0
    %4832 = vmatpush2.msra.mxu0 0.0
    %4833 = vmatprep.subr.mxu0 0.0
    %4834 = vmatpush2.msra.mxu0 0.0
    %4835 = vmatprep.subr.mxu0 0.0
    %4836 = vmatpush2.msra.mxu0 0.0
    %4837 = vmatprep.subr.mxu0 0.0
    %4838 = vmatpush2.msra.mxu0 0.0
    %4839 = vmatprep.subr.mxu0 0.0
    %4840 = vmatpush2.msra.mxu0 0.0
    %4841 = vmatprep.mubr.f32.mxu0 0.0
    %4842 = vmatmul.mubr.f32.gmra.mxu0 %v4703
    %v4843 = vpop.f32.mrf.mxu0
    %v4844 = vadd.f32 %v59, %v4843
    %v4845 = vpop.f32.mrf.mxu0
    %4846 = vdwg.mxu0
    %v4847 = vtanh.pop %v4844
    %v4849 = vsel %vm151, %v4776, 0
    %4851 = vmatprep.subr.mxu0 0.0
    %4852 = vmatpush1.msra.mxu0 0.0
    %4853 = vmatprep.subr.mxu0 0.0
    %4854 = vmatpush1.msra.mxu0 0.0
    %4855 = vmatprep.subr.mxu0 0.0
    %4856 = vmatpush1.msra.mxu0 0.0
    %4857 = vmatprep.subr.mxu0 0.0
    %4858 = vmatpush1.msra.mxu0 0.0
    %4859 = vmatprep.subr.mxu0 0.0
    %4860 = vmatpush1.msra.mxu0 0.0
    %4861 = vmatprep.subr.mxu0 0.0
    %4862 = vmatpush1.msra.mxu0 0.0
    %4863 = vmatprep.subr.mxu0 0.0
    %4864 = vmatpush1.msra.mxu0 0.0
    %4865 = vmatprep.subr.mxu0 0.0
    %4866 = vmatpush1.msra.mxu0 0.0
    %4867 = vmatprep.subr.mxu0 0.0
    %4868 = vmatpush1.msra.mxu0 0.0
    %4869 = vmatprep.subr.mxu0 0.0
    %4870 = vmatpush1.msra.mxu0 0.0
    %4871 = vmatprep.subr.mxu0 0.0
    %4872 = vmatpush1.msra.mxu0 0.0
    %4873 = vmatprep.subr.mxu0 0.0
    %4874 = vmatpush1.msra.mxu0 0.0
    %4875 = vmatprep.subr.mxu0 0.0
    %4876 = vmatpush1.msra.mxu0 %v56
    %4877 = vmatprep.subr.mxu0 0.0
    %4878 = vmatpush1.msra.mxu0 %v55
    %4879 = vmatprep.subr.mxu0 0.0
    %4880 = vmatpush1.msra.mxu0 %v54
    %4881 = vmatprep.subr.mxu0 0.0
    %4882 = vmatpush1.msra.mxu0 %v53
    %4883 = vmatprep.subr.mxu0 0.0
    %4884 = vmatpush2.msra.mxu0 0.0
    %4885 = vmatprep.subr.mxu0 0.0
    %4886 = vmatpush2.msra.mxu0 0.0
    %4887 = vmatprep.subr.mxu0 0.0
    %4888 = vmatpush2.msra.mxu0 0.0
    %4889 = vmatprep.subr.mxu0 0.0
    %4890 = vmatpush2.msra.mxu0 0.0
    %4891 = vmatprep.subr.mxu0 0.0
    %4892 = vmatpush2.msra.mxu0 0.0
    %4893 = vmatprep.subr.mxu0 0.0
    %4894 = vmatpush2.msra.mxu0 0.0
    %4895 = vmatprep.subr.mxu0 0.0
    %4896 = vmatpush2.msra.mxu0 0.0
    %4897 = vmatprep.subr.mxu0 0.0
    %4898 = vmatpush2.msra.mxu0 0.0
    %4899 = vmatprep.subr.mxu0 0.0
    %4900 = vmatpush2.msra.mxu0 0.0
    %4901 = vmatprep.subr.mxu0 0.0
    %4902 = vmatpush2.msra.mxu0 0.0
    %4903 = vmatprep.subr.mxu0 0.0
    %4904 = vmatpush2.msra.mxu0 0.0
    %4905 = vmatprep.subr.mxu0 0.0
    %4906 = vmatpush2.msra.mxu0 0.0
    %4907 = vmatprep.subr.mxu0 0.0
    %4908 = vmatpush2.msra.mxu0 0.0
    %4909 = vmatprep.subr.mxu0 0.0
    %4910 = vmatpush2.msra.mxu0 0.0
    %4911 = vmatprep.subr.mxu0 0.0
    %4912 = vmatpush2.msra.mxu0 0.0
    %4913 = vmatprep.subr.mxu0 0.0
    %4914 = vmatpush2.msra.mxu0 0.0
    %4915 = vmatprep.mubr.f32.mxu0 0.0
    %4916 = vmatmul.mubr.f32.gmra.mxu0 %v4849
    %v4917 = vpop.f32.mrf.mxu0
    %v4918 = vadd.f32 0.0, %v4917
    %v4919 = vpop.f32.mrf.mxu0
    %4920 = vdwg.mxu0
    %v4922 = vsel %vm151, %v4847, 0
    %4924 = vmatprep.subr.mxu0 0.0
    %4925 = vmatpush1.msra.mxu0 0.0
    %4926 = vmatprep.subr.mxu0 0.0
    %4927 = vmatpush1.msra.mxu0 0.0
    %4928 = vmatprep.subr.mxu0 0.0
    %4929 = vmatpush1.msra.mxu0 0.0
    %4930 = vmatprep.subr.mxu0 0.0
    %4931 = vmatpush1.msra.mxu0 0.0
    %4932 = vmatprep.subr.mxu0 0.0
    %4933 = vmatpush1.msra.mxu0 0.0
    %4934 = vmatprep.subr.mxu0 0.0
    %4935 = vmatpush1.msra.mxu0 0.0
    %4936 = vmatprep.subr.mxu0 0.0
    %4937 = vmatpush1.msra.mxu0 0.0
    %4938 = vmatprep.subr.mxu0 0.0
    %4939 = vmatpush1.msra.mxu0 0.0
    %4940 = vmatprep.subr.mxu0 0.0
    %4941 = vmatpush1.msra.mxu0 0.0
    %4942 = vmatprep.subr.mxu0 0.0
    %4943 = vmatpush1.msra.mxu0 0.0
    %4944 = vmatprep.subr.mxu0 0.0
    %4945 = vmatpush1.msra.mxu0 0.0
    %4946 = vmatprep.subr.mxu0 0.0
    %4947 = vmatpush1.msra.mxu0 0.0
    %4948 = vmatprep.subr.mxu0 0.0
    %4949 = vmatpush1.msra.mxu0 %v52
    %4950 = vmatprep.subr.mxu0 0.0
    %4951 = vmatpush1.msra.mxu0 %v51
    %4952 = vmatprep.subr.mxu0 0.0
    %4953 = vmatpush1.msra.mxu0 %v50
    %4954 = vmatprep.subr.mxu0 0.0
    %4955 = vmatpush1.msra.mxu0 %v49
    %4956 = vmatprep.subr.mxu0 0.0
    %4957 = vmatpush2.msra.mxu0 0.0
    %4958 = vmatprep.subr.mxu0 0.0
    %4959 = vmatpush2.msra.mxu0 0.0
    %4960 = vmatprep.subr.mxu0 0.0
    %4961 = vmatpush2.msra.mxu0 0.0
    %4962 = vmatprep.subr.mxu0 0.0
    %4963 = vmatpush2.msra.mxu0 0.0
    %4964 = vmatprep.subr.mxu0 0.0
    %4965 = vmatpush2.msra.mxu0 0.0
    %4966 = vmatprep.subr.mxu0 0.0
    %4967 = vmatpush2.msra.mxu0 0.0
    %4968 = vmatprep.subr.mxu0 0.0
    %4969 = vmatpush2.msra.mxu0 0.0
    %4970 = vmatprep.subr.mxu0 0.0
    %4971 = vmatpush2.msra.mxu0 0.0
    %4972 = vmatprep.subr.mxu0 0.0
    %4973 = vmatpush2.msra.mxu0 0.0
    %4974 = vmatprep.subr.mxu0 0.0
    %4975 = vmatpush2.msra.mxu0 0.0
    %4976 = vmatprep.subr.mxu0 0.0
    %4977 = vmatpush2.msra.mxu0 0.0
    %4978 = vmatprep.subr.mxu0 0.0
    %4979 = vmatpush2.msra.mxu0 0.0
    %4980 = vmatprep.subr.mxu0 0.0
    %4981 = vmatpush2.msra.mxu0 0.0
    %4982 = vmatprep.subr.mxu0 0.0
    %4983 = vmatpush2.msra.mxu0 0.0
    %4984 = vmatprep.subr.mxu0 0.0
    %4985 = vmatpush2.msra.mxu0 0.0
    %4986 = vmatprep.subr.mxu0 0.0
    %4987 = vmatpush2.msra.mxu0 0.0
    %4988 = vmatprep.mubr.f32.mxu0 0.0
    %4989 = vmatmul.mubr.f32.gmra.mxu0 %v4922
    %v4990 = vpop.f32.mrf.mxu0
    %v4991 = vadd.f32 %v4918, %v4990
    %v4992 = vpop.f32.mrf.mxu0
    %4993 = vdwg.mxu0
    %v4994 = vadd.f32 %v4991, %v60
    %v4995 = vtanh.pop %v4994
    %v4996 = vrot.slane %v2148, 7
    %v4998 = vrot.slane %v2586, 6
    %v5000 = vrot.slane %v3024, 5
    %v5002 = vrot.slane %v3462, 4
    %v5004 = vrot.slane %v3900, 3
    %v5006 = vrot.slane %v4338, 2
    %v5008 = vrot.slane %v4776, 1
    %v5010 = vrot.slane %v2367, 7
    %v5012 = vrot.slane %v2805, 6
    %v5014 = vrot.slane %v3243, 5
    %v5016 = vrot.slane %v3681, 4
    %v5018 = vrot.slane %v4119, 3
    %v5020 = vrot.slane %v4557, 2
    %v5023 = vrot.slane %v4995, 1
    %vm5025 = vcmask 1040384
    %v5026 = vsel %vm5025, %v1710, %v4996
    %vm5027 = vcmask 1041408
    %v5028 = vsel %vm5027, %v5026, %v4998
    %vm5029 = vcmask 1042432
    %v5030 = vsel %vm5029, %v5028, %v5000
    %vm5031 = vcmask 1043456
    %v5032 = vsel %vm5031, %v5030, %v5002
    %vm5033 = vcmask 1044480
    %v5034 = vsel %vm5033, %v5032, %v5004
    %vm5035 = vcmask 1045504
    %v5036 = vsel %vm5035, %v5034, %v5006
    %vm5037 = vcmask 1046528
    %v5038 = vsel %vm5037, %v5036, %v5008
    %v5039 = vsel %vm5025, %v1929, %v5010
    %v5040 = vsel %vm5027, %v5039, %v5012
    %v5041 = vsel %vm5029, %v5040, %v5014
    %v5042 = vsel %vm5031, %v5041, %v5016
    %v5043 = vsel %vm5033, %v5042, %v5018
    %v5044 = vsel %vm5035, %v5043, %v5020
    %v5045 = vsel %vm5037, %v5044, %v5023
    %v5047 = vlaneseq
    %v5048 = vshrl.u32 %v5047, 7
    %v5049 = vsub.s32 0, %v5048
    %v5050 = vrot.slane %v70, %v5049
    %v5051 = vlaneseq
    %v5052 = vshrl.u32 %v5051, 7
    %v5053 = vsub.s32 1, %v5052
    %v5054 = vrot.slane %v70, %v5053
    %v5058 = vsel %vm151, %v5038, 0
    %v5061 = vsel %vm151, %v5045, 0
    %5063 = vmatprep.subr.mxu0 0.0
    %5064 = vmatpush1.msra.mxu0 0.0
    %5065 = vmatprep.subr.mxu0 0.0
    %5066 = vmatpush1.msra.mxu0 0.0
    %5067 = vmatprep.subr.mxu0 0.0
    %5068 = vmatpush1.msra.mxu0 0.0
    %5069 = vmatprep.subr.mxu0 0.0
    %5070 = vmatpush1.msra.mxu0 0.0
    %5071 = vmatprep.subr.mxu0 0.0
    %5072 = vmatpush1.msra.mxu0 0.0
    %5073 = vmatprep.subr.mxu0 0.0
    %5074 = vmatpush1.msra.mxu0 0.0
    %5075 = vmatprep.subr.mxu0 0.0
    %5076 = vmatpush1.msra.mxu0 0.0
    %5077 = vmatprep.subr.mxu0 0.0
    %5078 = vmatpush1.msra.mxu0 0.0
    %5079 = vmatprep.subr.mxu0 0.0
    %5080 = vmatpush1.msra.mxu0 0.0
    %5081 = vmatprep.subr.mxu0 0.0
    %5082 = vmatpush1.msra.mxu0 0.0
    %5083 = vmatprep.subr.mxu0 0.0
    %5084 = vmatpush1.msra.mxu0 0.0
    %5085 = vmatprep.subr.mxu0 0.0
    %5086 = vmatpush1.msra.mxu0 0.0
    %5087 = vmatprep.subr.mxu0 %v68
    %5088 = vmatpush1.msra.mxu0 %v67
    %5089 = vmatprep.subr.mxu0 %v66
    %5090 = vmatpush1.msra.mxu0 %v65
    %5091 = vmatprep.subr.mxu0 %v64
    %5092 = vmatpush1.msra.mxu0 %v63
    %5093 = vmatprep.subr.mxu0 %v62
    %5094 = vmatpush1.msra.mxu0 %v61
    %5095 = vmatprep.subr.mxu0 0.0
    %5096 = vmatpush2.msra.mxu0 0.0
    %5097 = vmatprep.subr.mxu0 0.0
    %5098 = vmatpush2.msra.mxu0 0.0
    %5099 = vmatprep.subr.mxu0 0.0
    %5100 = vmatpush2.msra.mxu0 0.0
    %5101 = vmatprep.subr.mxu0 0.0
    %5102 = vmatpush2.msra.mxu0 0.0
    %5103 = vmatprep.subr.mxu0 0.0
    %5104 = vmatpush2.msra.mxu0 0.0
    %5105 = vmatprep.subr.mxu0 0.0
    %5106 = vmatpush2.msra.mxu0 0.0
    %5107 = vmatprep.subr.mxu0 0.0
    %5108 = vmatpush2.msra.mxu0 0.0
    %5109 = vmatprep.subr.mxu0 0.0
    %5110 = vmatpush2.msra.mxu0 0.0
    %5111 = vmatprep.subr.mxu0 0.0
    %5112 = vmatpush2.msra.mxu0 0.0
    %5113 = vmatprep.subr.mxu0 0.0
    %5114 = vmatpush2.msra.mxu0 0.0
    %5115 = vmatprep.subr.mxu0 0.0
    %5116 = vmatpush2.msra.mxu0 0.0
    %5117 = vmatprep.subr.mxu0 0.0
    %5118 = vmatpush2.msra.mxu0 0.0
    %5119 = vmatprep.subr.mxu0 0.0
    %5120 = vmatpush2.msra.mxu0 0.0
    %5121 = vmatprep.subr.mxu0 0.0
    %5122 = vmatpush2.msra.mxu0 0.0
    %5123 = vmatprep.subr.mxu0 0.0
    %5124 = vmatpush2.msra.mxu0 0.0
    %5125 = vmatprep.subr.mxu0 0.0
    %5126 = vmatpush2.msra.mxu0 0.0
    %5127 = vmatprep.mubr.f32.mxu0 0.0
    %5128 = vmatmul.mubr.f32.gmra.mxu0 %v5058
    %v5129 = vpop.f32.mrf.mxu0
    %v5130 = vadd.f32 %v5050, %v5129
    %v5131 = vpop.f32.mrf.mxu0
    %v5132 = vadd.f32 %v5054, %v5131
    %5133 = vmatprep.mubr.f32.mxu0 0.0
    %5134 = vmatmul.mubr.f32.gmra.mxu0 %v5061
    %v5135 = vpop.f32.mrf.mxu0
    %v5136 = vadd.f32 %v5050, %v5135
    %v5137 = vpop.f32.mrf.mxu0
    %v5138 = vadd.f32 %v5054, %v5137
    %5139 = vdwg.mxu0
    %5140 = vst [vmem:[#allocation2] sm:$0xff] %v5130
    %5141 = vst [vmem:[#allocation2 + $0x8] sm:$0xff] %v5132
    %5142 = vst [vmem:[#allocation2 + $0x10] sm:$0xff] %v5136
    %5143 = vst [vmem:[#allocation2 + $0x18] sm:$0xff] %v5138
    // Predicated region
    $region14: #{tpu_custom_call.1} parent=1 // pred_check
      _
    $region15: #{tpu_custom_call.1} parent=1 // pred_check_branch
      %5145 = sbr.rel (0) target = $region17
    $region16: #{tpu_custom_call.1} parent=1 // pred_region
      %s5147 = ssub.s32 512, 512
      %5148 = vsyncadd [#allocation3], %s5147
      %s5149 = sshll.u32 [#allocation2], 4
      %s5150 = int_to_ptr.vmem [resolvable:$true] %s5149
      %5155 = dma.vmem_to_hbm [thread:$0]  %s5150, 512, %s3, [#allocation3], 256, 256, 16
    $region17: #{tpu_custom_call.1} parent=1 // pred_fallthru
      _
    // Predicated region
    $region18: #{tpu_custom_call.1} parent=1 // pred_check
      _
    $region19: #{tpu_custom_call.1} parent=1 // pred_check_branch
      %5157 = sbr.rel (0) target = $region21
    $region20: #{tpu_custom_call.1} parent=1 // pred_region
      %5158 = dma.done [#allocation3], 512
    $region21: #{tpu_custom_call.1} parent=1 // pred_fallthru
      _
    %5159 = vsyncpa [#allocation3], 1

</llo_original>
